<compile_context>
chip_gen: v5e
topology: v5e:2x2
jax: 0.10.0
libtpu: 0.0.40
codegen_flags: <defaults>
</compile_context>

<pallas_src>
import functools
import math

import jax
import jax.numpy as jnp
from jax.experimental import pallas as pl
from jax.experimental.pallas import tpu as pltpu


def _round_up(x: int, m: int) -> int:
    return ((x + m - 1) // m) * m


def _pos_emb_t_kernel(f_neg_ref, zt_ref, *, seq_len: int, bands: int, tile_l: int):
    """Writes one [D, tile_l] tile of the transposed table zT.

    zT row layout: rows [0, bands)        = cos(f*w)
                   rows [bands, 2*bands)  = -sin(f*w)
                   row  2*bands           = t
    Positions run along the lane axis -> all stores are lane-dense.
    """
    i = pl.program_id(0)

    # Global position index for every lane of this tile (exact in int32).
    row = jax.lax.broadcasted_iota(jnp.int32, (1, tile_l), 1) + i * tile_l
    pos = row.astype(jnp.float32)                                   # [1, tile_l]

    # t = linspace(0, 1, seq_len)[pos]  ==  pos / (seq_len - 1)
    t_scale = (1.0 / float(seq_len - 1)) if seq_len > 1 else 0.0
    t = pos * t_scale                                               # [1, tile_l]

    # w = 2*pi * pos / seq_len (same op order as the PyTorch reference).
    w = (pos * (2.0 * math.pi)) / float(seq_len)                    # [1, tile_l]

    # theta = (-f) * w   (minus folded into the tiny [bands, 1] constant input).
    theta = f_neg_ref[...] * w                                      # [bands, tile_l]

    zt_ref[0:bands, :] = jnp.cos(theta)                 # cos(f*w)  (cos is even)
    zt_ref[bands:2 * bands, :] = jnp.sin(theta)         # -sin(f*w)
    zt_ref[2 * bands:2 * bands + 1, :] = t              # single-row partial store


def _pos_emb_jnp(seq_len: int, bands: int):
    """Plain-XLA path (tiny problems / bands == 0); identical math."""
    t = jnp.linspace(0.0, 1.0, seq_len, dtype=jnp.float32)[None, :, None]
    if bands == 0:
        return t
    t_rescaled = jnp.linspace(0.0, seq_len - 1, seq_len, dtype=jnp.float32)[None, :, None]
    w = 2 * math.pi * t_rescaled / seq_len
    f = jnp.linspace(0.0001, bands - 1, bands, dtype=jnp.float32)[None, None]
    zc = jnp.exp(-1j * f * w)
    return jnp.concatenate([t, zc.real, zc.imag], axis=-1).astype(jnp.float32)


def _choose_tile_l(L: int) -> int:
    """Tile rows: multiple of 128, <= 2048, and >= 2 grid tiles when L permits."""
    l_pad = _round_up(L, 128)
    tile = min(2048, l_pad)
    if l_pad // tile < 2 and l_pad >= 256:       # give both v7x TCs a tile
        tile = _round_up(l_pad // 2, 128)
    return tile


def _compute_pos_emb(seq_len: int, emb_dim: int, *,
                     tile_l: int | None = None, force_pallas: bool = False):
    """Builds the full table once: returns (z [1, seq_len, D], t [1, seq_len, 1])."""
    assert emb_dim > 1, "emb_dim must be > 1 (matches the PyTorch module)"
    bands = (emb_dim - 1) // 2
    D = 1 + 2 * bands

    # Tiny setup tensors (or bands == 0): Pallas launch overhead dominates.
    if bands == 0 or (not force_pallas and seq_len * bands < 4096):
        z = _pos_emb_jnp(seq_len, bands)
        return z, z[:, :, :1]

    L = seq_len
    if tile_l is None:
        tile_l = _choose_tile_l(L)
    assert tile_l % 128 == 0, "tile_l must be a multiple of 128 (lane axis)"
    L_pad = _round_up(L, tile_l)          # pad -> grid divides evenly, no partial blocks
    num_tiles = L_pad // tile_l

    # Negated frequencies, exactly matching jnp/torch linspace (sign flip is exact).
    f_neg = -jnp.linspace(0.0001, bands - 1, bands, dtype=jnp.float32).reshape(bands, 1)

    kernel = functools.partial(_pos_emb_t_kernel,
                               seq_len=seq_len, bands=bands, tile_l=tile_l)
    zT = pl.pallas_call(
        kernel,
        grid=(num_tiles,),
        in_specs=[pl.BlockSpec((bands, 1), lambda i: (0, 0))],
        out_shape=jax.ShapeDtypeStruct((D, L_pad), jnp.float32),
        out_specs=pl.BlockSpec((D, tile_l), lambda i: (0, i)),
        compiler_params=pltpu.CompilerParams(
            dimension_semantics=("parallel",),      # shard tiles across TCs (v7x)
            vmem_limit_bytes=32 * 1024 * 1024,      # explicit; fits v5e/v6e/v7x
        ),
    )(f_neg)

    # One-time reorder/transpose in the wrapper (init only, not the hot path).
    zT = zT[:, :L]                                        # drop padded positions
    t_row = zT[2 * bands:2 * bands + 1]                   # [1, L]  contiguous row
    z = jnp.concatenate([t_row, zT[:2 * bands]], axis=0)  # rows -> [t, cos, -sin]
    z = jnp.transpose(z)[None]                            # [1, L, D]
    t = jnp.transpose(t_row)[None]                        # [1, L, 1]
    return z, t


class PositionalEmbedding:
    """JAX/Pallas mirror of the PyTorch module: precompute in __init__, slice in forward."""

    def __init__(self, emb_dim: int, seq_len: int, *,
                 tile_l: int | None = None, force_pallas: bool = False):
        self.seq_len = seq_len
        self.z, self.t = _compute_pos_emb(seq_len, emb_dim,
                                          tile_l=tile_l, force_pallas=force_pallas)

    def forward(self, L: int):
        return self.z[:, :L], self.t[:, :L]


def _reference(L: int, seq_len: int, emb_dim: int):
    """Plain-JAX reference mirroring the PyTorch __init__ + forward."""
    bands = (emb_dim - 1) // 2
    t = jnp.linspace(0.0, 1.0, seq_len, dtype=jnp.float32)[None, :, None]
    t_rescaled = jnp.linspace(0.0, seq_len - 1, seq_len, dtype=jnp.float32)[None, :, None]
    w = 2 * math.pi * t_rescaled / seq_len
    f = jnp.linspace(1e-4, bands - 1, bands, dtype=jnp.float32)[None, None]
    zc = jnp.exp(-1j * f * w)
    z = jnp.concatenate([t, zc.real, zc.imag], axis=-1).astype(jnp.float32)
    return z[:, :L], t[:, :L]


if __name__ == "__main__":
    # Small, module-consistent shapes: emb_dim=65 -> bands=32, D=65; seq_len=1024.
    emb_dim = 65
    seq_len = 1024
    L = 500                      # forward slice length (not a multiple of the tile)

    # Deterministic dummy batch (forward only consumes L; keeps the script
    # shape-driven like the module's downstream usage).
    key = jax.random.PRNGKey(0)
    dummy = jax.random.normal(key, (2, L, emb_dim), dtype=jnp.float32)
    assert dummy.shape[1] == L

    pe = PositionalEmbedding(emb_dim, seq_len)          # Pallas path, grid=(2,), tile=512
    z, t = pe.forward(L)
    jax.block_until_ready((z, t))

    z_ref, t_ref = _reference(L, seq_len, emb_dim)
    assert z.shape == (1, L, 1 + 2 * ((emb_dim - 1) // 2))
    assert t.shape == (1, L, 1)
    assert jnp.allclose(z, z_ref, atol=5e-5, rtol=1e-5), \
        float(jnp.max(jnp.abs(z - z_ref)))
    assert jnp.allclose(t, t_ref, atol=2e-6, rtol=1e-5)

    # Padded-L path: seq_len not a multiple of 128, forced through Pallas
    # (exercises computed-then-discarded positions and a 2-tile grid).
    pe2 = PositionalEmbedding(33, 200, force_pallas=True)
    z2, t2 = pe2.forward(200)
    jax.block_until_ready((z2, t2))
    z2_ref, t2_ref = _reference(200, 200, 33)
    assert jnp.allclose(z2, z2_ref, atol=5e-5, rtol=1e-5)
    assert jnp.allclose(t2, t2_ref, atol=2e-6, rtol=1e-5)

    # Tiny-problem XLA fallback path (same math).
    pe3 = PositionalEmbedding(9, 16)
    z3, t3 = pe3.forward(8)
    z3_ref, t3_ref = _reference(8, 16, 9)
    assert jnp.allclose(z3, z3_ref, atol=1e-5, rtol=1e-5)
    assert jnp.allclose(t3, t3_ref, atol=1e-6, rtol=1e-6)

    print("KERNEL_OK")
</pallas_src>

<mosaic_0001>
module attributes {stable_mosaic.version = 11 : i64} {
  func.func @_pos_emb_t_kernel(%arg0: i32, %arg1: memref<32x1xf32, #tpu.memory_space<vmem>>, %arg2: memref<65x512xf32, #tpu.memory_space<vmem>>) attributes {dimension_semantics = [#tpu.dimension_semantics<parallel>], iteration_bounds = array<i64: 2>, scalar_prefetch = 0 : i64, scratch_operands = 0 : i64, tpu.core_type = #tpu.core_type<tc>, window_params = [{pipeline_mode = #tpu.pipeline_mode<synchronous>, transform_indices = @transform_0, window_bounds = array<i64: 32, 1>}, {transform_indices = @transform_1, window_bounds = array<i64: 65, 512>}]} {
    %0 = tpu.iota {dimensions = array<i32: 1>} : vector<1x512xi32>
    %c512_i32 = arith.constant 512 : i32
    %1 = arith.muli %arg0, %c512_i32 : i32
    %2 = vector.broadcast %1 : i32 to vector<1x512xi32>
    %3 = arith.addi %0, %2 : vector<1x512xi32>
    %4 = arith.sitofp %3 : vector<1x512xi32> to vector<1x512xf32>
    %cst = arith.constant 9.77517105E-4 : f32
    %5 = vector.broadcast %cst : f32 to vector<1x512xf32>
    %6 = arith.mulf %4, %5 : vector<1x512xf32>
    %cst_0 = arith.constant 6.28318548 : f32
    %7 = vector.broadcast %cst_0 : f32 to vector<1x512xf32>
    %8 = arith.mulf %4, %7 : vector<1x512xf32>
    %cst_1 = arith.constant 1.024000e+03 : f32
    %9 = vector.broadcast %cst_1 : f32 to vector<1x512xf32>
    %10 = arith.divf %8, %9 : vector<1x512xf32>
    %c0 = arith.constant 0 : index
    %c0_2 = arith.constant 0 : index
    %11 = vector.load %arg1[%c0, %c0_2] : memref<32x1xf32, #tpu.memory_space<vmem>>, vector<32x1xf32>
    %12 = vector.broadcast %11 : vector<32x1xf32> to vector<32x512xf32>
    %13 = vector.broadcast %10 : vector<1x512xf32> to vector<32x512xf32>
    %14 = arith.mulf %12, %13 : vector<32x512xf32>
    %15 = math.cos %14 : vector<32x512xf32>
    %c0_3 = arith.constant 0 : index
    %c0_4 = arith.constant 0 : index
    %16 = vector.load %arg2[%c0_3, %c0_4] : memref<65x512xf32, #tpu.memory_space<vmem>>, vector<32x512xf32>
    tpu.vector_store %arg2[%c0_3, %c0_4], %15 {strides = array<i32>} : memref<65x512xf32, #tpu.memory_space<vmem>>, vector<32x512xf32>,
    %17 = math.sin %14 : vector<32x512xf32>
    %c32 = arith.constant 32 : index
    %c0_5 = arith.constant 0 : index
    %18 = vector.load %arg2[%c32, %c0_5] : memref<65x512xf32, #tpu.memory_space<vmem>>, vector<32x512xf32>
    tpu.vector_store %arg2[%c32, %c0_5], %17 {strides = array<i32>} : memref<65x512xf32, #tpu.memory_space<vmem>>, vector<32x512xf32>,
    %c64 = arith.constant 64 : index
    %c0_6 = arith.constant 0 : index
    %19 = vector.load %arg2[%c64, %c0_6] : memref<65x512xf32, #tpu.memory_space<vmem>>, vector<1x512xf32>
    tpu.vector_store %arg2[%c64, %c0_6], %6 {strides = array<i32>} : memref<65x512xf32, #tpu.memory_space<vmem>>, vector<1x512xf32>,
    return
  }
  func.func @transform_0(%arg0: i32) -> (i32, i32) {
    %c0_i32 = arith.constant 0 : i32
    %c0_i32_0 = arith.constant 0 : i32
    %c0_i32_1 = arith.constant 0 : i32
    return %c0_i32, %c0_i32_0 : i32, i32
  }
  func.func @transform_1(%arg0: i32) -> (i32, i32) {
    %c0_i32 = arith.constant 0 : i32
    %c0_i32_0 = arith.constant 0 : i32
    return %c0_i32, %arg0 : i32, i32
  }
}

</mosaic_0001>

<llo_original>
// kernel: tpu_custom_call.1
$region0: #{tpu_custom_call.1}
  #allocation0 [shape = 'u32[]', space=smem, size = 0x4, offset = 0x4, fixed_abs, tag = 'smem constant byte address 0x4 - core index']
  #allocation1 [shape = 'u32[72,128]{1,0:T(1,128)}', space=vmem, size = 0x9000, scoped, tag = 'internal scratch']
  %s0 = inlined_call_operand.vmem [shape: f32[32,1], index: 0, kind: input, shape index: {}]
  %s1 = inlined_call_operand.hbm [shape: f32[65,1024], index: 1, kind: output, shape index: {}]
  %s2 = sld [smem:[#allocation0]]
  $region37: #{tpu_custom_call.1} parent=0
    _
  %s4 = ssub.s32 1, %s2
  %s5 = scalar_select 0, %s4, %s2
  $region1: #{tpu_custom_call.1} parent=0
    #allocation2 [shape = 'u8[294912]{0}', space=vmem, size = 0x48000, scoped, tag = 'output window, operand 0']
    #allocation3 [shape = 's32[2]{0}', space=sflag, size = 0x8, scoped, tag = 'scoped memory for tpu_custom_call.1']
    %6 = vsyncpa [#allocation3], 0
    %s7 = scalar_lea.sflag [#allocation3], 1
    %8 = vsyncpa %s7, 0
    loop: start=0, step=1, limit=4
    $region2: #{tpu_custom_call.1} parent=1 // loop_pre_header
      _
    $region3: #{tpu_custom_call.1} parent=1 // loop_header
      %s10 = sphi 0, %s14
      %p11 = scmp.ge.s32.totalorder %s10, 4
      %s18 = sphi 0, %s18
      %s20 = sphi 0, %s18
      %s21 = sphi 0, %s20
      %s35 = sphi 0, %s21
      %s41 = sphi 0, %s43
      %s44 = sphi 0, %s41
      %s45 = sphi 0, %s44
      %s61 = sphi 0, %s45
    $region4: #{tpu_custom_call.1} parent=1 // loop_header_branch
      %13 = sbr.rel (%p11) target = $region8
    $region5: #{tpu_custom_call.1} parent=1 // loop_body
      %s15 = ssub.s32 %s10, 1
      %s16 = ssub.s32 %s10, 2
      %s17 = sadd.s32 %s10, 1
      %s19 = sadd.s32 %s18, 1
      %p22 = scmp.eq.s32.totalorder %s10, 1
      %p23 = scmp.ne.s32.totalorder %s18, %s20
      %p24 = scmp.eq.s32.totalorder %s10, 0
      %p25 = por %p23, %p24
      %p26 = scmp.ne.s32.totalorder %s18, %s20
      %p27 = scmp.eq.s32.totalorder %s15, 1
      %p28 = por %p26, %p27
      %p29 = scmp.ne.s32.totalorder %s20, %s21
      %p30 = scmp.eq.s32.totalorder %s15, 0
      %p31 = por %p29, %p30
      %p32 = scmp.ne.s32.totalorder %s20, %s21
      %p33 = scmp.eq.s32.totalorder %s16, 1
      %p34 = por %p32, %p33
      %p36 = scmp.ne.s32.totalorder %s21, %s35
      %p37 = scmp.eq.s32.totalorder %s16, 0
      %p38 = por %p36, %p37
      %s39 = ssub.s32 %s10, %s17
      %p40 = scmp.eq.s32.totalorder %s39, 0
      %s42 = sadd.s32 %s41, 1
      %s43 = scalar_select %p40, %s41, %s42
      %p46 = pneg %p40
      %p47 = scmp.eq.s32.totalorder %s10, 1
      %p48 = por %p46, %p47
      %p49 = scmp.ne.s32.totalorder %s41, %s44
      %p50 = scmp.eq.s32.totalorder %s10, 0
      %p51 = por %p49, %p50
      %p52 = scmp.ne.s32.totalorder %s41, %s44
      %p53 = scmp.eq.s32.totalorder %s15, 1
      %p54 = por %p52, %p53
      %p55 = scmp.ne.s32.totalorder %s44, %s45
      %p56 = scmp.eq.s32.totalorder %s15, 0
      %p57 = por %p55, %p56
      %p58 = scmp.ne.s32.totalorder %s44, %s45
      %p59 = scmp.eq.s32.totalorder %s16, 1
      %p60 = por %p58, %p59
      %p62 = scmp.ne.s32.totalorder %s45, %s61
      %p63 = scmp.eq.s32.totalorder %s16, 0
      %p64 = por %p62, %p63
      %p65 = scmp.le.s32.totalorder 1, %s10
      %p66 = scmp.lt.s32.totalorder %s10, 3
      %p67 = pnand %p65, %p66
      %p68 = pneg %p67
      // Predicated region
      $region9: #{tpu_custom_call.1} parent=5 // pred_check
        _
      $region10: #{tpu_custom_call.1} parent=5 // pred_check_branch
        %70 = sbr.rel (%p67) target = $region12
      $region11: #{tpu_custom_call.1} parent=5 // pred_region
        %s71 = ssub.s32 %s10, 1
        // Predicated region
        $region13: #{tpu_custom_call.1} parent=11 // pred_check
          %p72 = pneg %p31
        $region14: #{tpu_custom_call.1} parent=11 // pred_check_branch
          %74 = sbr.rel (%p72) target = $region16
        $region15: #{tpu_custom_call.1} parent=11 // pred_region
          _
        $region16: #{tpu_custom_call.1} parent=11 // pred_fallthru
          _
      $region12: #{tpu_custom_call.1} parent=5 // pred_fallthru
        _
      %p75 = scmp.lt.s32.totalorder %s10, 2
      // Predicated region
      $region17: #{tpu_custom_call.1} parent=5 // pred_check
        %p76 = pneg %p75
      $region18: #{tpu_custom_call.1} parent=5 // pred_check_branch
        %78 = sbr.rel (%p76) target = $region20
      $region19: #{tpu_custom_call.1} parent=5 // pred_region
        _
      $region20: #{tpu_custom_call.1} parent=5 // pred_fallthru
        _
      %p79 = scmp.le.s32.totalorder 1, %s10
      %p80 = scmp.lt.s32.totalorder %s10, 3
      %p81 = pnand %p79, %p80
      %p82 = pneg %p81
      // Predicated region
      $region21: #{tpu_custom_call.1} parent=5 // pred_check
        _
      $region22: #{tpu_custom_call.1} parent=5 // pred_check_branch
        %84 = sbr.rel (%p81) target = $region24
      $region23: #{tpu_custom_call.1} parent=5 // pred_region
        %s85 = ssub.s32 %s10, 1
        %p86 = pneg %p31
        %p87 = pneg %p28
        %p88 = pneg %p57
        %p89 = pneg %p54
        %s90 = sand.u32 %s44, 1
        %s91 = scalar_lea.sflag [#allocation3], %s90
        %s92 = sand.u32 %s44, 1
        %s93 = smul.addr %s92, 288
        %s94 = scalar_lea.vmem [#allocation2], %s93
        %s95 = smul.u32 4, %s15
        %v96 = vlaneseq
        %v97 = vand.u32 %v96, 127
        %v98 = vadd.s32 %v97, 128
        %v99 = vadd.s32 %v97, 256
        %v100 = vadd.s32 %v97, 384
        %s101 = smul.u32 %s15, 512
        %v102 = vstv %s101
        %v103 = vadd.s32 %v97, %v102
        %v104 = vadd.s32 %v98, %v102
        %v105 = vadd.s32 %v99, %v102
        %v106 = vadd.s32 %v100, %v102
        %v107 = vcvt.s32.f32 %v103
        %v108 = vcvt.s32.f32 %v104
        %v109 = vcvt.s32.f32 %v105
        %v110 = vcvt.s32.f32 %v106
        %v111 = vmul.f32 %v107, 0.0009775171
        %v112 = vmul.f32 %v108, 0.0009775171
        %v113 = vmul.f32 %v109, 0.0009775171
        %v114 = vmul.f32 %v110, 0.0009775171
        %v115 = vmul.f32 %v107, 6.2831855
        %v116 = vmul.f32 %v108, 6.2831855
        %v117 = vmul.f32 %v109, 6.2831855
        %v118 = vmul.f32 %v110, 6.2831855
        %v119 = vrcp.pop 1024.0
        %v120 = vmul.f32 1024.0, %v119
        %v121 = vsub.f32 1.0, %v120
        %v122 = vmul.f32 %v119, %v121
        %v123 = vadd.f32 %v119, %v122
        %vm124 = vweird.f32 %v119
        %v125 = vsel %vm124, %v119, %v123
        %v126 = vmul.f32 %v115, %v125
        %v127 = vmul.f32 %v116, %v125
        %v128 = vmul.f32 %v117, %v125
        %v129 = vmul.f32 %v118, %v125
        %v130 = vld [vmem:[%s0] sm:$0xff]
        %v131 = vld [vmem:[%s0 + $0x8] sm:$0xff]
        %v132 = vld [vmem:[%s0 + $0x10] sm:$0xff]
        %v133 = vld [vmem:[%s0 + $0x18] sm:$0xff]
        %135 = vset.pattern.permute.xlu0 0
        %136 = vperm.xlu0 %135, %v130
        %v137 = vpop.permute.xlu0 %136
        %140 = vset.pattern.permute.xlu0 0
        %141 = vperm.xlu0 %140, %v131
        %v142 = vpop.permute.xlu0 %141
        %145 = vset.pattern.permute.xlu0 0
        %146 = vperm.xlu0 %145, %v132
        %v147 = vpop.permute.xlu0 %146
        %150 = vset.pattern.permute.xlu0 0
        %151 = vperm.xlu0 %150, %v133
        %v152 = vpop.permute.xlu0 %151
        %v154 = vmul.f32 %v137, %v126
        %v155 = vmul.f32 %v137, %v127
        %v156 = vmul.f32 %v137, %v128
        %v157 = vmul.f32 %v137, %v129
        %v158 = vmul.f32 %v142, %v126
        %v159 = vmul.f32 %v142, %v127
        %v160 = vmul.f32 %v142, %v128
        %v161 = vmul.f32 %v142, %v129
        %v162 = vmul.f32 %v147, %v126
        %v163 = vmul.f32 %v147, %v127
        %v164 = vmul.f32 %v147, %v128
        %v165 = vmul.f32 %v147, %v129
        %v166 = vmul.f32 %v152, %v126
        %v167 = vmul.f32 %v152, %v127
        %v168 = vmul.f32 %v152, %v128
        %v169 = vmul.f32 %v152, %v129
        %v170 = vand.u32 2147483647, %v154
        %vm171 = vcmp.le.f32.partialorder %v170, 0.7853982
        %vm172 = vcmp.lt.s32.totalorder %v154, 0
        %v173 = vand.u32 %v154, 2139095040
        %v174 = vshrl.u32 %v173, 23
        %v175 = vsub.s32 %v174, 127
        %v176 = vand.u32 2147483647, %v154
        %v177 = vand.u32 %v176, 8388607
        %v178 = vor.u32 %v177, 8388608
        %v179 = vsub.s32 0, %v178
        %v180 = vadd.s32 %v175, 1
        %vm181 = vcmp.gt.s32.totalorder %v180, 0
        %v182 = vsel %vm181, %v180, 0
        %v183 = vshrl.u32 %v182, 5
        %v184 = vand.u32 %v182, 31
        %v185 = vsub.s32 32, %v184
        %v186 = vshrl.u32 683565275, %v185
        %v187 = vshll.u32 683565275, %v184
        %v188 = vshrl.u32 2475754826, %v185
        %v189 = vor.u32 %v187, %v188
        %v190 = vshll.u32 2475754826, %v184
        %v191 = vshrl.u32 2131351028, %v185
        %v192 = vor.u32 %v190, %v191
        %v193 = vshll.u32 2131351028, %v184
        %v194 = vshrl.u32 2102212464, %v185
        %v195 = vor.u32 %v193, %v194
        %v196 = vshll.u32 2102212464, %v184
        %v197 = vshrl.u32 920167782, %v185
        %v198 = vor.u32 %v196, %v197
        %v199 = vshll.u32 920167782, %v184
        %v200 = vshrl.u32 1326507024, %v185
        %v201 = vor.u32 %v199, %v200
        %vm202 = vcmp.lt.s32.totalorder %v183, 1
        %vm203 = vcmp.lt.s32.totalorder %v183, 2
        %vm204 = vcmp.lt.s32.totalorder %v183, 3
        %vm205 = vcmp.lt.s32.totalorder %v183, 4
        %v206 = vsel %vm202, %v186, %v189
        %v207 = vsel %vm205, %v195, 2102212464
        %v208 = vsel %vm204, %v192, %v207
        %v209 = vsel %vm203, %v206, %v208
        %v210 = vsel %vm202, %v189, %v192
        %v211 = vsel %vm205, %v198, 920167782
        %v212 = vsel %vm204, %v195, %v211
        %v213 = vsel %vm203, %v210, %v212
        %v214 = vsel %vm202, %v192, %v195
        %v215 = vsel %vm205, %v201, 1326507024
        %v216 = vsel %vm204, %v198, %v215
        %v217 = vsel %vm203, %v214, %v216
        %v218 = vshll.u32 %v178, 8
        %v219 = vand.u32 %v218, 65535
        %v220 = vshrl.u32 %v218, 16
        %v221 = vand.u32 %v217, 65535
        %v222 = vshrl.u32 %v217, 16
        %v223 = vmul.u32 %v219, %v221
        %v224 = vmul.u32 %v219, %v222
        %v225 = vmul.u32 %v220, %v221
        %v226 = vmul.u32 %v220, %v222
        %v227 = vshll.u32 %v224, 16
        %v228 = vshrl.u32 %v224, 16
        %v229 = vshll.u32 %v225, 16
        %v230 = vshrl.u32 %v225, 16
        %vm231 = vc.u32 %v223, %v227
        %v232 = vsel %vm231, 1, 0
        %v233 = vadd.s32 %v223, %v227
        %v234 = vadd.s32 %v226, %v232
        %vm235 = vc.u32 %v233, %v229
        %v236 = vsel %vm235, 1, 0
        %v237 = vadd.s32 %v233, %v229
        %v238 = vadd.s32 %v234, %v236
        %v239 = vadd.s32 %v238, %v228
        %v240 = vadd.s32 %v239, %v230
        %v241 = vand.u32 %v218, 65535
        %v242 = vshrl.u32 %v218, 16
        %v243 = vand.u32 %v213, 65535
        %v244 = vshrl.u32 %v213, 16
        %v245 = vmul.u32 %v241, %v243
        %v246 = vmul.u32 %v241, %v244
        %v247 = vmul.u32 %v242, %v243
        %v248 = vmul.u32 %v242, %v244
        %v249 = vshll.u32 %v246, 16
        %v250 = vshrl.u32 %v246, 16
        %v251 = vshll.u32 %v247, 16
        %v252 = vshrl.u32 %v247, 16
        %vm253 = vc.u32 %v245, %v249
        %v254 = vsel %vm253, 1, 0
        %v255 = vadd.s32 %v245, %v249
        %v256 = vadd.s32 %v248, %v254
        %vm257 = vc.u32 %v255, %v251
        %v258 = vsel %vm257, 1, 0
        %v259 = vadd.s32 %v255, %v251
        %v260 = vadd.s32 %v256, %v258
        %v261 = vadd.s32 %v260, %v250
        %v262 = vadd.s32 %v261, %v252
        %v263 = vmul.u32 %v218, %v209
        %v264 = vadd.s32 %v240, %v259
        %vm265 = vc.u32 %v240, %v259
        %v266 = vadd.s32 %v262, 1
        %v267 = vsel %vm265, %v266, %v262
        %v268 = vadd.s32 %v263, %v267
        %v269 = vadd.s32 %v268, 536870912
        %v270 = vshrl.u32 %v269, 30
        %v271 = vshll.u32 %v270, 30
        %v272 = vsub.s32 %v268, %v271
        %vm273 = vcmp.lt.s32.totalorder %v272, 0
        %v274 = vsub.s32 0, %v272
        %v275 = vsel %vm273, %v274, %v272
        %v276 = vclz %v275
        %v277 = vsub.s32 %v276, 2
        %vm278 = vcmp.gt.s32.totalorder 0, %v277
        %v279 = vsel %vm278, 0, %v277
        %v280 = vsub.s32 32, %v279
        %v281 = vshll.u32 %v272, %v279
        %v282 = vshrl.u32 %v264, %v280
        %v283 = vor.u32 %v281, %v282
        %v284 = vsub.s32 4294967266, %v279
        %v285 = vadd.s32 %v284, 127
        %v286 = vshll.u32 %v285, 23
        %v287 = vor.u32 4788187, %v286
        %v288 = vand.u32 2147483647, %v287
        %v290 = vcvt.s32.f32 %v283
        %v291 = vmul.f32 %v290, %v288
        %v292 = vxor.u32 %v291, 2147483648
        %v293 = vsel %vm172, %v292, %v291
        %v294 = vsub.s32 4, %v270
        %v295 = vsel %vm172, %v294, %v270
        %v296 = vsel %vm171, %v154, %v293
        %v297 = vsel %vm171, 0, %v295
        %v298 = vmul.f32 %v296, %v296
        %v299 = vmul.f32 %v298, -0.001358992
        %v300 = vadd.f32 %v299, 0.041655596
        %v301 = vmul.f32 %v298, %v300
        %v302 = vadd.f32 %v301, -0.4999988
        %v303 = vmul.f32 %v298, %v302
        %v304 = vadd.f32 1.0, %v303
        %v305 = vmul.f32 %v296, %v296
        %v306 = vmul.f32 %v305, -0.00019511016
        %v307 = vadd.f32 %v306, 0.008332121
        %v308 = vmul.f32 %v305, %v307
        %v309 = vadd.f32 %v308, -0.16666654
        %v310 = vmul.f32 %v305, %v309
        %v311 = vadd.f32 %v310, 1.0
        %v312 = vmul.f32 %v311, %v296
        %vm313 = vweird.f32 %v154
        %v314 = vand.u32 %v297, 3
        %vm315 = vcmp.lt.s32.totalorder %v314, 2
        %vm316 = vcmp.eq.s32.totalorder %v314, 0
        %v317 = vxor.u32 %v312, 2147483648
        %v318 = vsel %vm316, %v304, %v317
        %vm319 = vcmp.eq.s32.totalorder %v314, 2
        %v320 = vxor.u32 %v304, 2147483648
        %v321 = vsel %vm319, %v320, %v312
        %v322 = vsel %vm315, %v318, %v321
        %v323 = vsel %vm313, nan, %v322
        %v324 = vand.u32 2147483647, %v155
        %vm325 = vcmp.le.f32.partialorder %v324, 0.7853982
        %vm326 = vcmp.lt.s32.totalorder %v155, 0
        %v327 = vand.u32 %v155, 2139095040
        %v328 = vshrl.u32 %v327, 23
        %v329 = vsub.s32 %v328, 127
        %v330 = vand.u32 2147483647, %v155
        %v331 = vand.u32 %v330, 8388607
        %v332 = vor.u32 %v331, 8388608
        %v333 = vsub.s32 0, %v332
        %v334 = vadd.s32 %v329, 1
        %vm335 = vcmp.gt.s32.totalorder %v334, 0
        %v336 = vsel %vm335, %v334, 0
        %v337 = vshrl.u32 %v336, 5
        %v338 = vand.u32 %v336, 31
        %v339 = vsub.s32 32, %v338
        %v340 = vshrl.u32 683565275, %v339
        %v341 = vshll.u32 683565275, %v338
        %v342 = vshrl.u32 2475754826, %v339
        %v343 = vor.u32 %v341, %v342
        %v344 = vshll.u32 2475754826, %v338
        %v345 = vshrl.u32 2131351028, %v339
        %v346 = vor.u32 %v344, %v345
        %v347 = vshll.u32 2131351028, %v338
        %v348 = vshrl.u32 2102212464, %v339
        %v349 = vor.u32 %v347, %v348
        %v350 = vshll.u32 2102212464, %v338
        %v351 = vshrl.u32 920167782, %v339
        %v352 = vor.u32 %v350, %v351
        %v353 = vshll.u32 920167782, %v338
        %v354 = vshrl.u32 1326507024, %v339
        %v355 = vor.u32 %v353, %v354
        %vm356 = vcmp.lt.s32.totalorder %v337, 1
        %vm357 = vcmp.lt.s32.totalorder %v337, 2
        %vm358 = vcmp.lt.s32.totalorder %v337, 3
        %vm359 = vcmp.lt.s32.totalorder %v337, 4
        %v360 = vsel %vm356, %v340, %v343
        %v361 = vsel %vm359, %v349, 2102212464
        %v362 = vsel %vm358, %v346, %v361
        %v363 = vsel %vm357, %v360, %v362
        %v364 = vsel %vm356, %v343, %v346
        %v365 = vsel %vm359, %v352, 920167782
        %v366 = vsel %vm358, %v349, %v365
        %v367 = vsel %vm357, %v364, %v366
        %v368 = vsel %vm356, %v346, %v349
        %v369 = vsel %vm359, %v355, 1326507024
        %v370 = vsel %vm358, %v352, %v369
        %v371 = vsel %vm357, %v368, %v370
        %v372 = vshll.u32 %v332, 8
        %v373 = vand.u32 %v372, 65535
        %v374 = vshrl.u32 %v372, 16
        %v375 = vand.u32 %v371, 65535
        %v376 = vshrl.u32 %v371, 16
        %v377 = vmul.u32 %v373, %v375
        %v378 = vmul.u32 %v373, %v376
        %v379 = vmul.u32 %v374, %v375
        %v380 = vmul.u32 %v374, %v376
        %v381 = vshll.u32 %v378, 16
        %v382 = vshrl.u32 %v378, 16
        %v383 = vshll.u32 %v379, 16
        %v384 = vshrl.u32 %v379, 16
        %vm385 = vc.u32 %v377, %v381
        %v386 = vsel %vm385, 1, 0
        %v387 = vadd.s32 %v377, %v381
        %v388 = vadd.s32 %v380, %v386
        %vm389 = vc.u32 %v387, %v383
        %v390 = vsel %vm389, 1, 0
        %v391 = vadd.s32 %v387, %v383
        %v392 = vadd.s32 %v388, %v390
        %v393 = vadd.s32 %v392, %v382
        %v394 = vadd.s32 %v393, %v384
        %v395 = vand.u32 %v372, 65535
        %v396 = vshrl.u32 %v372, 16
        %v397 = vand.u32 %v367, 65535
        %v398 = vshrl.u32 %v367, 16
        %v399 = vmul.u32 %v395, %v397
        %v400 = vmul.u32 %v395, %v398
        %v401 = vmul.u32 %v396, %v397
        %v402 = vmul.u32 %v396, %v398
        %v403 = vshll.u32 %v400, 16
        %v404 = vshrl.u32 %v400, 16
        %v405 = vshll.u32 %v401, 16
        %v406 = vshrl.u32 %v401, 16
        %vm407 = vc.u32 %v399, %v403
        %v408 = vsel %vm407, 1, 0
        %v409 = vadd.s32 %v399, %v403
        %v410 = vadd.s32 %v402, %v408
        %vm411 = vc.u32 %v409, %v405
        %v412 = vsel %vm411, 1, 0
        %v413 = vadd.s32 %v409, %v405
        %v414 = vadd.s32 %v410, %v412
        %v415 = vadd.s32 %v414, %v404
        %v416 = vadd.s32 %v415, %v406
        %v417 = vmul.u32 %v372, %v363
        %v418 = vadd.s32 %v394, %v413
        %vm419 = vc.u32 %v394, %v413
        %v420 = vadd.s32 %v416, 1
        %v421 = vsel %vm419, %v420, %v416
        %v422 = vadd.s32 %v417, %v421
        %v423 = vadd.s32 %v422, 536870912
        %v424 = vshrl.u32 %v423, 30
        %v425 = vshll.u32 %v424, 30
        %v426 = vsub.s32 %v422, %v425
        %vm427 = vcmp.lt.s32.totalorder %v426, 0
        %v428 = vsub.s32 0, %v426
        %v429 = vsel %vm427, %v428, %v426
        %v430 = vclz %v429
        %v431 = vsub.s32 %v430, 2
        %vm432 = vcmp.gt.s32.totalorder 0, %v431
        %v433 = vsel %vm432, 0, %v431
        %v434 = vsub.s32 32, %v433
        %v435 = vshll.u32 %v426, %v433
        %v436 = vshrl.u32 %v418, %v434
        %v437 = vor.u32 %v435, %v436
        %v438 = vsub.s32 4294967266, %v433
        %v439 = vadd.s32 %v438, 127
        %v440 = vshll.u32 %v439, 23
        %v441 = vor.u32 4788187, %v440
        %v442 = vand.u32 2147483647, %v441
        %v444 = vcvt.s32.f32 %v437
        %v445 = vmul.f32 %v444, %v442
        %v446 = vxor.u32 %v445, 2147483648
        %v447 = vsel %vm326, %v446, %v445
        %v448 = vsub.s32 4, %v424
        %v449 = vsel %vm326, %v448, %v424
        %v450 = vsel %vm325, %v155, %v447
        %v451 = vsel %vm325, 0, %v449
        %v452 = vmul.f32 %v450, %v450
        %v453 = vmul.f32 %v452, -0.001358992
        %v454 = vadd.f32 %v453, 0.041655596
        %v455 = vmul.f32 %v452, %v454
        %v456 = vadd.f32 %v455, -0.4999988
        %v457 = vmul.f32 %v452, %v456
        %v458 = vadd.f32 1.0, %v457
        %v459 = vmul.f32 %v450, %v450
        %v460 = vmul.f32 %v459, -0.00019511016
        %v461 = vadd.f32 %v460, 0.008332121
        %v462 = vmul.f32 %v459, %v461
        %v463 = vadd.f32 %v462, -0.16666654
        %v464 = vmul.f32 %v459, %v463
        %v465 = vadd.f32 %v464, 1.0
        %v466 = vmul.f32 %v465, %v450
        %vm467 = vweird.f32 %v155
        %v468 = vand.u32 %v451, 3
        %vm469 = vcmp.lt.s32.totalorder %v468, 2
        %vm470 = vcmp.eq.s32.totalorder %v468, 0
        %v471 = vxor.u32 %v466, 2147483648
        %v472 = vsel %vm470, %v458, %v471
        %vm473 = vcmp.eq.s32.totalorder %v468, 2
        %v474 = vxor.u32 %v458, 2147483648
        %v475 = vsel %vm473, %v474, %v466
        %v476 = vsel %vm469, %v472, %v475
        %v477 = vsel %vm467, nan, %v476
        %v478 = vand.u32 2147483647, %v156
        %vm479 = vcmp.le.f32.partialorder %v478, 0.7853982
        %vm480 = vcmp.lt.s32.totalorder %v156, 0
        %v481 = vand.u32 %v156, 2139095040
        %v482 = vshrl.u32 %v481, 23
        %v483 = vsub.s32 %v482, 127
        %v484 = vand.u32 2147483647, %v156
        %v485 = vand.u32 %v484, 8388607
        %v486 = vor.u32 %v485, 8388608
        %v487 = vsub.s32 0, %v486
        %v488 = vadd.s32 %v483, 1
        %vm489 = vcmp.gt.s32.totalorder %v488, 0
        %v490 = vsel %vm489, %v488, 0
        %v491 = vshrl.u32 %v490, 5
        %v492 = vand.u32 %v490, 31
        %v493 = vsub.s32 32, %v492
        %v494 = vshrl.u32 683565275, %v493
        %v495 = vshll.u32 683565275, %v492
        %v496 = vshrl.u32 2475754826, %v493
        %v497 = vor.u32 %v495, %v496
        %v498 = vshll.u32 2475754826, %v492
        %v499 = vshrl.u32 2131351028, %v493
        %v500 = vor.u32 %v498, %v499
        %v501 = vshll.u32 2131351028, %v492
        %v502 = vshrl.u32 2102212464, %v493
        %v503 = vor.u32 %v501, %v502
        %v504 = vshll.u32 2102212464, %v492
        %v505 = vshrl.u32 920167782, %v493
        %v506 = vor.u32 %v504, %v505
        %v507 = vshll.u32 920167782, %v492
        %v508 = vshrl.u32 1326507024, %v493
        %v509 = vor.u32 %v507, %v508
        %vm510 = vcmp.lt.s32.totalorder %v491, 1
        %vm511 = vcmp.lt.s32.totalorder %v491, 2
        %vm512 = vcmp.lt.s32.totalorder %v491, 3
        %vm513 = vcmp.lt.s32.totalorder %v491, 4
        %v514 = vsel %vm510, %v494, %v497
        %v515 = vsel %vm513, %v503, 2102212464
        %v516 = vsel %vm512, %v500, %v515
        %v517 = vsel %vm511, %v514, %v516
        %v518 = vsel %vm510, %v497, %v500
        %v519 = vsel %vm513, %v506, 920167782
        %v520 = vsel %vm512, %v503, %v519
        %v521 = vsel %vm511, %v518, %v520
        %v522 = vsel %vm510, %v500, %v503
        %v523 = vsel %vm513, %v509, 1326507024
        %v524 = vsel %vm512, %v506, %v523
        %v525 = vsel %vm511, %v522, %v524
        %v526 = vshll.u32 %v486, 8
        %v527 = vand.u32 %v526, 65535
        %v528 = vshrl.u32 %v526, 16
        %v529 = vand.u32 %v525, 65535
        %v530 = vshrl.u32 %v525, 16
        %v531 = vmul.u32 %v527, %v529
        %v532 = vmul.u32 %v527, %v530
        %v533 = vmul.u32 %v528, %v529
        %v534 = vmul.u32 %v528, %v530
        %v535 = vshll.u32 %v532, 16
        %v536 = vshrl.u32 %v532, 16
        %v537 = vshll.u32 %v533, 16
        %v538 = vshrl.u32 %v533, 16
        %vm539 = vc.u32 %v531, %v535
        %v540 = vsel %vm539, 1, 0
        %v541 = vadd.s32 %v531, %v535
        %v542 = vadd.s32 %v534, %v540
        %vm543 = vc.u32 %v541, %v537
        %v544 = vsel %vm543, 1, 0
        %v545 = vadd.s32 %v541, %v537
        %v546 = vadd.s32 %v542, %v544
        %v547 = vadd.s32 %v546, %v536
        %v548 = vadd.s32 %v547, %v538
        %v549 = vand.u32 %v526, 65535
        %v550 = vshrl.u32 %v526, 16
        %v551 = vand.u32 %v521, 65535
        %v552 = vshrl.u32 %v521, 16
        %v553 = vmul.u32 %v549, %v551
        %v554 = vmul.u32 %v549, %v552
        %v555 = vmul.u32 %v550, %v551
        %v556 = vmul.u32 %v550, %v552
        %v557 = vshll.u32 %v554, 16
        %v558 = vshrl.u32 %v554, 16
        %v559 = vshll.u32 %v555, 16
        %v560 = vshrl.u32 %v555, 16
        %vm561 = vc.u32 %v553, %v557
        %v562 = vsel %vm561, 1, 0
        %v563 = vadd.s32 %v553, %v557
        %v564 = vadd.s32 %v556, %v562
        %vm565 = vc.u32 %v563, %v559
        %v566 = vsel %vm565, 1, 0
        %v567 = vadd.s32 %v563, %v559
        %v568 = vadd.s32 %v564, %v566
        %v569 = vadd.s32 %v568, %v558
        %v570 = vadd.s32 %v569, %v560
        %v571 = vmul.u32 %v526, %v517
        %v572 = vadd.s32 %v548, %v567
        %vm573 = vc.u32 %v548, %v567
        %v574 = vadd.s32 %v570, 1
        %v575 = vsel %vm573, %v574, %v570
        %v576 = vadd.s32 %v571, %v575
        %v577 = vadd.s32 %v576, 536870912
        %v578 = vshrl.u32 %v577, 30
        %v579 = vshll.u32 %v578, 30
        %v580 = vsub.s32 %v576, %v579
        %vm581 = vcmp.lt.s32.totalorder %v580, 0
        %v582 = vsub.s32 0, %v580
        %v583 = vsel %vm581, %v582, %v580
        %v584 = vclz %v583
        %v585 = vsub.s32 %v584, 2
        %vm586 = vcmp.gt.s32.totalorder 0, %v585
        %v587 = vsel %vm586, 0, %v585
        %v588 = vsub.s32 32, %v587
        %v589 = vshll.u32 %v580, %v587
        %v590 = vshrl.u32 %v572, %v588
        %v591 = vor.u32 %v589, %v590
        %v592 = vsub.s32 4294967266, %v587
        %v593 = vadd.s32 %v592, 127
        %v594 = vshll.u32 %v593, 23
        %v595 = vor.u32 4788187, %v594
        %v596 = vand.u32 2147483647, %v595
        %v598 = vcvt.s32.f32 %v591
        %v599 = vmul.f32 %v598, %v596
        %v600 = vxor.u32 %v599, 2147483648
        %v601 = vsel %vm480, %v600, %v599
        %v602 = vsub.s32 4, %v578
        %v603 = vsel %vm480, %v602, %v578
        %v604 = vsel %vm479, %v156, %v601
        %v605 = vsel %vm479, 0, %v603
        %v606 = vmul.f32 %v604, %v604
        %v607 = vmul.f32 %v606, -0.001358992
        %v608 = vadd.f32 %v607, 0.041655596
        %v609 = vmul.f32 %v606, %v608
        %v610 = vadd.f32 %v609, -0.4999988
        %v611 = vmul.f32 %v606, %v610
        %v612 = vadd.f32 1.0, %v611
        %v613 = vmul.f32 %v604, %v604
        %v614 = vmul.f32 %v613, -0.00019511016
        %v615 = vadd.f32 %v614, 0.008332121
        %v616 = vmul.f32 %v613, %v615
        %v617 = vadd.f32 %v616, -0.16666654
        %v618 = vmul.f32 %v613, %v617
        %v619 = vadd.f32 %v618, 1.0
        %v620 = vmul.f32 %v619, %v604
        %vm621 = vweird.f32 %v156
        %v622 = vand.u32 %v605, 3
        %vm623 = vcmp.lt.s32.totalorder %v622, 2
        %vm624 = vcmp.eq.s32.totalorder %v622, 0
        %v625 = vxor.u32 %v620, 2147483648
        %v626 = vsel %vm624, %v612, %v625
        %vm627 = vcmp.eq.s32.totalorder %v622, 2
        %v628 = vxor.u32 %v612, 2147483648
        %v629 = vsel %vm627, %v628, %v620
        %v630 = vsel %vm623, %v626, %v629
        %v631 = vsel %vm621, nan, %v630
        %v632 = vand.u32 2147483647, %v157
        %vm633 = vcmp.le.f32.partialorder %v632, 0.7853982
        %vm634 = vcmp.lt.s32.totalorder %v157, 0
        %v635 = vand.u32 %v157, 2139095040
        %v636 = vshrl.u32 %v635, 23
        %v637 = vsub.s32 %v636, 127
        %v638 = vand.u32 2147483647, %v157
        %v639 = vand.u32 %v638, 8388607
        %v640 = vor.u32 %v639, 8388608
        %v641 = vsub.s32 0, %v640
        %v642 = vadd.s32 %v637, 1
        %vm643 = vcmp.gt.s32.totalorder %v642, 0
        %v644 = vsel %vm643, %v642, 0
        %v645 = vshrl.u32 %v644, 5
        %v646 = vand.u32 %v644, 31
        %v647 = vsub.s32 32, %v646
        %v648 = vshrl.u32 683565275, %v647
        %v649 = vshll.u32 683565275, %v646
        %v650 = vshrl.u32 2475754826, %v647
        %v651 = vor.u32 %v649, %v650
        %v652 = vshll.u32 2475754826, %v646
        %v653 = vshrl.u32 2131351028, %v647
        %v654 = vor.u32 %v652, %v653
        %v655 = vshll.u32 2131351028, %v646
        %v656 = vshrl.u32 2102212464, %v647
        %v657 = vor.u32 %v655, %v656
        %v658 = vshll.u32 2102212464, %v646
        %v659 = vshrl.u32 920167782, %v647
        %v660 = vor.u32 %v658, %v659
        %v661 = vshll.u32 920167782, %v646
        %v662 = vshrl.u32 1326507024, %v647
        %v663 = vor.u32 %v661, %v662
        %vm664 = vcmp.lt.s32.totalorder %v645, 1
        %vm665 = vcmp.lt.s32.totalorder %v645, 2
        %vm666 = vcmp.lt.s32.totalorder %v645, 3
        %vm667 = vcmp.lt.s32.totalorder %v645, 4
        %v668 = vsel %vm664, %v648, %v651
        %v669 = vsel %vm667, %v657, 2102212464
        %v670 = vsel %vm666, %v654, %v669
        %v671 = vsel %vm665, %v668, %v670
        %v672 = vsel %vm664, %v651, %v654
        %v673 = vsel %vm667, %v660, 920167782
        %v674 = vsel %vm666, %v657, %v673
        %v675 = vsel %vm665, %v672, %v674
        %v676 = vsel %vm664, %v654, %v657
        %v677 = vsel %vm667, %v663, 1326507024
        %v678 = vsel %vm666, %v660, %v677
        %v679 = vsel %vm665, %v676, %v678
        %v680 = vshll.u32 %v640, 8
        %v681 = vand.u32 %v680, 65535
        %v682 = vshrl.u32 %v680, 16
        %v683 = vand.u32 %v679, 65535
        %v684 = vshrl.u32 %v679, 16
        %v685 = vmul.u32 %v681, %v683
        %v686 = vmul.u32 %v681, %v684
        %v687 = vmul.u32 %v682, %v683
        %v688 = vmul.u32 %v682, %v684
        %v689 = vshll.u32 %v686, 16
        %v690 = vshrl.u32 %v686, 16
        %v691 = vshll.u32 %v687, 16
        %v692 = vshrl.u32 %v687, 16
        %vm693 = vc.u32 %v685, %v689
        %v694 = vsel %vm693, 1, 0
        %v695 = vadd.s32 %v685, %v689
        %v696 = vadd.s32 %v688, %v694
        %vm697 = vc.u32 %v695, %v691
        %v698 = vsel %vm697, 1, 0
        %v699 = vadd.s32 %v695, %v691
        %v700 = vadd.s32 %v696, %v698
        %v701 = vadd.s32 %v700, %v690
        %v702 = vadd.s32 %v701, %v692
        %v703 = vand.u32 %v680, 65535
        %v704 = vshrl.u32 %v680, 16
        %v705 = vand.u32 %v675, 65535
        %v706 = vshrl.u32 %v675, 16
        %v707 = vmul.u32 %v703, %v705
        %v708 = vmul.u32 %v703, %v706
        %v709 = vmul.u32 %v704, %v705
        %v710 = vmul.u32 %v704, %v706
        %v711 = vshll.u32 %v708, 16
        %v712 = vshrl.u32 %v708, 16
        %v713 = vshll.u32 %v709, 16
        %v714 = vshrl.u32 %v709, 16
        %vm715 = vc.u32 %v707, %v711
        %v716 = vsel %vm715, 1, 0
        %v717 = vadd.s32 %v707, %v711
        %v718 = vadd.s32 %v710, %v716
        %vm719 = vc.u32 %v717, %v713
        %v720 = vsel %vm719, 1, 0
        %v721 = vadd.s32 %v717, %v713
        %v722 = vadd.s32 %v718, %v720
        %v723 = vadd.s32 %v722, %v712
        %v724 = vadd.s32 %v723, %v714
        %v725 = vmul.u32 %v680, %v671
        %v726 = vadd.s32 %v702, %v721
        %vm727 = vc.u32 %v702, %v721
        %v728 = vadd.s32 %v724, 1
        %v729 = vsel %vm727, %v728, %v724
        %v730 = vadd.s32 %v725, %v729
        %v731 = vadd.s32 %v730, 536870912
        %v732 = vshrl.u32 %v731, 30
        %v733 = vshll.u32 %v732, 30
        %v734 = vsub.s32 %v730, %v733
        %vm735 = vcmp.lt.s32.totalorder %v734, 0
        %v736 = vsub.s32 0, %v734
        %v737 = vsel %vm735, %v736, %v734
        %v738 = vclz %v737
        %v739 = vsub.s32 %v738, 2
        %vm740 = vcmp.gt.s32.totalorder 0, %v739
        %v741 = vsel %vm740, 0, %v739
        %v742 = vsub.s32 32, %v741
        %v743 = vshll.u32 %v734, %v741
        %v744 = vshrl.u32 %v726, %v742
        %v745 = vor.u32 %v743, %v744
        %v746 = vsub.s32 4294967266, %v741
        %v747 = vadd.s32 %v746, 127
        %v748 = vshll.u32 %v747, 23
        %v749 = vor.u32 4788187, %v748
        %v750 = vand.u32 2147483647, %v749
        %v752 = vcvt.s32.f32 %v745
        %v753 = vmul.f32 %v752, %v750
        %v754 = vxor.u32 %v753, 2147483648
        %v755 = vsel %vm634, %v754, %v753
        %v756 = vsub.s32 4, %v732
        %v757 = vsel %vm634, %v756, %v732
        %v758 = vsel %vm633, %v157, %v755
        %v759 = vsel %vm633, 0, %v757
        %v760 = vmul.f32 %v758, %v758
        %v761 = vmul.f32 %v760, -0.001358992
        %v762 = vadd.f32 %v761, 0.041655596
        %v763 = vmul.f32 %v760, %v762
        %v764 = vadd.f32 %v763, -0.4999988
        %v765 = vmul.f32 %v760, %v764
        %v766 = vadd.f32 1.0, %v765
        %v767 = vmul.f32 %v758, %v758
        %v768 = vmul.f32 %v767, -0.00019511016
        %v769 = vadd.f32 %v768, 0.008332121
        %v770 = vmul.f32 %v767, %v769
        %v771 = vadd.f32 %v770, -0.16666654
        %v772 = vmul.f32 %v767, %v771
        %v773 = vadd.f32 %v772, 1.0
        %v774 = vmul.f32 %v773, %v758
        %vm775 = vweird.f32 %v157
        %v776 = vand.u32 %v759, 3
        %vm777 = vcmp.lt.s32.totalorder %v776, 2
        %vm778 = vcmp.eq.s32.totalorder %v776, 0
        %v779 = vxor.u32 %v774, 2147483648
        %v780 = vsel %vm778, %v766, %v779
        %vm781 = vcmp.eq.s32.totalorder %v776, 2
        %v782 = vxor.u32 %v766, 2147483648
        %v783 = vsel %vm781, %v782, %v774
        %v784 = vsel %vm777, %v780, %v783
        %v785 = vsel %vm775, nan, %v784
        %v786 = vand.u32 2147483647, %v158
        %vm787 = vcmp.le.f32.partialorder %v786, 0.7853982
        %vm788 = vcmp.lt.s32.totalorder %v158, 0
        %v789 = vand.u32 %v158, 2139095040
        %v790 = vshrl.u32 %v789, 23
        %v791 = vsub.s32 %v790, 127
        %v792 = vand.u32 2147483647, %v158
        %v793 = vand.u32 %v792, 8388607
        %v794 = vor.u32 %v793, 8388608
        %v795 = vsub.s32 0, %v794
        %v796 = vadd.s32 %v791, 1
        %vm797 = vcmp.gt.s32.totalorder %v796, 0
        %v798 = vsel %vm797, %v796, 0
        %v799 = vshrl.u32 %v798, 5
        %v800 = vand.u32 %v798, 31
        %v801 = vsub.s32 32, %v800
        %v802 = vshrl.u32 683565275, %v801
        %v803 = vshll.u32 683565275, %v800
        %v804 = vshrl.u32 2475754826, %v801
        %v805 = vor.u32 %v803, %v804
        %v806 = vshll.u32 2475754826, %v800
        %v807 = vshrl.u32 2131351028, %v801
        %v808 = vor.u32 %v806, %v807
        %v809 = vshll.u32 2131351028, %v800
        %v810 = vshrl.u32 2102212464, %v801
        %v811 = vor.u32 %v809, %v810
        %v812 = vshll.u32 2102212464, %v800
        %v813 = vshrl.u32 920167782, %v801
        %v814 = vor.u32 %v812, %v813
        %v815 = vshll.u32 920167782, %v800
        %v816 = vshrl.u32 1326507024, %v801
        %v817 = vor.u32 %v815, %v816
        %vm818 = vcmp.lt.s32.totalorder %v799, 1
        %vm819 = vcmp.lt.s32.totalorder %v799, 2
        %vm820 = vcmp.lt.s32.totalorder %v799, 3
        %vm821 = vcmp.lt.s32.totalorder %v799, 4
        %v822 = vsel %vm818, %v802, %v805
        %v823 = vsel %vm821, %v811, 2102212464
        %v824 = vsel %vm820, %v808, %v823
        %v825 = vsel %vm819, %v822, %v824
        %v826 = vsel %vm818, %v805, %v808
        %v827 = vsel %vm821, %v814, 920167782
        %v828 = vsel %vm820, %v811, %v827
        %v829 = vsel %vm819, %v826, %v828
        %v830 = vsel %vm818, %v808, %v811
        %v831 = vsel %vm821, %v817, 1326507024
        %v832 = vsel %vm820, %v814, %v831
        %v833 = vsel %vm819, %v830, %v832
        %v834 = vshll.u32 %v794, 8
        %v835 = vand.u32 %v834, 65535
        %v836 = vshrl.u32 %v834, 16
        %v837 = vand.u32 %v833, 65535
        %v838 = vshrl.u32 %v833, 16
        %v839 = vmul.u32 %v835, %v837
        %v840 = vmul.u32 %v835, %v838
        %v841 = vmul.u32 %v836, %v837
        %v842 = vmul.u32 %v836, %v838
        %v843 = vshll.u32 %v840, 16
        %v844 = vshrl.u32 %v840, 16
        %v845 = vshll.u32 %v841, 16
        %v846 = vshrl.u32 %v841, 16
        %vm847 = vc.u32 %v839, %v843
        %v848 = vsel %vm847, 1, 0
        %v849 = vadd.s32 %v839, %v843
        %v850 = vadd.s32 %v842, %v848
        %vm851 = vc.u32 %v849, %v845
        %v852 = vsel %vm851, 1, 0
        %v853 = vadd.s32 %v849, %v845
        %v854 = vadd.s32 %v850, %v852
        %v855 = vadd.s32 %v854, %v844
        %v856 = vadd.s32 %v855, %v846
        %v857 = vand.u32 %v834, 65535
        %v858 = vshrl.u32 %v834, 16
        %v859 = vand.u32 %v829, 65535
        %v860 = vshrl.u32 %v829, 16
        %v861 = vmul.u32 %v857, %v859
        %v862 = vmul.u32 %v857, %v860
        %v863 = vmul.u32 %v858, %v859
        %v864 = vmul.u32 %v858, %v860
        %v865 = vshll.u32 %v862, 16
        %v866 = vshrl.u32 %v862, 16
        %v867 = vshll.u32 %v863, 16
        %v868 = vshrl.u32 %v863, 16
        %vm869 = vc.u32 %v861, %v865
        %v870 = vsel %vm869, 1, 0
        %v871 = vadd.s32 %v861, %v865
        %v872 = vadd.s32 %v864, %v870
        %vm873 = vc.u32 %v871, %v867
        %v874 = vsel %vm873, 1, 0
        %v875 = vadd.s32 %v871, %v867
        %v876 = vadd.s32 %v872, %v874
        %v877 = vadd.s32 %v876, %v866
        %v878 = vadd.s32 %v877, %v868
        %v879 = vmul.u32 %v834, %v825
        %v880 = vadd.s32 %v856, %v875
        %vm881 = vc.u32 %v856, %v875
        %v882 = vadd.s32 %v878, 1
        %v883 = vsel %vm881, %v882, %v878
        %v884 = vadd.s32 %v879, %v883
        %v885 = vadd.s32 %v884, 536870912
        %v886 = vshrl.u32 %v885, 30
        %v887 = vshll.u32 %v886, 30
        %v888 = vsub.s32 %v884, %v887
        %vm889 = vcmp.lt.s32.totalorder %v888, 0
        %v890 = vsub.s32 0, %v888
        %v891 = vsel %vm889, %v890, %v888
        %v892 = vclz %v891
        %v893 = vsub.s32 %v892, 2
        %vm894 = vcmp.gt.s32.totalorder 0, %v893
        %v895 = vsel %vm894, 0, %v893
        %v896 = vsub.s32 32, %v895
        %v897 = vshll.u32 %v888, %v895
        %v898 = vshrl.u32 %v880, %v896
        %v899 = vor.u32 %v897, %v898
        %v900 = vsub.s32 4294967266, %v895
        %v901 = vadd.s32 %v900, 127
        %v902 = vshll.u32 %v901, 23
        %v903 = vor.u32 4788187, %v902
        %v904 = vand.u32 2147483647, %v903
        %v906 = vcvt.s32.f32 %v899
        %v907 = vmul.f32 %v906, %v904
        %v908 = vxor.u32 %v907, 2147483648
        %v909 = vsel %vm788, %v908, %v907
        %v910 = vsub.s32 4, %v886
        %v911 = vsel %vm788, %v910, %v886
        %v912 = vsel %vm787, %v158, %v909
        %v913 = vsel %vm787, 0, %v911
        %v914 = vmul.f32 %v912, %v912
        %v915 = vmul.f32 %v914, -0.001358992
        %v916 = vadd.f32 %v915, 0.041655596
        %v917 = vmul.f32 %v914, %v916
        %v918 = vadd.f32 %v917, -0.4999988
        %v919 = vmul.f32 %v914, %v918
        %v920 = vadd.f32 1.0, %v919
        %v921 = vmul.f32 %v912, %v912
        %v922 = vmul.f32 %v921, -0.00019511016
        %v923 = vadd.f32 %v922, 0.008332121
        %v924 = vmul.f32 %v921, %v923
        %v925 = vadd.f32 %v924, -0.16666654
        %v926 = vmul.f32 %v921, %v925
        %v927 = vadd.f32 %v926, 1.0
        %v928 = vmul.f32 %v927, %v912
        %vm929 = vweird.f32 %v158
        %v930 = vand.u32 %v913, 3
        %vm931 = vcmp.lt.s32.totalorder %v930, 2
        %vm932 = vcmp.eq.s32.totalorder %v930, 0
        %v933 = vxor.u32 %v928, 2147483648
        %v934 = vsel %vm932, %v920, %v933
        %vm935 = vcmp.eq.s32.totalorder %v930, 2
        %v936 = vxor.u32 %v920, 2147483648
        %v937 = vsel %vm935, %v936, %v928
        %v938 = vsel %vm931, %v934, %v937
        %v939 = vsel %vm929, nan, %v938
        %v940 = vand.u32 2147483647, %v159
        %vm941 = vcmp.le.f32.partialorder %v940, 0.7853982
        %vm942 = vcmp.lt.s32.totalorder %v159, 0
        %v943 = vand.u32 %v159, 2139095040
        %v944 = vshrl.u32 %v943, 23
        %v945 = vsub.s32 %v944, 127
        %v946 = vand.u32 2147483647, %v159
        %v947 = vand.u32 %v946, 8388607
        %v948 = vor.u32 %v947, 8388608
        %v949 = vsub.s32 0, %v948
        %v950 = vadd.s32 %v945, 1
        %vm951 = vcmp.gt.s32.totalorder %v950, 0
        %v952 = vsel %vm951, %v950, 0
        %v953 = vshrl.u32 %v952, 5
        %v954 = vand.u32 %v952, 31
        %v955 = vsub.s32 32, %v954
        %v956 = vshrl.u32 683565275, %v955
        %v957 = vshll.u32 683565275, %v954
        %v958 = vshrl.u32 2475754826, %v955
        %v959 = vor.u32 %v957, %v958
        %v960 = vshll.u32 2475754826, %v954
        %v961 = vshrl.u32 2131351028, %v955
        %v962 = vor.u32 %v960, %v961
        %v963 = vshll.u32 2131351028, %v954
        %v964 = vshrl.u32 2102212464, %v955
        %v965 = vor.u32 %v963, %v964
        %v966 = vshll.u32 2102212464, %v954
        %v967 = vshrl.u32 920167782, %v955
        %v968 = vor.u32 %v966, %v967
        %v969 = vshll.u32 920167782, %v954
        %v970 = vshrl.u32 1326507024, %v955
        %v971 = vor.u32 %v969, %v970
        %vm972 = vcmp.lt.s32.totalorder %v953, 1
        %vm973 = vcmp.lt.s32.totalorder %v953, 2
        %vm974 = vcmp.lt.s32.totalorder %v953, 3
        %vm975 = vcmp.lt.s32.totalorder %v953, 4
        %v976 = vsel %vm972, %v956, %v959
        %v977 = vsel %vm975, %v965, 2102212464
        %v978 = vsel %vm974, %v962, %v977
        %v979 = vsel %vm973, %v976, %v978
        %v980 = vsel %vm972, %v959, %v962
        %v981 = vsel %vm975, %v968, 920167782
        %v982 = vsel %vm974, %v965, %v981
        %v983 = vsel %vm973, %v980, %v982
        %v984 = vsel %vm972, %v962, %v965
        %v985 = vsel %vm975, %v971, 1326507024
        %v986 = vsel %vm974, %v968, %v985
        %v987 = vsel %vm973, %v984, %v986
        %v988 = vshll.u32 %v948, 8
        %v989 = vand.u32 %v988, 65535
        %v990 = vshrl.u32 %v988, 16
        %v991 = vand.u32 %v987, 65535
        %v992 = vshrl.u32 %v987, 16
        %v993 = vmul.u32 %v989, %v991
        %v994 = vmul.u32 %v989, %v992
        %v995 = vmul.u32 %v990, %v991
        %v996 = vmul.u32 %v990, %v992
        %v997 = vshll.u32 %v994, 16
        %v998 = vshrl.u32 %v994, 16
        %v999 = vshll.u32 %v995, 16
        %v1000 = vshrl.u32 %v995, 16
        %vm1001 = vc.u32 %v993, %v997
        %v1002 = vsel %vm1001, 1, 0
        %v1003 = vadd.s32 %v993, %v997
        %v1004 = vadd.s32 %v996, %v1002
        %vm1005 = vc.u32 %v1003, %v999
        %v1006 = vsel %vm1005, 1, 0
        %v1007 = vadd.s32 %v1003, %v999
        %v1008 = vadd.s32 %v1004, %v1006
        %v1009 = vadd.s32 %v1008, %v998
        %v1010 = vadd.s32 %v1009, %v1000
        %v1011 = vand.u32 %v988, 65535
        %v1012 = vshrl.u32 %v988, 16
        %v1013 = vand.u32 %v983, 65535
        %v1014 = vshrl.u32 %v983, 16
        %v1015 = vmul.u32 %v1011, %v1013
        %v1016 = vmul.u32 %v1011, %v1014
        %v1017 = vmul.u32 %v1012, %v1013
        %v1018 = vmul.u32 %v1012, %v1014
        %v1019 = vshll.u32 %v1016, 16
        %v1020 = vshrl.u32 %v1016, 16
        %v1021 = vshll.u32 %v1017, 16
        %v1022 = vshrl.u32 %v1017, 16
        %vm1023 = vc.u32 %v1015, %v1019
        %v1024 = vsel %vm1023, 1, 0
        %v1025 = vadd.s32 %v1015, %v1019
        %v1026 = vadd.s32 %v1018, %v1024
        %vm1027 = vc.u32 %v1025, %v1021
        %v1028 = vsel %vm1027, 1, 0
        %v1029 = vadd.s32 %v1025, %v1021
        %v1030 = vadd.s32 %v1026, %v1028
        %v1031 = vadd.s32 %v1030, %v1020
        %v1032 = vadd.s32 %v1031, %v1022
        %v1033 = vmul.u32 %v988, %v979
        %v1034 = vadd.s32 %v1010, %v1029
        %vm1035 = vc.u32 %v1010, %v1029
        %v1036 = vadd.s32 %v1032, 1
        %v1037 = vsel %vm1035, %v1036, %v1032
        %v1038 = vadd.s32 %v1033, %v1037
        %v1039 = vadd.s32 %v1038, 536870912
        %v1040 = vshrl.u32 %v1039, 30
        %v1041 = vshll.u32 %v1040, 30
        %v1042 = vsub.s32 %v1038, %v1041
        %vm1043 = vcmp.lt.s32.totalorder %v1042, 0
        %v1044 = vsub.s32 0, %v1042
        %v1045 = vsel %vm1043, %v1044, %v1042
        %v1046 = vclz %v1045
        %v1047 = vsub.s32 %v1046, 2
        %vm1048 = vcmp.gt.s32.totalorder 0, %v1047
        %v1049 = vsel %vm1048, 0, %v1047
        %v1050 = vsub.s32 32, %v1049
        %v1051 = vshll.u32 %v1042, %v1049
        %v1052 = vshrl.u32 %v1034, %v1050
        %v1053 = vor.u32 %v1051, %v1052
        %v1054 = vsub.s32 4294967266, %v1049
        %v1055 = vadd.s32 %v1054, 127
        %v1056 = vshll.u32 %v1055, 23
        %v1057 = vor.u32 4788187, %v1056
        %v1058 = vand.u32 2147483647, %v1057
        %v1060 = vcvt.s32.f32 %v1053
        %v1061 = vmul.f32 %v1060, %v1058
        %v1062 = vxor.u32 %v1061, 2147483648
        %v1063 = vsel %vm942, %v1062, %v1061
        %v1064 = vsub.s32 4, %v1040
        %v1065 = vsel %vm942, %v1064, %v1040
        %v1066 = vsel %vm941, %v159, %v1063
        %v1067 = vsel %vm941, 0, %v1065
        %v1068 = vmul.f32 %v1066, %v1066
        %v1069 = vmul.f32 %v1068, -0.001358992
        %v1070 = vadd.f32 %v1069, 0.041655596
        %v1071 = vmul.f32 %v1068, %v1070
        %v1072 = vadd.f32 %v1071, -0.4999988
        %v1073 = vmul.f32 %v1068, %v1072
        %v1074 = vadd.f32 1.0, %v1073
        %v1075 = vmul.f32 %v1066, %v1066
        %v1076 = vmul.f32 %v1075, -0.00019511016
        %v1077 = vadd.f32 %v1076, 0.008332121
        %v1078 = vmul.f32 %v1075, %v1077
        %v1079 = vadd.f32 %v1078, -0.16666654
        %v1080 = vmul.f32 %v1075, %v1079
        %v1081 = vadd.f32 %v1080, 1.0
        %v1082 = vmul.f32 %v1081, %v1066
        %vm1083 = vweird.f32 %v159
        %v1084 = vand.u32 %v1067, 3
        %vm1085 = vcmp.lt.s32.totalorder %v1084, 2
        %vm1086 = vcmp.eq.s32.totalorder %v1084, 0
        %v1087 = vxor.u32 %v1082, 2147483648
        %v1088 = vsel %vm1086, %v1074, %v1087
        %vm1089 = vcmp.eq.s32.totalorder %v1084, 2
        %v1090 = vxor.u32 %v1074, 2147483648
        %v1091 = vsel %vm1089, %v1090, %v1082
        %v1092 = vsel %vm1085, %v1088, %v1091
        %v1093 = vsel %vm1083, nan, %v1092
        %v1094 = vand.u32 2147483647, %v160
        %vm1095 = vcmp.le.f32.partialorder %v1094, 0.7853982
        %vm1096 = vcmp.lt.s32.totalorder %v160, 0
        %v1097 = vand.u32 %v160, 2139095040
        %v1098 = vshrl.u32 %v1097, 23
        %v1099 = vsub.s32 %v1098, 127
        %v1100 = vand.u32 2147483647, %v160
        %v1101 = vand.u32 %v1100, 8388607
        %v1102 = vor.u32 %v1101, 8388608
        %v1103 = vsub.s32 0, %v1102
        %v1104 = vadd.s32 %v1099, 1
        %vm1105 = vcmp.gt.s32.totalorder %v1104, 0
        %v1106 = vsel %vm1105, %v1104, 0
        %v1107 = vshrl.u32 %v1106, 5
        %v1108 = vand.u32 %v1106, 31
        %v1109 = vsub.s32 32, %v1108
        %v1110 = vshrl.u32 683565275, %v1109
        %v1111 = vshll.u32 683565275, %v1108
        %v1112 = vshrl.u32 2475754826, %v1109
        %v1113 = vor.u32 %v1111, %v1112
        %v1114 = vshll.u32 2475754826, %v1108
        %v1115 = vshrl.u32 2131351028, %v1109
        %v1116 = vor.u32 %v1114, %v1115
        %v1117 = vshll.u32 2131351028, %v1108
        %v1118 = vshrl.u32 2102212464, %v1109
        %v1119 = vor.u32 %v1117, %v1118
        %v1120 = vshll.u32 2102212464, %v1108
        %v1121 = vshrl.u32 920167782, %v1109
        %v1122 = vor.u32 %v1120, %v1121
        %v1123 = vshll.u32 920167782, %v1108
        %v1124 = vshrl.u32 1326507024, %v1109
        %v1125 = vor.u32 %v1123, %v1124
        %vm1126 = vcmp.lt.s32.totalorder %v1107, 1
        %vm1127 = vcmp.lt.s32.totalorder %v1107, 2
        %vm1128 = vcmp.lt.s32.totalorder %v1107, 3
        %vm1129 = vcmp.lt.s32.totalorder %v1107, 4
        %v1130 = vsel %vm1126, %v1110, %v1113
        %v1131 = vsel %vm1129, %v1119, 2102212464
        %v1132 = vsel %vm1128, %v1116, %v1131
        %v1133 = vsel %vm1127, %v1130, %v1132
        %v1134 = vsel %vm1126, %v1113, %v1116
        %v1135 = vsel %vm1129, %v1122, 920167782
        %v1136 = vsel %vm1128, %v1119, %v1135
        %v1137 = vsel %vm1127, %v1134, %v1136
        %v1138 = vsel %vm1126, %v1116, %v1119
        %v1139 = vsel %vm1129, %v1125, 1326507024
        %v1140 = vsel %vm1128, %v1122, %v1139
        %v1141 = vsel %vm1127, %v1138, %v1140
        %v1142 = vshll.u32 %v1102, 8
        %v1143 = vand.u32 %v1142, 65535
        %v1144 = vshrl.u32 %v1142, 16
        %v1145 = vand.u32 %v1141, 65535
        %v1146 = vshrl.u32 %v1141, 16
        %v1147 = vmul.u32 %v1143, %v1145
        %v1148 = vmul.u32 %v1143, %v1146
        %v1149 = vmul.u32 %v1144, %v1145
        %v1150 = vmul.u32 %v1144, %v1146
        %v1151 = vshll.u32 %v1148, 16
        %v1152 = vshrl.u32 %v1148, 16
        %v1153 = vshll.u32 %v1149, 16
        %v1154 = vshrl.u32 %v1149, 16
        %vm1155 = vc.u32 %v1147, %v1151
        %v1156 = vsel %vm1155, 1, 0
        %v1157 = vadd.s32 %v1147, %v1151
        %v1158 = vadd.s32 %v1150, %v1156
        %vm1159 = vc.u32 %v1157, %v1153
        %v1160 = vsel %vm1159, 1, 0
        %v1161 = vadd.s32 %v1157, %v1153
        %v1162 = vadd.s32 %v1158, %v1160
        %v1163 = vadd.s32 %v1162, %v1152
        %v1164 = vadd.s32 %v1163, %v1154
        %v1165 = vand.u32 %v1142, 65535
        %v1166 = vshrl.u32 %v1142, 16
        %v1167 = vand.u32 %v1137, 65535
        %v1168 = vshrl.u32 %v1137, 16
        %v1169 = vmul.u32 %v1165, %v1167
        %v1170 = vmul.u32 %v1165, %v1168
        %v1171 = vmul.u32 %v1166, %v1167
        %v1172 = vmul.u32 %v1166, %v1168
        %v1173 = vshll.u32 %v1170, 16
        %v1174 = vshrl.u32 %v1170, 16
        %v1175 = vshll.u32 %v1171, 16
        %v1176 = vshrl.u32 %v1171, 16
        %vm1177 = vc.u32 %v1169, %v1173
        %v1178 = vsel %vm1177, 1, 0
        %v1179 = vadd.s32 %v1169, %v1173
        %v1180 = vadd.s32 %v1172, %v1178
        %vm1181 = vc.u32 %v1179, %v1175
        %v1182 = vsel %vm1181, 1, 0
        %v1183 = vadd.s32 %v1179, %v1175
        %v1184 = vadd.s32 %v1180, %v1182
        %v1185 = vadd.s32 %v1184, %v1174
        %v1186 = vadd.s32 %v1185, %v1176
        %v1187 = vmul.u32 %v1142, %v1133
        %v1188 = vadd.s32 %v1164, %v1183
        %vm1189 = vc.u32 %v1164, %v1183
        %v1190 = vadd.s32 %v1186, 1
        %v1191 = vsel %vm1189, %v1190, %v1186
        %v1192 = vadd.s32 %v1187, %v1191
        %v1193 = vadd.s32 %v1192, 536870912
        %v1194 = vshrl.u32 %v1193, 30
        %v1195 = vshll.u32 %v1194, 30
        %v1196 = vsub.s32 %v1192, %v1195
        %vm1197 = vcmp.lt.s32.totalorder %v1196, 0
        %v1198 = vsub.s32 0, %v1196
        %v1199 = vsel %vm1197, %v1198, %v1196
        %v1200 = vclz %v1199
        %v1201 = vsub.s32 %v1200, 2
        %vm1202 = vcmp.gt.s32.totalorder 0, %v1201
        %v1203 = vsel %vm1202, 0, %v1201
        %v1204 = vsub.s32 32, %v1203
        %v1205 = vshll.u32 %v1196, %v1203
        %v1206 = vshrl.u32 %v1188, %v1204
        %v1207 = vor.u32 %v1205, %v1206
        %v1208 = vsub.s32 4294967266, %v1203
        %v1209 = vadd.s32 %v1208, 127
        %v1210 = vshll.u32 %v1209, 23
        %v1211 = vor.u32 4788187, %v1210
        %v1212 = vand.u32 2147483647, %v1211
        %v1214 = vcvt.s32.f32 %v1207
        %v1215 = vmul.f32 %v1214, %v1212
        %v1216 = vxor.u32 %v1215, 2147483648
        %v1217 = vsel %vm1096, %v1216, %v1215
        %v1218 = vsub.s32 4, %v1194
        %v1219 = vsel %vm1096, %v1218, %v1194
        %v1220 = vsel %vm1095, %v160, %v1217
        %v1221 = vsel %vm1095, 0, %v1219
        %v1222 = vmul.f32 %v1220, %v1220
        %v1223 = vmul.f32 %v1222, -0.001358992
        %v1224 = vadd.f32 %v1223, 0.041655596
        %v1225 = vmul.f32 %v1222, %v1224
        %v1226 = vadd.f32 %v1225, -0.4999988
        %v1227 = vmul.f32 %v1222, %v1226
        %v1228 = vadd.f32 1.0, %v1227
        %v1229 = vmul.f32 %v1220, %v1220
        %v1230 = vmul.f32 %v1229, -0.00019511016
        %v1231 = vadd.f32 %v1230, 0.008332121
        %v1232 = vmul.f32 %v1229, %v1231
        %v1233 = vadd.f32 %v1232, -0.16666654
        %v1234 = vmul.f32 %v1229, %v1233
        %v1235 = vadd.f32 %v1234, 1.0
        %v1236 = vmul.f32 %v1235, %v1220
        %vm1237 = vweird.f32 %v160
        %v1238 = vand.u32 %v1221, 3
        %vm1239 = vcmp.lt.s32.totalorder %v1238, 2
        %vm1240 = vcmp.eq.s32.totalorder %v1238, 0
        %v1241 = vxor.u32 %v1236, 2147483648
        %v1242 = vsel %vm1240, %v1228, %v1241
        %vm1243 = vcmp.eq.s32.totalorder %v1238, 2
        %v1244 = vxor.u32 %v1228, 2147483648
        %v1245 = vsel %vm1243, %v1244, %v1236
        %v1246 = vsel %vm1239, %v1242, %v1245
        %v1247 = vsel %vm1237, nan, %v1246
        %v1248 = vand.u32 2147483647, %v161
        %vm1249 = vcmp.le.f32.partialorder %v1248, 0.7853982
        %vm1250 = vcmp.lt.s32.totalorder %v161, 0
        %v1251 = vand.u32 %v161, 2139095040
        %v1252 = vshrl.u32 %v1251, 23
        %v1253 = vsub.s32 %v1252, 127
        %v1254 = vand.u32 2147483647, %v161
        %v1255 = vand.u32 %v1254, 8388607
        %v1256 = vor.u32 %v1255, 8388608
        %v1257 = vsub.s32 0, %v1256
        %v1258 = vadd.s32 %v1253, 1
        %vm1259 = vcmp.gt.s32.totalorder %v1258, 0
        %v1260 = vsel %vm1259, %v1258, 0
        %v1261 = vshrl.u32 %v1260, 5
        %v1262 = vand.u32 %v1260, 31
        %v1263 = vsub.s32 32, %v1262
        %v1264 = vshrl.u32 683565275, %v1263
        %v1265 = vshll.u32 683565275, %v1262
        %v1266 = vshrl.u32 2475754826, %v1263
        %v1267 = vor.u32 %v1265, %v1266
        %v1268 = vshll.u32 2475754826, %v1262
        %v1269 = vshrl.u32 2131351028, %v1263
        %v1270 = vor.u32 %v1268, %v1269
        %v1271 = vshll.u32 2131351028, %v1262
        %v1272 = vshrl.u32 2102212464, %v1263
        %v1273 = vor.u32 %v1271, %v1272
        %v1274 = vshll.u32 2102212464, %v1262
        %v1275 = vshrl.u32 920167782, %v1263
        %v1276 = vor.u32 %v1274, %v1275
        %v1277 = vshll.u32 920167782, %v1262
        %v1278 = vshrl.u32 1326507024, %v1263
        %v1279 = vor.u32 %v1277, %v1278
        %vm1280 = vcmp.lt.s32.totalorder %v1261, 1
        %vm1281 = vcmp.lt.s32.totalorder %v1261, 2
        %vm1282 = vcmp.lt.s32.totalorder %v1261, 3
        %vm1283 = vcmp.lt.s32.totalorder %v1261, 4
        %v1284 = vsel %vm1280, %v1264, %v1267
        %v1285 = vsel %vm1283, %v1273, 2102212464
        %v1286 = vsel %vm1282, %v1270, %v1285
        %v1287 = vsel %vm1281, %v1284, %v1286
        %v1288 = vsel %vm1280, %v1267, %v1270
        %v1289 = vsel %vm1283, %v1276, 920167782
        %v1290 = vsel %vm1282, %v1273, %v1289
        %v1291 = vsel %vm1281, %v1288, %v1290
        %v1292 = vsel %vm1280, %v1270, %v1273
        %v1293 = vsel %vm1283, %v1279, 1326507024
        %v1294 = vsel %vm1282, %v1276, %v1293
        %v1295 = vsel %vm1281, %v1292, %v1294
        %v1296 = vshll.u32 %v1256, 8
        %v1297 = vand.u32 %v1296, 65535
        %v1298 = vshrl.u32 %v1296, 16
        %v1299 = vand.u32 %v1295, 65535
        %v1300 = vshrl.u32 %v1295, 16
        %v1301 = vmul.u32 %v1297, %v1299
        %v1302 = vmul.u32 %v1297, %v1300
        %v1303 = vmul.u32 %v1298, %v1299
        %v1304 = vmul.u32 %v1298, %v1300
        %v1305 = vshll.u32 %v1302, 16
        %v1306 = vshrl.u32 %v1302, 16
        %v1307 = vshll.u32 %v1303, 16
        %v1308 = vshrl.u32 %v1303, 16
        %vm1309 = vc.u32 %v1301, %v1305
        %v1310 = vsel %vm1309, 1, 0
        %v1311 = vadd.s32 %v1301, %v1305
        %v1312 = vadd.s32 %v1304, %v1310
        %vm1313 = vc.u32 %v1311, %v1307
        %v1314 = vsel %vm1313, 1, 0
        %v1315 = vadd.s32 %v1311, %v1307
        %v1316 = vadd.s32 %v1312, %v1314
        %v1317 = vadd.s32 %v1316, %v1306
        %v1318 = vadd.s32 %v1317, %v1308
        %v1319 = vand.u32 %v1296, 65535
        %v1320 = vshrl.u32 %v1296, 16
        %v1321 = vand.u32 %v1291, 65535
        %v1322 = vshrl.u32 %v1291, 16
        %v1323 = vmul.u32 %v1319, %v1321
        %v1324 = vmul.u32 %v1319, %v1322
        %v1325 = vmul.u32 %v1320, %v1321
        %v1326 = vmul.u32 %v1320, %v1322
        %v1327 = vshll.u32 %v1324, 16
        %v1328 = vshrl.u32 %v1324, 16
        %v1329 = vshll.u32 %v1325, 16
        %v1330 = vshrl.u32 %v1325, 16
        %vm1331 = vc.u32 %v1323, %v1327
        %v1332 = vsel %vm1331, 1, 0
        %v1333 = vadd.s32 %v1323, %v1327
        %v1334 = vadd.s32 %v1326, %v1332
        %vm1335 = vc.u32 %v1333, %v1329
        %v1336 = vsel %vm1335, 1, 0
        %v1337 = vadd.s32 %v1333, %v1329
        %v1338 = vadd.s32 %v1334, %v1336
        %v1339 = vadd.s32 %v1338, %v1328
        %v1340 = vadd.s32 %v1339, %v1330
        %v1341 = vmul.u32 %v1296, %v1287
        %v1342 = vadd.s32 %v1318, %v1337
        %vm1343 = vc.u32 %v1318, %v1337
        %v1344 = vadd.s32 %v1340, 1
        %v1345 = vsel %vm1343, %v1344, %v1340
        %v1346 = vadd.s32 %v1341, %v1345
        %v1347 = vadd.s32 %v1346, 536870912
        %v1348 = vshrl.u32 %v1347, 30
        %v1349 = vshll.u32 %v1348, 30
        %v1350 = vsub.s32 %v1346, %v1349
        %vm1351 = vcmp.lt.s32.totalorder %v1350, 0
        %v1352 = vsub.s32 0, %v1350
        %v1353 = vsel %vm1351, %v1352, %v1350
        %v1354 = vclz %v1353
        %v1355 = vsub.s32 %v1354, 2
        %vm1356 = vcmp.gt.s32.totalorder 0, %v1355
        %v1357 = vsel %vm1356, 0, %v1355
        %v1358 = vsub.s32 32, %v1357
        %v1359 = vshll.u32 %v1350, %v1357
        %v1360 = vshrl.u32 %v1342, %v1358
        %v1361 = vor.u32 %v1359, %v1360
        %v1362 = vsub.s32 4294967266, %v1357
        %v1363 = vadd.s32 %v1362, 127
        %v1364 = vshll.u32 %v1363, 23
        %v1365 = vor.u32 4788187, %v1364
        %v1366 = vand.u32 2147483647, %v1365
        %v1368 = vcvt.s32.f32 %v1361
        %v1369 = vmul.f32 %v1368, %v1366
        %v1370 = vxor.u32 %v1369, 2147483648
        %v1371 = vsel %vm1250, %v1370, %v1369
        %v1372 = vsub.s32 4, %v1348
        %v1373 = vsel %vm1250, %v1372, %v1348
        %v1374 = vsel %vm1249, %v161, %v1371
        %v1375 = vsel %vm1249, 0, %v1373
        %v1376 = vmul.f32 %v1374, %v1374
        %v1377 = vmul.f32 %v1376, -0.001358992
        %v1378 = vadd.f32 %v1377, 0.041655596
        %v1379 = vmul.f32 %v1376, %v1378
        %v1380 = vadd.f32 %v1379, -0.4999988
        %v1381 = vmul.f32 %v1376, %v1380
        %v1382 = vadd.f32 1.0, %v1381
        %v1383 = vmul.f32 %v1374, %v1374
        %v1384 = vmul.f32 %v1383, -0.00019511016
        %v1385 = vadd.f32 %v1384, 0.008332121
        %v1386 = vmul.f32 %v1383, %v1385
        %v1387 = vadd.f32 %v1386, -0.16666654
        %v1388 = vmul.f32 %v1383, %v1387
        %v1389 = vadd.f32 %v1388, 1.0
        %v1390 = vmul.f32 %v1389, %v1374
        %vm1391 = vweird.f32 %v161
        %v1392 = vand.u32 %v1375, 3
        %vm1393 = vcmp.lt.s32.totalorder %v1392, 2
        %vm1394 = vcmp.eq.s32.totalorder %v1392, 0
        %v1395 = vxor.u32 %v1390, 2147483648
        %v1396 = vsel %vm1394, %v1382, %v1395
        %vm1397 = vcmp.eq.s32.totalorder %v1392, 2
        %v1398 = vxor.u32 %v1382, 2147483648
        %v1399 = vsel %vm1397, %v1398, %v1390
        %v1400 = vsel %vm1393, %v1396, %v1399
        %v1401 = vsel %vm1391, nan, %v1400
        %v1402 = vand.u32 2147483647, %v162
        %vm1403 = vcmp.le.f32.partialorder %v1402, 0.7853982
        %vm1404 = vcmp.lt.s32.totalorder %v162, 0
        %v1405 = vand.u32 %v162, 2139095040
        %v1406 = vshrl.u32 %v1405, 23
        %v1407 = vsub.s32 %v1406, 127
        %v1408 = vand.u32 2147483647, %v162
        %v1409 = vand.u32 %v1408, 8388607
        %v1410 = vor.u32 %v1409, 8388608
        %v1411 = vsub.s32 0, %v1410
        %v1412 = vadd.s32 %v1407, 1
        %vm1413 = vcmp.gt.s32.totalorder %v1412, 0
        %v1414 = vsel %vm1413, %v1412, 0
        %v1415 = vshrl.u32 %v1414, 5
        %v1416 = vand.u32 %v1414, 31
        %v1417 = vsub.s32 32, %v1416
        %v1418 = vshrl.u32 683565275, %v1417
        %v1419 = vshll.u32 683565275, %v1416
        %v1420 = vshrl.u32 2475754826, %v1417
        %v1421 = vor.u32 %v1419, %v1420
        %v1422 = vshll.u32 2475754826, %v1416
        %v1423 = vshrl.u32 2131351028, %v1417
        %v1424 = vor.u32 %v1422, %v1423
        %v1425 = vshll.u32 2131351028, %v1416
        %v1426 = vshrl.u32 2102212464, %v1417
        %v1427 = vor.u32 %v1425, %v1426
        %v1428 = vshll.u32 2102212464, %v1416
        %v1429 = vshrl.u32 920167782, %v1417
        %v1430 = vor.u32 %v1428, %v1429
        %v1431 = vshll.u32 920167782, %v1416
        %v1432 = vshrl.u32 1326507024, %v1417
        %v1433 = vor.u32 %v1431, %v1432
        %vm1434 = vcmp.lt.s32.totalorder %v1415, 1
        %vm1435 = vcmp.lt.s32.totalorder %v1415, 2
        %vm1436 = vcmp.lt.s32.totalorder %v1415, 3
        %vm1437 = vcmp.lt.s32.totalorder %v1415, 4
        %v1438 = vsel %vm1434, %v1418, %v1421
        %v1439 = vsel %vm1437, %v1427, 2102212464
        %v1440 = vsel %vm1436, %v1424, %v1439
        %v1441 = vsel %vm1435, %v1438, %v1440
        %v1442 = vsel %vm1434, %v1421, %v1424
        %v1443 = vsel %vm1437, %v1430, 920167782
        %v1444 = vsel %vm1436, %v1427, %v1443
        %v1445 = vsel %vm1435, %v1442, %v1444
        %v1446 = vsel %vm1434, %v1424, %v1427
        %v1447 = vsel %vm1437, %v1433, 1326507024
        %v1448 = vsel %vm1436, %v1430, %v1447
        %v1449 = vsel %vm1435, %v1446, %v1448
        %v1450 = vshll.u32 %v1410, 8
        %v1451 = vand.u32 %v1450, 65535
        %v1452 = vshrl.u32 %v1450, 16
        %v1453 = vand.u32 %v1449, 65535
        %v1454 = vshrl.u32 %v1449, 16
        %v1455 = vmul.u32 %v1451, %v1453
        %v1456 = vmul.u32 %v1451, %v1454
        %v1457 = vmul.u32 %v1452, %v1453
        %v1458 = vmul.u32 %v1452, %v1454
        %v1459 = vshll.u32 %v1456, 16
        %v1460 = vshrl.u32 %v1456, 16
        %v1461 = vshll.u32 %v1457, 16
        %v1462 = vshrl.u32 %v1457, 16
        %vm1463 = vc.u32 %v1455, %v1459
        %v1464 = vsel %vm1463, 1, 0
        %v1465 = vadd.s32 %v1455, %v1459
        %v1466 = vadd.s32 %v1458, %v1464
        %vm1467 = vc.u32 %v1465, %v1461
        %v1468 = vsel %vm1467, 1, 0
        %v1469 = vadd.s32 %v1465, %v1461
        %v1470 = vadd.s32 %v1466, %v1468
        %v1471 = vadd.s32 %v1470, %v1460
        %v1472 = vadd.s32 %v1471, %v1462
        %v1473 = vand.u32 %v1450, 65535
        %v1474 = vshrl.u32 %v1450, 16
        %v1475 = vand.u32 %v1445, 65535
        %v1476 = vshrl.u32 %v1445, 16
        %v1477 = vmul.u32 %v1473, %v1475
        %v1478 = vmul.u32 %v1473, %v1476
        %v1479 = vmul.u32 %v1474, %v1475
        %v1480 = vmul.u32 %v1474, %v1476
        %v1481 = vshll.u32 %v1478, 16
        %v1482 = vshrl.u32 %v1478, 16
        %v1483 = vshll.u32 %v1479, 16
        %v1484 = vshrl.u32 %v1479, 16
        %vm1485 = vc.u32 %v1477, %v1481
        %v1486 = vsel %vm1485, 1, 0
        %v1487 = vadd.s32 %v1477, %v1481
        %v1488 = vadd.s32 %v1480, %v1486
        %vm1489 = vc.u32 %v1487, %v1483
        %v1490 = vsel %vm1489, 1, 0
        %v1491 = vadd.s32 %v1487, %v1483
        %v1492 = vadd.s32 %v1488, %v1490
        %v1493 = vadd.s32 %v1492, %v1482
        %v1494 = vadd.s32 %v1493, %v1484
        %v1495 = vmul.u32 %v1450, %v1441
        %v1496 = vadd.s32 %v1472, %v1491
        %vm1497 = vc.u32 %v1472, %v1491
        %v1498 = vadd.s32 %v1494, 1
        %v1499 = vsel %vm1497, %v1498, %v1494
        %v1500 = vadd.s32 %v1495, %v1499
        %v1501 = vadd.s32 %v1500, 536870912
        %v1502 = vshrl.u32 %v1501, 30
        %v1503 = vshll.u32 %v1502, 30
        %v1504 = vsub.s32 %v1500, %v1503
        %vm1505 = vcmp.lt.s32.totalorder %v1504, 0
        %v1506 = vsub.s32 0, %v1504
        %v1507 = vsel %vm1505, %v1506, %v1504
        %v1508 = vclz %v1507
        %v1509 = vsub.s32 %v1508, 2
        %vm1510 = vcmp.gt.s32.totalorder 0, %v1509
        %v1511 = vsel %vm1510, 0, %v1509
        %v1512 = vsub.s32 32, %v1511
        %v1513 = vshll.u32 %v1504, %v1511
        %v1514 = vshrl.u32 %v1496, %v1512
        %v1515 = vor.u32 %v1513, %v1514
        %v1516 = vsub.s32 4294967266, %v1511
        %v1517 = vadd.s32 %v1516, 127
        %v1518 = vshll.u32 %v1517, 23
        %v1519 = vor.u32 4788187, %v1518
        %v1520 = vand.u32 2147483647, %v1519
        %v1522 = vcvt.s32.f32 %v1515
        %v1523 = vmul.f32 %v1522, %v1520
        %v1524 = vxor.u32 %v1523, 2147483648
        %v1525 = vsel %vm1404, %v1524, %v1523
        %v1526 = vsub.s32 4, %v1502
        %v1527 = vsel %vm1404, %v1526, %v1502
        %v1528 = vsel %vm1403, %v162, %v1525
        %v1529 = vsel %vm1403, 0, %v1527
        %v1530 = vmul.f32 %v1528, %v1528
        %v1531 = vmul.f32 %v1530, -0.001358992
        %v1532 = vadd.f32 %v1531, 0.041655596
        %v1533 = vmul.f32 %v1530, %v1532
        %v1534 = vadd.f32 %v1533, -0.4999988
        %v1535 = vmul.f32 %v1530, %v1534
        %v1536 = vadd.f32 1.0, %v1535
        %v1537 = vmul.f32 %v1528, %v1528
        %v1538 = vmul.f32 %v1537, -0.00019511016
        %v1539 = vadd.f32 %v1538, 0.008332121
        %v1540 = vmul.f32 %v1537, %v1539
        %v1541 = vadd.f32 %v1540, -0.16666654
        %v1542 = vmul.f32 %v1537, %v1541
        %v1543 = vadd.f32 %v1542, 1.0
        %v1544 = vmul.f32 %v1543, %v1528
        %vm1545 = vweird.f32 %v162
        %v1546 = vand.u32 %v1529, 3
        %vm1547 = vcmp.lt.s32.totalorder %v1546, 2
        %vm1548 = vcmp.eq.s32.totalorder %v1546, 0
        %v1549 = vxor.u32 %v1544, 2147483648
        %v1550 = vsel %vm1548, %v1536, %v1549
        %vm1551 = vcmp.eq.s32.totalorder %v1546, 2
        %v1552 = vxor.u32 %v1536, 2147483648
        %v1553 = vsel %vm1551, %v1552, %v1544
        %v1554 = vsel %vm1547, %v1550, %v1553
        %v1555 = vsel %vm1545, nan, %v1554
        %v1556 = vand.u32 2147483647, %v163
        %vm1557 = vcmp.le.f32.partialorder %v1556, 0.7853982
        %vm1558 = vcmp.lt.s32.totalorder %v163, 0
        %v1559 = vand.u32 %v163, 2139095040
        %v1560 = vshrl.u32 %v1559, 23
        %v1561 = vsub.s32 %v1560, 127
        %v1562 = vand.u32 2147483647, %v163
        %v1563 = vand.u32 %v1562, 8388607
        %v1564 = vor.u32 %v1563, 8388608
        %v1565 = vsub.s32 0, %v1564
        %v1566 = vadd.s32 %v1561, 1
        %vm1567 = vcmp.gt.s32.totalorder %v1566, 0
        %v1568 = vsel %vm1567, %v1566, 0
        %v1569 = vshrl.u32 %v1568, 5
        %v1570 = vand.u32 %v1568, 31
        %v1571 = vsub.s32 32, %v1570
        %v1572 = vshrl.u32 683565275, %v1571
        %v1573 = vshll.u32 683565275, %v1570
        %v1574 = vshrl.u32 2475754826, %v1571
        %v1575 = vor.u32 %v1573, %v1574
        %v1576 = vshll.u32 2475754826, %v1570
        %v1577 = vshrl.u32 2131351028, %v1571
        %v1578 = vor.u32 %v1576, %v1577
        %v1579 = vshll.u32 2131351028, %v1570
        %v1580 = vshrl.u32 2102212464, %v1571
        %v1581 = vor.u32 %v1579, %v1580
        %v1582 = vshll.u32 2102212464, %v1570
        %v1583 = vshrl.u32 920167782, %v1571
        %v1584 = vor.u32 %v1582, %v1583
        %v1585 = vshll.u32 920167782, %v1570
        %v1586 = vshrl.u32 1326507024, %v1571
        %v1587 = vor.u32 %v1585, %v1586
        %vm1588 = vcmp.lt.s32.totalorder %v1569, 1
        %vm1589 = vcmp.lt.s32.totalorder %v1569, 2
        %vm1590 = vcmp.lt.s32.totalorder %v1569, 3
        %vm1591 = vcmp.lt.s32.totalorder %v1569, 4
        %v1592 = vsel %vm1588, %v1572, %v1575
        %v1593 = vsel %vm1591, %v1581, 2102212464
        %v1594 = vsel %vm1590, %v1578, %v1593
        %v1595 = vsel %vm1589, %v1592, %v1594
        %v1596 = vsel %vm1588, %v1575, %v1578
        %v1597 = vsel %vm1591, %v1584, 920167782
        %v1598 = vsel %vm1590, %v1581, %v1597
        %v1599 = vsel %vm1589, %v1596, %v1598
        %v1600 = vsel %vm1588, %v1578, %v1581
        %v1601 = vsel %vm1591, %v1587, 1326507024
        %v1602 = vsel %vm1590, %v1584, %v1601
        %v1603 = vsel %vm1589, %v1600, %v1602
        %v1604 = vshll.u32 %v1564, 8
        %v1605 = vand.u32 %v1604, 65535
        %v1606 = vshrl.u32 %v1604, 16
        %v1607 = vand.u32 %v1603, 65535
        %v1608 = vshrl.u32 %v1603, 16
        %v1609 = vmul.u32 %v1605, %v1607
        %v1610 = vmul.u32 %v1605, %v1608
        %v1611 = vmul.u32 %v1606, %v1607
        %v1612 = vmul.u32 %v1606, %v1608
        %v1613 = vshll.u32 %v1610, 16
        %v1614 = vshrl.u32 %v1610, 16
        %v1615 = vshll.u32 %v1611, 16
        %v1616 = vshrl.u32 %v1611, 16
        %vm1617 = vc.u32 %v1609, %v1613
        %v1618 = vsel %vm1617, 1, 0
        %v1619 = vadd.s32 %v1609, %v1613
        %v1620 = vadd.s32 %v1612, %v1618
        %vm1621 = vc.u32 %v1619, %v1615
        %v1622 = vsel %vm1621, 1, 0
        %v1623 = vadd.s32 %v1619, %v1615
        %v1624 = vadd.s32 %v1620, %v1622
        %v1625 = vadd.s32 %v1624, %v1614
        %v1626 = vadd.s32 %v1625, %v1616
        %v1627 = vand.u32 %v1604, 65535
        %v1628 = vshrl.u32 %v1604, 16
        %v1629 = vand.u32 %v1599, 65535
        %v1630 = vshrl.u32 %v1599, 16
        %v1631 = vmul.u32 %v1627, %v1629
        %v1632 = vmul.u32 %v1627, %v1630
        %v1633 = vmul.u32 %v1628, %v1629
        %v1634 = vmul.u32 %v1628, %v1630
        %v1635 = vshll.u32 %v1632, 16
        %v1636 = vshrl.u32 %v1632, 16
        %v1637 = vshll.u32 %v1633, 16
        %v1638 = vshrl.u32 %v1633, 16
        %vm1639 = vc.u32 %v1631, %v1635
        %v1640 = vsel %vm1639, 1, 0
        %v1641 = vadd.s32 %v1631, %v1635
        %v1642 = vadd.s32 %v1634, %v1640
        %vm1643 = vc.u32 %v1641, %v1637
        %v1644 = vsel %vm1643, 1, 0
        %v1645 = vadd.s32 %v1641, %v1637
        %v1646 = vadd.s32 %v1642, %v1644
        %v1647 = vadd.s32 %v1646, %v1636
        %v1648 = vadd.s32 %v1647, %v1638
        %v1649 = vmul.u32 %v1604, %v1595
        %v1650 = vadd.s32 %v1626, %v1645
        %vm1651 = vc.u32 %v1626, %v1645
        %v1652 = vadd.s32 %v1648, 1
        %v1653 = vsel %vm1651, %v1652, %v1648
        %v1654 = vadd.s32 %v1649, %v1653
        %v1655 = vadd.s32 %v1654, 536870912
        %v1656 = vshrl.u32 %v1655, 30
        %v1657 = vshll.u32 %v1656, 30
        %v1658 = vsub.s32 %v1654, %v1657
        %vm1659 = vcmp.lt.s32.totalorder %v1658, 0
        %v1660 = vsub.s32 0, %v1658
        %v1661 = vsel %vm1659, %v1660, %v1658
        %v1662 = vclz %v1661
        %v1663 = vsub.s32 %v1662, 2
        %vm1664 = vcmp.gt.s32.totalorder 0, %v1663
        %v1665 = vsel %vm1664, 0, %v1663
        %v1666 = vsub.s32 32, %v1665
        %v1667 = vshll.u32 %v1658, %v1665
        %v1668 = vshrl.u32 %v1650, %v1666
        %v1669 = vor.u32 %v1667, %v1668
        %v1670 = vsub.s32 4294967266, %v1665
        %v1671 = vadd.s32 %v1670, 127
        %v1672 = vshll.u32 %v1671, 23
        %v1673 = vor.u32 4788187, %v1672
        %v1674 = vand.u32 2147483647, %v1673
        %v1676 = vcvt.s32.f32 %v1669
        %v1677 = vmul.f32 %v1676, %v1674
        %v1678 = vxor.u32 %v1677, 2147483648
        %v1679 = vsel %vm1558, %v1678, %v1677
        %v1680 = vsub.s32 4, %v1656
        %v1681 = vsel %vm1558, %v1680, %v1656
        %v1682 = vsel %vm1557, %v163, %v1679
        %v1683 = vsel %vm1557, 0, %v1681
        %v1684 = vmul.f32 %v1682, %v1682
        %v1685 = vmul.f32 %v1684, -0.001358992
        %v1686 = vadd.f32 %v1685, 0.041655596
        %v1687 = vmul.f32 %v1684, %v1686
        %v1688 = vadd.f32 %v1687, -0.4999988
        %v1689 = vmul.f32 %v1684, %v1688
        %v1690 = vadd.f32 1.0, %v1689
        %v1691 = vmul.f32 %v1682, %v1682
        %v1692 = vmul.f32 %v1691, -0.00019511016
        %v1693 = vadd.f32 %v1692, 0.008332121
        %v1694 = vmul.f32 %v1691, %v1693
        %v1695 = vadd.f32 %v1694, -0.16666654
        %v1696 = vmul.f32 %v1691, %v1695
        %v1697 = vadd.f32 %v1696, 1.0
        %v1698 = vmul.f32 %v1697, %v1682
        %vm1699 = vweird.f32 %v163
        %v1700 = vand.u32 %v1683, 3
        %vm1701 = vcmp.lt.s32.totalorder %v1700, 2
        %vm1702 = vcmp.eq.s32.totalorder %v1700, 0
        %v1703 = vxor.u32 %v1698, 2147483648
        %v1704 = vsel %vm1702, %v1690, %v1703
        %vm1705 = vcmp.eq.s32.totalorder %v1700, 2
        %v1706 = vxor.u32 %v1690, 2147483648
        %v1707 = vsel %vm1705, %v1706, %v1698
        %v1708 = vsel %vm1701, %v1704, %v1707
        %v1709 = vsel %vm1699, nan, %v1708
        %v1710 = vand.u32 2147483647, %v164
        %vm1711 = vcmp.le.f32.partialorder %v1710, 0.7853982
        %vm1712 = vcmp.lt.s32.totalorder %v164, 0
        %v1713 = vand.u32 %v164, 2139095040
        %v1714 = vshrl.u32 %v1713, 23
        %v1715 = vsub.s32 %v1714, 127
        %v1716 = vand.u32 2147483647, %v164
        %v1717 = vand.u32 %v1716, 8388607
        %v1718 = vor.u32 %v1717, 8388608
        %v1719 = vsub.s32 0, %v1718
        %v1720 = vadd.s32 %v1715, 1
        %vm1721 = vcmp.gt.s32.totalorder %v1720, 0
        %v1722 = vsel %vm1721, %v1720, 0
        %v1723 = vshrl.u32 %v1722, 5
        %v1724 = vand.u32 %v1722, 31
        %v1725 = vsub.s32 32, %v1724
        %v1726 = vshrl.u32 683565275, %v1725
        %v1727 = vshll.u32 683565275, %v1724
        %v1728 = vshrl.u32 2475754826, %v1725
        %v1729 = vor.u32 %v1727, %v1728
        %v1730 = vshll.u32 2475754826, %v1724
        %v1731 = vshrl.u32 2131351028, %v1725
        %v1732 = vor.u32 %v1730, %v1731
        %v1733 = vshll.u32 2131351028, %v1724
        %v1734 = vshrl.u32 2102212464, %v1725
        %v1735 = vor.u32 %v1733, %v1734
        %v1736 = vshll.u32 2102212464, %v1724
        %v1737 = vshrl.u32 920167782, %v1725
        %v1738 = vor.u32 %v1736, %v1737
        %v1739 = vshll.u32 920167782, %v1724
        %v1740 = vshrl.u32 1326507024, %v1725
        %v1741 = vor.u32 %v1739, %v1740
        %vm1742 = vcmp.lt.s32.totalorder %v1723, 1
        %vm1743 = vcmp.lt.s32.totalorder %v1723, 2
        %vm1744 = vcmp.lt.s32.totalorder %v1723, 3
        %vm1745 = vcmp.lt.s32.totalorder %v1723, 4
        %v1746 = vsel %vm1742, %v1726, %v1729
        %v1747 = vsel %vm1745, %v1735, 2102212464
        %v1748 = vsel %vm1744, %v1732, %v1747
        %v1749 = vsel %vm1743, %v1746, %v1748
        %v1750 = vsel %vm1742, %v1729, %v1732
        %v1751 = vsel %vm1745, %v1738, 920167782
        %v1752 = vsel %vm1744, %v1735, %v1751
        %v1753 = vsel %vm1743, %v1750, %v1752
        %v1754 = vsel %vm1742, %v1732, %v1735
        %v1755 = vsel %vm1745, %v1741, 1326507024
        %v1756 = vsel %vm1744, %v1738, %v1755
        %v1757 = vsel %vm1743, %v1754, %v1756
        %v1758 = vshll.u32 %v1718, 8
        %v1759 = vand.u32 %v1758, 65535
        %v1760 = vshrl.u32 %v1758, 16
        %v1761 = vand.u32 %v1757, 65535
        %v1762 = vshrl.u32 %v1757, 16
        %v1763 = vmul.u32 %v1759, %v1761
        %v1764 = vmul.u32 %v1759, %v1762
        %v1765 = vmul.u32 %v1760, %v1761
        %v1766 = vmul.u32 %v1760, %v1762
        %v1767 = vshll.u32 %v1764, 16
        %v1768 = vshrl.u32 %v1764, 16
        %v1769 = vshll.u32 %v1765, 16
        %v1770 = vshrl.u32 %v1765, 16
        %vm1771 = vc.u32 %v1763, %v1767
        %v1772 = vsel %vm1771, 1, 0
        %v1773 = vadd.s32 %v1763, %v1767
        %v1774 = vadd.s32 %v1766, %v1772
        %vm1775 = vc.u32 %v1773, %v1769
        %v1776 = vsel %vm1775, 1, 0
        %v1777 = vadd.s32 %v1773, %v1769
        %v1778 = vadd.s32 %v1774, %v1776
        %v1779 = vadd.s32 %v1778, %v1768
        %v1780 = vadd.s32 %v1779, %v1770
        %v1781 = vand.u32 %v1758, 65535
        %v1782 = vshrl.u32 %v1758, 16
        %v1783 = vand.u32 %v1753, 65535
        %v1784 = vshrl.u32 %v1753, 16
        %v1785 = vmul.u32 %v1781, %v1783
        %v1786 = vmul.u32 %v1781, %v1784
        %v1787 = vmul.u32 %v1782, %v1783
        %v1788 = vmul.u32 %v1782, %v1784
        %v1789 = vshll.u32 %v1786, 16
        %v1790 = vshrl.u32 %v1786, 16
        %v1791 = vshll.u32 %v1787, 16
        %v1792 = vshrl.u32 %v1787, 16
        %vm1793 = vc.u32 %v1785, %v1789
        %v1794 = vsel %vm1793, 1, 0
        %v1795 = vadd.s32 %v1785, %v1789
        %v1796 = vadd.s32 %v1788, %v1794
        %vm1797 = vc.u32 %v1795, %v1791
        %v1798 = vsel %vm1797, 1, 0
        %v1799 = vadd.s32 %v1795, %v1791
        %v1800 = vadd.s32 %v1796, %v1798
        %v1801 = vadd.s32 %v1800, %v1790
        %v1802 = vadd.s32 %v1801, %v1792
        %v1803 = vmul.u32 %v1758, %v1749
        %v1804 = vadd.s32 %v1780, %v1799
        %vm1805 = vc.u32 %v1780, %v1799
        %v1806 = vadd.s32 %v1802, 1
        %v1807 = vsel %vm1805, %v1806, %v1802
        %v1808 = vadd.s32 %v1803, %v1807
        %v1809 = vadd.s32 %v1808, 536870912
        %v1810 = vshrl.u32 %v1809, 30
        %v1811 = vshll.u32 %v1810, 30
        %v1812 = vsub.s32 %v1808, %v1811
        %vm1813 = vcmp.lt.s32.totalorder %v1812, 0
        %v1814 = vsub.s32 0, %v1812
        %v1815 = vsel %vm1813, %v1814, %v1812
        %v1816 = vclz %v1815
        %v1817 = vsub.s32 %v1816, 2
        %vm1818 = vcmp.gt.s32.totalorder 0, %v1817
        %v1819 = vsel %vm1818, 0, %v1817
        %v1820 = vsub.s32 32, %v1819
        %v1821 = vshll.u32 %v1812, %v1819
        %v1822 = vshrl.u32 %v1804, %v1820
        %v1823 = vor.u32 %v1821, %v1822
        %v1824 = vsub.s32 4294967266, %v1819
        %v1825 = vadd.s32 %v1824, 127
        %v1826 = vshll.u32 %v1825, 23
        %v1827 = vor.u32 4788187, %v1826
        %v1828 = vand.u32 2147483647, %v1827
        %v1830 = vcvt.s32.f32 %v1823
        %v1831 = vmul.f32 %v1830, %v1828
        %v1832 = vxor.u32 %v1831, 2147483648
        %v1833 = vsel %vm1712, %v1832, %v1831
        %v1834 = vsub.s32 4, %v1810
        %v1835 = vsel %vm1712, %v1834, %v1810
        %v1836 = vsel %vm1711, %v164, %v1833
        %v1837 = vsel %vm1711, 0, %v1835
        %v1838 = vmul.f32 %v1836, %v1836
        %v1839 = vmul.f32 %v1838, -0.001358992
        %v1840 = vadd.f32 %v1839, 0.041655596
        %v1841 = vmul.f32 %v1838, %v1840
        %v1842 = vadd.f32 %v1841, -0.4999988
        %v1843 = vmul.f32 %v1838, %v1842
        %v1844 = vadd.f32 1.0, %v1843
        %v1845 = vmul.f32 %v1836, %v1836
        %v1846 = vmul.f32 %v1845, -0.00019511016
        %v1847 = vadd.f32 %v1846, 0.008332121
        %v1848 = vmul.f32 %v1845, %v1847
        %v1849 = vadd.f32 %v1848, -0.16666654
        %v1850 = vmul.f32 %v1845, %v1849
        %v1851 = vadd.f32 %v1850, 1.0
        %v1852 = vmul.f32 %v1851, %v1836
        %vm1853 = vweird.f32 %v164
        %v1854 = vand.u32 %v1837, 3
        %vm1855 = vcmp.lt.s32.totalorder %v1854, 2
        %vm1856 = vcmp.eq.s32.totalorder %v1854, 0
        %v1857 = vxor.u32 %v1852, 2147483648
        %v1858 = vsel %vm1856, %v1844, %v1857
        %vm1859 = vcmp.eq.s32.totalorder %v1854, 2
        %v1860 = vxor.u32 %v1844, 2147483648
        %v1861 = vsel %vm1859, %v1860, %v1852
        %v1862 = vsel %vm1855, %v1858, %v1861
        %v1863 = vsel %vm1853, nan, %v1862
        %v1864 = vand.u32 2147483647, %v165
        %vm1865 = vcmp.le.f32.partialorder %v1864, 0.7853982
        %vm1866 = vcmp.lt.s32.totalorder %v165, 0
        %v1867 = vand.u32 %v165, 2139095040
        %v1868 = vshrl.u32 %v1867, 23
        %v1869 = vsub.s32 %v1868, 127
        %v1870 = vand.u32 2147483647, %v165
        %v1871 = vand.u32 %v1870, 8388607
        %v1872 = vor.u32 %v1871, 8388608
        %v1873 = vsub.s32 0, %v1872
        %v1874 = vadd.s32 %v1869, 1
        %vm1875 = vcmp.gt.s32.totalorder %v1874, 0
        %v1876 = vsel %vm1875, %v1874, 0
        %v1877 = vshrl.u32 %v1876, 5
        %v1878 = vand.u32 %v1876, 31
        %v1879 = vsub.s32 32, %v1878
        %v1880 = vshrl.u32 683565275, %v1879
        %v1881 = vshll.u32 683565275, %v1878
        %v1882 = vshrl.u32 2475754826, %v1879
        %v1883 = vor.u32 %v1881, %v1882
        %v1884 = vshll.u32 2475754826, %v1878
        %v1885 = vshrl.u32 2131351028, %v1879
        %v1886 = vor.u32 %v1884, %v1885
        %v1887 = vshll.u32 2131351028, %v1878
        %v1888 = vshrl.u32 2102212464, %v1879
        %v1889 = vor.u32 %v1887, %v1888
        %v1890 = vshll.u32 2102212464, %v1878
        %v1891 = vshrl.u32 920167782, %v1879
        %v1892 = vor.u32 %v1890, %v1891
        %v1893 = vshll.u32 920167782, %v1878
        %v1894 = vshrl.u32 1326507024, %v1879
        %v1895 = vor.u32 %v1893, %v1894
        %vm1896 = vcmp.lt.s32.totalorder %v1877, 1
        %vm1897 = vcmp.lt.s32.totalorder %v1877, 2
        %vm1898 = vcmp.lt.s32.totalorder %v1877, 3
        %vm1899 = vcmp.lt.s32.totalorder %v1877, 4
        %v1900 = vsel %vm1896, %v1880, %v1883
        %v1901 = vsel %vm1899, %v1889, 2102212464
        %v1902 = vsel %vm1898, %v1886, %v1901
        %v1903 = vsel %vm1897, %v1900, %v1902
        %v1904 = vsel %vm1896, %v1883, %v1886
        %v1905 = vsel %vm1899, %v1892, 920167782
        %v1906 = vsel %vm1898, %v1889, %v1905
        %v1907 = vsel %vm1897, %v1904, %v1906
        %v1908 = vsel %vm1896, %v1886, %v1889
        %v1909 = vsel %vm1899, %v1895, 1326507024
        %v1910 = vsel %vm1898, %v1892, %v1909
        %v1911 = vsel %vm1897, %v1908, %v1910
        %v1912 = vshll.u32 %v1872, 8
        %v1913 = vand.u32 %v1912, 65535
        %v1914 = vshrl.u32 %v1912, 16
        %v1915 = vand.u32 %v1911, 65535
        %v1916 = vshrl.u32 %v1911, 16
        %v1917 = vmul.u32 %v1913, %v1915
        %v1918 = vmul.u32 %v1913, %v1916
        %v1919 = vmul.u32 %v1914, %v1915
        %v1920 = vmul.u32 %v1914, %v1916
        %v1921 = vshll.u32 %v1918, 16
        %v1922 = vshrl.u32 %v1918, 16
        %v1923 = vshll.u32 %v1919, 16
        %v1924 = vshrl.u32 %v1919, 16
        %vm1925 = vc.u32 %v1917, %v1921
        %v1926 = vsel %vm1925, 1, 0
        %v1927 = vadd.s32 %v1917, %v1921
        %v1928 = vadd.s32 %v1920, %v1926
        %vm1929 = vc.u32 %v1927, %v1923
        %v1930 = vsel %vm1929, 1, 0
        %v1931 = vadd.s32 %v1927, %v1923
        %v1932 = vadd.s32 %v1928, %v1930
        %v1933 = vadd.s32 %v1932, %v1922
        %v1934 = vadd.s32 %v1933, %v1924
        %v1935 = vand.u32 %v1912, 65535
        %v1936 = vshrl.u32 %v1912, 16
        %v1937 = vand.u32 %v1907, 65535
        %v1938 = vshrl.u32 %v1907, 16
        %v1939 = vmul.u32 %v1935, %v1937
        %v1940 = vmul.u32 %v1935, %v1938
        %v1941 = vmul.u32 %v1936, %v1937
        %v1942 = vmul.u32 %v1936, %v1938
        %v1943 = vshll.u32 %v1940, 16
        %v1944 = vshrl.u32 %v1940, 16
        %v1945 = vshll.u32 %v1941, 16
        %v1946 = vshrl.u32 %v1941, 16
        %vm1947 = vc.u32 %v1939, %v1943
        %v1948 = vsel %vm1947, 1, 0
        %v1949 = vadd.s32 %v1939, %v1943
        %v1950 = vadd.s32 %v1942, %v1948
        %vm1951 = vc.u32 %v1949, %v1945
        %v1952 = vsel %vm1951, 1, 0
        %v1953 = vadd.s32 %v1949, %v1945
        %v1954 = vadd.s32 %v1950, %v1952
        %v1955 = vadd.s32 %v1954, %v1944
        %v1956 = vadd.s32 %v1955, %v1946
        %v1957 = vmul.u32 %v1912, %v1903
        %v1958 = vadd.s32 %v1934, %v1953
        %vm1959 = vc.u32 %v1934, %v1953
        %v1960 = vadd.s32 %v1956, 1
        %v1961 = vsel %vm1959, %v1960, %v1956
        %v1962 = vadd.s32 %v1957, %v1961
        %v1963 = vadd.s32 %v1962, 536870912
        %v1964 = vshrl.u32 %v1963, 30
        %v1965 = vshll.u32 %v1964, 30
        %v1966 = vsub.s32 %v1962, %v1965
        %vm1967 = vcmp.lt.s32.totalorder %v1966, 0
        %v1968 = vsub.s32 0, %v1966
        %v1969 = vsel %vm1967, %v1968, %v1966
        %v1970 = vclz %v1969
        %v1971 = vsub.s32 %v1970, 2
        %vm1972 = vcmp.gt.s32.totalorder 0, %v1971
        %v1973 = vsel %vm1972, 0, %v1971
        %v1974 = vsub.s32 32, %v1973
        %v1975 = vshll.u32 %v1966, %v1973
        %v1976 = vshrl.u32 %v1958, %v1974
        %v1977 = vor.u32 %v1975, %v1976
        %v1978 = vsub.s32 4294967266, %v1973
        %v1979 = vadd.s32 %v1978, 127
        %v1980 = vshll.u32 %v1979, 23
        %v1981 = vor.u32 4788187, %v1980
        %v1982 = vand.u32 2147483647, %v1981
        %v1984 = vcvt.s32.f32 %v1977
        %v1985 = vmul.f32 %v1984, %v1982
        %v1986 = vxor.u32 %v1985, 2147483648
        %v1987 = vsel %vm1866, %v1986, %v1985
        %v1988 = vsub.s32 4, %v1964
        %v1989 = vsel %vm1866, %v1988, %v1964
        %v1990 = vsel %vm1865, %v165, %v1987
        %v1991 = vsel %vm1865, 0, %v1989
        %v1992 = vmul.f32 %v1990, %v1990
        %v1993 = vmul.f32 %v1992, -0.001358992
        %v1994 = vadd.f32 %v1993, 0.041655596
        %v1995 = vmul.f32 %v1992, %v1994
        %v1996 = vadd.f32 %v1995, -0.4999988
        %v1997 = vmul.f32 %v1992, %v1996
        %v1998 = vadd.f32 1.0, %v1997
        %v1999 = vmul.f32 %v1990, %v1990
        %v2000 = vmul.f32 %v1999, -0.00019511016
        %v2001 = vadd.f32 %v2000, 0.008332121
        %v2002 = vmul.f32 %v1999, %v2001
        %v2003 = vadd.f32 %v2002, -0.16666654
        %v2004 = vmul.f32 %v1999, %v2003
        %v2005 = vadd.f32 %v2004, 1.0
        %v2006 = vmul.f32 %v2005, %v1990
        %vm2007 = vweird.f32 %v165
        %v2008 = vand.u32 %v1991, 3
        %vm2009 = vcmp.lt.s32.totalorder %v2008, 2
        %vm2010 = vcmp.eq.s32.totalorder %v2008, 0
        %v2011 = vxor.u32 %v2006, 2147483648
        %v2012 = vsel %vm2010, %v1998, %v2011
        %vm2013 = vcmp.eq.s32.totalorder %v2008, 2
        %v2014 = vxor.u32 %v1998, 2147483648
        %v2015 = vsel %vm2013, %v2014, %v2006
        %v2016 = vsel %vm2009, %v2012, %v2015
        %v2017 = vsel %vm2007, nan, %v2016
        %v2018 = vand.u32 2147483647, %v166
        %vm2019 = vcmp.le.f32.partialorder %v2018, 0.7853982
        %vm2020 = vcmp.lt.s32.totalorder %v166, 0
        %v2021 = vand.u32 %v166, 2139095040
        %v2022 = vshrl.u32 %v2021, 23
        %v2023 = vsub.s32 %v2022, 127
        %v2024 = vand.u32 2147483647, %v166
        %v2025 = vand.u32 %v2024, 8388607
        %v2026 = vor.u32 %v2025, 8388608
        %v2027 = vsub.s32 0, %v2026
        %v2028 = vadd.s32 %v2023, 1
        %vm2029 = vcmp.gt.s32.totalorder %v2028, 0
        %v2030 = vsel %vm2029, %v2028, 0
        %v2031 = vshrl.u32 %v2030, 5
        %v2032 = vand.u32 %v2030, 31
        %v2033 = vsub.s32 32, %v2032
        %v2034 = vshrl.u32 683565275, %v2033
        %v2035 = vshll.u32 683565275, %v2032
        %v2036 = vshrl.u32 2475754826, %v2033
        %v2037 = vor.u32 %v2035, %v2036
        %v2038 = vshll.u32 2475754826, %v2032
        %v2039 = vshrl.u32 2131351028, %v2033
        %v2040 = vor.u32 %v2038, %v2039
        %v2041 = vshll.u32 2131351028, %v2032
        %v2042 = vshrl.u32 2102212464, %v2033
        %v2043 = vor.u32 %v2041, %v2042
        %v2044 = vshll.u32 2102212464, %v2032
        %v2045 = vshrl.u32 920167782, %v2033
        %v2046 = vor.u32 %v2044, %v2045
        %v2047 = vshll.u32 920167782, %v2032
        %v2048 = vshrl.u32 1326507024, %v2033
        %v2049 = vor.u32 %v2047, %v2048
        %vm2050 = vcmp.lt.s32.totalorder %v2031, 1
        %vm2051 = vcmp.lt.s32.totalorder %v2031, 2
        %vm2052 = vcmp.lt.s32.totalorder %v2031, 3
        %vm2053 = vcmp.lt.s32.totalorder %v2031, 4
        %v2054 = vsel %vm2050, %v2034, %v2037
        %v2055 = vsel %vm2053, %v2043, 2102212464
        %v2056 = vsel %vm2052, %v2040, %v2055
        %v2057 = vsel %vm2051, %v2054, %v2056
        %v2058 = vsel %vm2050, %v2037, %v2040
        %v2059 = vsel %vm2053, %v2046, 920167782
        %v2060 = vsel %vm2052, %v2043, %v2059
        %v2061 = vsel %vm2051, %v2058, %v2060
        %v2062 = vsel %vm2050, %v2040, %v2043
        %v2063 = vsel %vm2053, %v2049, 1326507024
        %v2064 = vsel %vm2052, %v2046, %v2063
        %v2065 = vsel %vm2051, %v2062, %v2064
        %v2066 = vshll.u32 %v2026, 8
        %v2067 = vand.u32 %v2066, 65535
        %v2068 = vshrl.u32 %v2066, 16
        %v2069 = vand.u32 %v2065, 65535
        %v2070 = vshrl.u32 %v2065, 16
        %v2071 = vmul.u32 %v2067, %v2069
        %v2072 = vmul.u32 %v2067, %v2070
        %v2073 = vmul.u32 %v2068, %v2069
        %v2074 = vmul.u32 %v2068, %v2070
        %v2075 = vshll.u32 %v2072, 16
        %v2076 = vshrl.u32 %v2072, 16
        %v2077 = vshll.u32 %v2073, 16
        %v2078 = vshrl.u32 %v2073, 16
        %vm2079 = vc.u32 %v2071, %v2075
        %v2080 = vsel %vm2079, 1, 0
        %v2081 = vadd.s32 %v2071, %v2075
        %v2082 = vadd.s32 %v2074, %v2080
        %vm2083 = vc.u32 %v2081, %v2077
        %v2084 = vsel %vm2083, 1, 0
        %v2085 = vadd.s32 %v2081, %v2077
        %v2086 = vadd.s32 %v2082, %v2084
        %v2087 = vadd.s32 %v2086, %v2076
        %v2088 = vadd.s32 %v2087, %v2078
        %v2089 = vand.u32 %v2066, 65535
        %v2090 = vshrl.u32 %v2066, 16
        %v2091 = vand.u32 %v2061, 65535
        %v2092 = vshrl.u32 %v2061, 16
        %v2093 = vmul.u32 %v2089, %v2091
        %v2094 = vmul.u32 %v2089, %v2092
        %v2095 = vmul.u32 %v2090, %v2091
        %v2096 = vmul.u32 %v2090, %v2092
        %v2097 = vshll.u32 %v2094, 16
        %v2098 = vshrl.u32 %v2094, 16
        %v2099 = vshll.u32 %v2095, 16
        %v2100 = vshrl.u32 %v2095, 16
        %vm2101 = vc.u32 %v2093, %v2097
        %v2102 = vsel %vm2101, 1, 0
        %v2103 = vadd.s32 %v2093, %v2097
        %v2104 = vadd.s32 %v2096, %v2102
        %vm2105 = vc.u32 %v2103, %v2099
        %v2106 = vsel %vm2105, 1, 0
        %v2107 = vadd.s32 %v2103, %v2099
        %v2108 = vadd.s32 %v2104, %v2106
        %v2109 = vadd.s32 %v2108, %v2098
        %v2110 = vadd.s32 %v2109, %v2100
        %v2111 = vmul.u32 %v2066, %v2057
        %v2112 = vadd.s32 %v2088, %v2107
        %vm2113 = vc.u32 %v2088, %v2107
        %v2114 = vadd.s32 %v2110, 1
        %v2115 = vsel %vm2113, %v2114, %v2110
        %v2116 = vadd.s32 %v2111, %v2115
        %v2117 = vadd.s32 %v2116, 536870912
        %v2118 = vshrl.u32 %v2117, 30
        %v2119 = vshll.u32 %v2118, 30
        %v2120 = vsub.s32 %v2116, %v2119
        %vm2121 = vcmp.lt.s32.totalorder %v2120, 0
        %v2122 = vsub.s32 0, %v2120
        %v2123 = vsel %vm2121, %v2122, %v2120
        %v2124 = vclz %v2123
        %v2125 = vsub.s32 %v2124, 2
        %vm2126 = vcmp.gt.s32.totalorder 0, %v2125
        %v2127 = vsel %vm2126, 0, %v2125
        %v2128 = vsub.s32 32, %v2127
        %v2129 = vshll.u32 %v2120, %v2127
        %v2130 = vshrl.u32 %v2112, %v2128
        %v2131 = vor.u32 %v2129, %v2130
        %v2132 = vsub.s32 4294967266, %v2127
        %v2133 = vadd.s32 %v2132, 127
        %v2134 = vshll.u32 %v2133, 23
        %v2135 = vor.u32 4788187, %v2134
        %v2136 = vand.u32 2147483647, %v2135
        %v2138 = vcvt.s32.f32 %v2131
        %v2139 = vmul.f32 %v2138, %v2136
        %v2140 = vxor.u32 %v2139, 2147483648
        %v2141 = vsel %vm2020, %v2140, %v2139
        %v2142 = vsub.s32 4, %v2118
        %v2143 = vsel %vm2020, %v2142, %v2118
        %v2144 = vsel %vm2019, %v166, %v2141
        %v2145 = vsel %vm2019, 0, %v2143
        %v2146 = vmul.f32 %v2144, %v2144
        %v2147 = vmul.f32 %v2146, -0.001358992
        %v2148 = vadd.f32 %v2147, 0.041655596
        %v2149 = vmul.f32 %v2146, %v2148
        %v2150 = vadd.f32 %v2149, -0.4999988
        %v2151 = vmul.f32 %v2146, %v2150
        %v2152 = vadd.f32 1.0, %v2151
        %v2153 = vmul.f32 %v2144, %v2144
        %v2154 = vmul.f32 %v2153, -0.00019511016
        %v2155 = vadd.f32 %v2154, 0.008332121
        %v2156 = vmul.f32 %v2153, %v2155
        %v2157 = vadd.f32 %v2156, -0.16666654
        %v2158 = vmul.f32 %v2153, %v2157
        %v2159 = vadd.f32 %v2158, 1.0
        %v2160 = vmul.f32 %v2159, %v2144
        %vm2161 = vweird.f32 %v166
        %v2162 = vand.u32 %v2145, 3
        %vm2163 = vcmp.lt.s32.totalorder %v2162, 2
        %vm2164 = vcmp.eq.s32.totalorder %v2162, 0
        %v2165 = vxor.u32 %v2160, 2147483648
        %v2166 = vsel %vm2164, %v2152, %v2165
        %vm2167 = vcmp.eq.s32.totalorder %v2162, 2
        %v2168 = vxor.u32 %v2152, 2147483648
        %v2169 = vsel %vm2167, %v2168, %v2160
        %v2170 = vsel %vm2163, %v2166, %v2169
        %v2171 = vsel %vm2161, nan, %v2170
        %v2172 = vand.u32 2147483647, %v167
        %vm2173 = vcmp.le.f32.partialorder %v2172, 0.7853982
        %vm2174 = vcmp.lt.s32.totalorder %v167, 0
        %v2175 = vand.u32 %v167, 2139095040
        %v2176 = vshrl.u32 %v2175, 23
        %v2177 = vsub.s32 %v2176, 127
        %v2178 = vand.u32 2147483647, %v167
        %v2179 = vand.u32 %v2178, 8388607
        %v2180 = vor.u32 %v2179, 8388608
        %v2181 = vsub.s32 0, %v2180
        %v2182 = vadd.s32 %v2177, 1
        %vm2183 = vcmp.gt.s32.totalorder %v2182, 0
        %v2184 = vsel %vm2183, %v2182, 0
        %v2185 = vshrl.u32 %v2184, 5
        %v2186 = vand.u32 %v2184, 31
        %v2187 = vsub.s32 32, %v2186
        %v2188 = vshrl.u32 683565275, %v2187
        %v2189 = vshll.u32 683565275, %v2186
        %v2190 = vshrl.u32 2475754826, %v2187
        %v2191 = vor.u32 %v2189, %v2190
        %v2192 = vshll.u32 2475754826, %v2186
        %v2193 = vshrl.u32 2131351028, %v2187
        %v2194 = vor.u32 %v2192, %v2193
        %v2195 = vshll.u32 2131351028, %v2186
        %v2196 = vshrl.u32 2102212464, %v2187
        %v2197 = vor.u32 %v2195, %v2196
        %v2198 = vshll.u32 2102212464, %v2186
        %v2199 = vshrl.u32 920167782, %v2187
        %v2200 = vor.u32 %v2198, %v2199
        %v2201 = vshll.u32 920167782, %v2186
        %v2202 = vshrl.u32 1326507024, %v2187
        %v2203 = vor.u32 %v2201, %v2202
        %vm2204 = vcmp.lt.s32.totalorder %v2185, 1
        %vm2205 = vcmp.lt.s32.totalorder %v2185, 2
        %vm2206 = vcmp.lt.s32.totalorder %v2185, 3
        %vm2207 = vcmp.lt.s32.totalorder %v2185, 4
        %v2208 = vsel %vm2204, %v2188, %v2191
        %v2209 = vsel %vm2207, %v2197, 2102212464
        %v2210 = vsel %vm2206, %v2194, %v2209
        %v2211 = vsel %vm2205, %v2208, %v2210
        %v2212 = vsel %vm2204, %v2191, %v2194
        %v2213 = vsel %vm2207, %v2200, 920167782
        %v2214 = vsel %vm2206, %v2197, %v2213
        %v2215 = vsel %vm2205, %v2212, %v2214
        %v2216 = vsel %vm2204, %v2194, %v2197
        %v2217 = vsel %vm2207, %v2203, 1326507024
        %v2218 = vsel %vm2206, %v2200, %v2217
        %v2219 = vsel %vm2205, %v2216, %v2218
        %v2220 = vshll.u32 %v2180, 8
        %v2221 = vand.u32 %v2220, 65535
        %v2222 = vshrl.u32 %v2220, 16
        %v2223 = vand.u32 %v2219, 65535
        %v2224 = vshrl.u32 %v2219, 16
        %v2225 = vmul.u32 %v2221, %v2223
        %v2226 = vmul.u32 %v2221, %v2224
        %v2227 = vmul.u32 %v2222, %v2223
        %v2228 = vmul.u32 %v2222, %v2224
        %v2229 = vshll.u32 %v2226, 16
        %v2230 = vshrl.u32 %v2226, 16
        %v2231 = vshll.u32 %v2227, 16
        %v2232 = vshrl.u32 %v2227, 16
        %vm2233 = vc.u32 %v2225, %v2229
        %v2234 = vsel %vm2233, 1, 0
        %v2235 = vadd.s32 %v2225, %v2229
        %v2236 = vadd.s32 %v2228, %v2234
        %vm2237 = vc.u32 %v2235, %v2231
        %v2238 = vsel %vm2237, 1, 0
        %v2239 = vadd.s32 %v2235, %v2231
        %v2240 = vadd.s32 %v2236, %v2238
        %v2241 = vadd.s32 %v2240, %v2230
        %v2242 = vadd.s32 %v2241, %v2232
        %v2243 = vand.u32 %v2220, 65535
        %v2244 = vshrl.u32 %v2220, 16
        %v2245 = vand.u32 %v2215, 65535
        %v2246 = vshrl.u32 %v2215, 16
        %v2247 = vmul.u32 %v2243, %v2245
        %v2248 = vmul.u32 %v2243, %v2246
        %v2249 = vmul.u32 %v2244, %v2245
        %v2250 = vmul.u32 %v2244, %v2246
        %v2251 = vshll.u32 %v2248, 16
        %v2252 = vshrl.u32 %v2248, 16
        %v2253 = vshll.u32 %v2249, 16
        %v2254 = vshrl.u32 %v2249, 16
        %vm2255 = vc.u32 %v2247, %v2251
        %v2256 = vsel %vm2255, 1, 0
        %v2257 = vadd.s32 %v2247, %v2251
        %v2258 = vadd.s32 %v2250, %v2256
        %vm2259 = vc.u32 %v2257, %v2253
        %v2260 = vsel %vm2259, 1, 0
        %v2261 = vadd.s32 %v2257, %v2253
        %v2262 = vadd.s32 %v2258, %v2260
        %v2263 = vadd.s32 %v2262, %v2252
        %v2264 = vadd.s32 %v2263, %v2254
        %v2265 = vmul.u32 %v2220, %v2211
        %v2266 = vadd.s32 %v2242, %v2261
        %vm2267 = vc.u32 %v2242, %v2261
        %v2268 = vadd.s32 %v2264, 1
        %v2269 = vsel %vm2267, %v2268, %v2264
        %v2270 = vadd.s32 %v2265, %v2269
        %v2271 = vadd.s32 %v2270, 536870912
        %v2272 = vshrl.u32 %v2271, 30
        %v2273 = vshll.u32 %v2272, 30
        %v2274 = vsub.s32 %v2270, %v2273
        %vm2275 = vcmp.lt.s32.totalorder %v2274, 0
        %v2276 = vsub.s32 0, %v2274
        %v2277 = vsel %vm2275, %v2276, %v2274
        %v2278 = vclz %v2277
        %v2279 = vsub.s32 %v2278, 2
        %vm2280 = vcmp.gt.s32.totalorder 0, %v2279
        %v2281 = vsel %vm2280, 0, %v2279
        %v2282 = vsub.s32 32, %v2281
        %v2283 = vshll.u32 %v2274, %v2281
        %v2284 = vshrl.u32 %v2266, %v2282
        %v2285 = vor.u32 %v2283, %v2284
        %v2286 = vsub.s32 4294967266, %v2281
        %v2287 = vadd.s32 %v2286, 127
        %v2288 = vshll.u32 %v2287, 23
        %v2289 = vor.u32 4788187, %v2288
        %v2290 = vand.u32 2147483647, %v2289
        %v2292 = vcvt.s32.f32 %v2285
        %v2293 = vmul.f32 %v2292, %v2290
        %v2294 = vxor.u32 %v2293, 2147483648
        %v2295 = vsel %vm2174, %v2294, %v2293
        %v2296 = vsub.s32 4, %v2272
        %v2297 = vsel %vm2174, %v2296, %v2272
        %v2298 = vsel %vm2173, %v167, %v2295
        %v2299 = vsel %vm2173, 0, %v2297
        %v2300 = vmul.f32 %v2298, %v2298
        %v2301 = vmul.f32 %v2300, -0.001358992
        %v2302 = vadd.f32 %v2301, 0.041655596
        %v2303 = vmul.f32 %v2300, %v2302
        %v2304 = vadd.f32 %v2303, -0.4999988
        %v2305 = vmul.f32 %v2300, %v2304
        %v2306 = vadd.f32 1.0, %v2305
        %v2307 = vmul.f32 %v2298, %v2298
        %v2308 = vmul.f32 %v2307, -0.00019511016
        %v2309 = vadd.f32 %v2308, 0.008332121
        %v2310 = vmul.f32 %v2307, %v2309
        %v2311 = vadd.f32 %v2310, -0.16666654
        %v2312 = vmul.f32 %v2307, %v2311
        %v2313 = vadd.f32 %v2312, 1.0
        %v2314 = vmul.f32 %v2313, %v2298
        %vm2315 = vweird.f32 %v167
        %v2316 = vand.u32 %v2299, 3
        %vm2317 = vcmp.lt.s32.totalorder %v2316, 2
        %vm2318 = vcmp.eq.s32.totalorder %v2316, 0
        %v2319 = vxor.u32 %v2314, 2147483648
        %v2320 = vsel %vm2318, %v2306, %v2319
        %vm2321 = vcmp.eq.s32.totalorder %v2316, 2
        %v2322 = vxor.u32 %v2306, 2147483648
        %v2323 = vsel %vm2321, %v2322, %v2314
        %v2324 = vsel %vm2317, %v2320, %v2323
        %v2325 = vsel %vm2315, nan, %v2324
        %v2326 = vand.u32 2147483647, %v168
        %vm2327 = vcmp.le.f32.partialorder %v2326, 0.7853982
        %vm2328 = vcmp.lt.s32.totalorder %v168, 0
        %v2329 = vand.u32 %v168, 2139095040
        %v2330 = vshrl.u32 %v2329, 23
        %v2331 = vsub.s32 %v2330, 127
        %v2332 = vand.u32 2147483647, %v168
        %v2333 = vand.u32 %v2332, 8388607
        %v2334 = vor.u32 %v2333, 8388608
        %v2335 = vsub.s32 0, %v2334
        %v2336 = vadd.s32 %v2331, 1
        %vm2337 = vcmp.gt.s32.totalorder %v2336, 0
        %v2338 = vsel %vm2337, %v2336, 0
        %v2339 = vshrl.u32 %v2338, 5
        %v2340 = vand.u32 %v2338, 31
        %v2341 = vsub.s32 32, %v2340
        %v2342 = vshrl.u32 683565275, %v2341
        %v2343 = vshll.u32 683565275, %v2340
        %v2344 = vshrl.u32 2475754826, %v2341
        %v2345 = vor.u32 %v2343, %v2344
        %v2346 = vshll.u32 2475754826, %v2340
        %v2347 = vshrl.u32 2131351028, %v2341
        %v2348 = vor.u32 %v2346, %v2347
        %v2349 = vshll.u32 2131351028, %v2340
        %v2350 = vshrl.u32 2102212464, %v2341
        %v2351 = vor.u32 %v2349, %v2350
        %v2352 = vshll.u32 2102212464, %v2340
        %v2353 = vshrl.u32 920167782, %v2341
        %v2354 = vor.u32 %v2352, %v2353
        %v2355 = vshll.u32 920167782, %v2340
        %v2356 = vshrl.u32 1326507024, %v2341
        %v2357 = vor.u32 %v2355, %v2356
        %vm2358 = vcmp.lt.s32.totalorder %v2339, 1
        %vm2359 = vcmp.lt.s32.totalorder %v2339, 2
        %vm2360 = vcmp.lt.s32.totalorder %v2339, 3
        %vm2361 = vcmp.lt.s32.totalorder %v2339, 4
        %v2362 = vsel %vm2358, %v2342, %v2345
        %v2363 = vsel %vm2361, %v2351, 2102212464
        %v2364 = vsel %vm2360, %v2348, %v2363
        %v2365 = vsel %vm2359, %v2362, %v2364
        %v2366 = vsel %vm2358, %v2345, %v2348
        %v2367 = vsel %vm2361, %v2354, 920167782
        %v2368 = vsel %vm2360, %v2351, %v2367
        %v2369 = vsel %vm2359, %v2366, %v2368
        %v2370 = vsel %vm2358, %v2348, %v2351
        %v2371 = vsel %vm2361, %v2357, 1326507024
        %v2372 = vsel %vm2360, %v2354, %v2371
        %v2373 = vsel %vm2359, %v2370, %v2372
        %v2374 = vshll.u32 %v2334, 8
        %v2375 = vand.u32 %v2374, 65535
        %v2376 = vshrl.u32 %v2374, 16
        %v2377 = vand.u32 %v2373, 65535
        %v2378 = vshrl.u32 %v2373, 16
        %v2379 = vmul.u32 %v2375, %v2377
        %v2380 = vmul.u32 %v2375, %v2378
        %v2381 = vmul.u32 %v2376, %v2377
        %v2382 = vmul.u32 %v2376, %v2378
        %v2383 = vshll.u32 %v2380, 16
        %v2384 = vshrl.u32 %v2380, 16
        %v2385 = vshll.u32 %v2381, 16
        %v2386 = vshrl.u32 %v2381, 16
        %vm2387 = vc.u32 %v2379, %v2383
        %v2388 = vsel %vm2387, 1, 0
        %v2389 = vadd.s32 %v2379, %v2383
        %v2390 = vadd.s32 %v2382, %v2388
        %vm2391 = vc.u32 %v2389, %v2385
        %v2392 = vsel %vm2391, 1, 0
        %v2393 = vadd.s32 %v2389, %v2385
        %v2394 = vadd.s32 %v2390, %v2392
        %v2395 = vadd.s32 %v2394, %v2384
        %v2396 = vadd.s32 %v2395, %v2386
        %v2397 = vand.u32 %v2374, 65535
        %v2398 = vshrl.u32 %v2374, 16
        %v2399 = vand.u32 %v2369, 65535
        %v2400 = vshrl.u32 %v2369, 16
        %v2401 = vmul.u32 %v2397, %v2399
        %v2402 = vmul.u32 %v2397, %v2400
        %v2403 = vmul.u32 %v2398, %v2399
        %v2404 = vmul.u32 %v2398, %v2400
        %v2405 = vshll.u32 %v2402, 16
        %v2406 = vshrl.u32 %v2402, 16
        %v2407 = vshll.u32 %v2403, 16
        %v2408 = vshrl.u32 %v2403, 16
        %vm2409 = vc.u32 %v2401, %v2405
        %v2410 = vsel %vm2409, 1, 0
        %v2411 = vadd.s32 %v2401, %v2405
        %v2412 = vadd.s32 %v2404, %v2410
        %vm2413 = vc.u32 %v2411, %v2407
        %v2414 = vsel %vm2413, 1, 0
        %v2415 = vadd.s32 %v2411, %v2407
        %v2416 = vadd.s32 %v2412, %v2414
        %v2417 = vadd.s32 %v2416, %v2406
        %v2418 = vadd.s32 %v2417, %v2408
        %v2419 = vmul.u32 %v2374, %v2365
        %v2420 = vadd.s32 %v2396, %v2415
        %vm2421 = vc.u32 %v2396, %v2415
        %v2422 = vadd.s32 %v2418, 1
        %v2423 = vsel %vm2421, %v2422, %v2418
        %v2424 = vadd.s32 %v2419, %v2423
        %v2425 = vadd.s32 %v2424, 536870912
        %v2426 = vshrl.u32 %v2425, 30
        %v2427 = vshll.u32 %v2426, 30
        %v2428 = vsub.s32 %v2424, %v2427
        %vm2429 = vcmp.lt.s32.totalorder %v2428, 0
        %v2430 = vsub.s32 0, %v2428
        %v2431 = vsel %vm2429, %v2430, %v2428
        %v2432 = vclz %v2431
        %v2433 = vsub.s32 %v2432, 2
        %vm2434 = vcmp.gt.s32.totalorder 0, %v2433
        %v2435 = vsel %vm2434, 0, %v2433
        %v2436 = vsub.s32 32, %v2435
        %v2437 = vshll.u32 %v2428, %v2435
        %v2438 = vshrl.u32 %v2420, %v2436
        %v2439 = vor.u32 %v2437, %v2438
        %v2440 = vsub.s32 4294967266, %v2435
        %v2441 = vadd.s32 %v2440, 127
        %v2442 = vshll.u32 %v2441, 23
        %v2443 = vor.u32 4788187, %v2442
        %v2444 = vand.u32 2147483647, %v2443
        %v2446 = vcvt.s32.f32 %v2439
        %v2447 = vmul.f32 %v2446, %v2444
        %v2448 = vxor.u32 %v2447, 2147483648
        %v2449 = vsel %vm2328, %v2448, %v2447
        %v2450 = vsub.s32 4, %v2426
        %v2451 = vsel %vm2328, %v2450, %v2426
        %v2452 = vsel %vm2327, %v168, %v2449
        %v2453 = vsel %vm2327, 0, %v2451
        %v2454 = vmul.f32 %v2452, %v2452
        %v2455 = vmul.f32 %v2454, -0.001358992
        %v2456 = vadd.f32 %v2455, 0.041655596
        %v2457 = vmul.f32 %v2454, %v2456
        %v2458 = vadd.f32 %v2457, -0.4999988
        %v2459 = vmul.f32 %v2454, %v2458
        %v2460 = vadd.f32 1.0, %v2459
        %v2461 = vmul.f32 %v2452, %v2452
        %v2462 = vmul.f32 %v2461, -0.00019511016
        %v2463 = vadd.f32 %v2462, 0.008332121
        %v2464 = vmul.f32 %v2461, %v2463
        %v2465 = vadd.f32 %v2464, -0.16666654
        %v2466 = vmul.f32 %v2461, %v2465
        %v2467 = vadd.f32 %v2466, 1.0
        %v2468 = vmul.f32 %v2467, %v2452
        %vm2469 = vweird.f32 %v168
        %v2470 = vand.u32 %v2453, 3
        %vm2471 = vcmp.lt.s32.totalorder %v2470, 2
        %vm2472 = vcmp.eq.s32.totalorder %v2470, 0
        %v2473 = vxor.u32 %v2468, 2147483648
        %v2474 = vsel %vm2472, %v2460, %v2473
        %vm2475 = vcmp.eq.s32.totalorder %v2470, 2
        %v2476 = vxor.u32 %v2460, 2147483648
        %v2477 = vsel %vm2475, %v2476, %v2468
        %v2478 = vsel %vm2471, %v2474, %v2477
        %v2479 = vsel %vm2469, nan, %v2478
        %v2480 = vand.u32 2147483647, %v169
        %vm2481 = vcmp.le.f32.partialorder %v2480, 0.7853982
        %vm2482 = vcmp.lt.s32.totalorder %v169, 0
        %v2483 = vand.u32 %v169, 2139095040
        %v2484 = vshrl.u32 %v2483, 23
        %v2485 = vsub.s32 %v2484, 127
        %v2486 = vand.u32 2147483647, %v169
        %v2487 = vand.u32 %v2486, 8388607
        %v2488 = vor.u32 %v2487, 8388608
        %v2489 = vsub.s32 0, %v2488
        %v2490 = vadd.s32 %v2485, 1
        %vm2491 = vcmp.gt.s32.totalorder %v2490, 0
        %v2492 = vsel %vm2491, %v2490, 0
        %v2493 = vshrl.u32 %v2492, 5
        %v2494 = vand.u32 %v2492, 31
        %v2495 = vsub.s32 32, %v2494
        %v2496 = vshrl.u32 683565275, %v2495
        %v2497 = vshll.u32 683565275, %v2494
        %v2498 = vshrl.u32 2475754826, %v2495
        %v2499 = vor.u32 %v2497, %v2498
        %v2500 = vshll.u32 2475754826, %v2494
        %v2501 = vshrl.u32 2131351028, %v2495
        %v2502 = vor.u32 %v2500, %v2501
        %v2503 = vshll.u32 2131351028, %v2494
        %v2504 = vshrl.u32 2102212464, %v2495
        %v2505 = vor.u32 %v2503, %v2504
        %v2506 = vshll.u32 2102212464, %v2494
        %v2507 = vshrl.u32 920167782, %v2495
        %v2508 = vor.u32 %v2506, %v2507
        %v2509 = vshll.u32 920167782, %v2494
        %v2510 = vshrl.u32 1326507024, %v2495
        %v2511 = vor.u32 %v2509, %v2510
        %vm2512 = vcmp.lt.s32.totalorder %v2493, 1
        %vm2513 = vcmp.lt.s32.totalorder %v2493, 2
        %vm2514 = vcmp.lt.s32.totalorder %v2493, 3
        %vm2515 = vcmp.lt.s32.totalorder %v2493, 4
        %v2516 = vsel %vm2512, %v2496, %v2499
        %v2517 = vsel %vm2515, %v2505, 2102212464
        %v2518 = vsel %vm2514, %v2502, %v2517
        %v2519 = vsel %vm2513, %v2516, %v2518
        %v2520 = vsel %vm2512, %v2499, %v2502
        %v2521 = vsel %vm2515, %v2508, 920167782
        %v2522 = vsel %vm2514, %v2505, %v2521
        %v2523 = vsel %vm2513, %v2520, %v2522
        %v2524 = vsel %vm2512, %v2502, %v2505
        %v2525 = vsel %vm2515, %v2511, 1326507024
        %v2526 = vsel %vm2514, %v2508, %v2525
        %v2527 = vsel %vm2513, %v2524, %v2526
        %v2528 = vshll.u32 %v2488, 8
        %v2529 = vand.u32 %v2528, 65535
        %v2530 = vshrl.u32 %v2528, 16
        %v2531 = vand.u32 %v2527, 65535
        %v2532 = vshrl.u32 %v2527, 16
        %v2533 = vmul.u32 %v2529, %v2531
        %v2534 = vmul.u32 %v2529, %v2532
        %v2535 = vmul.u32 %v2530, %v2531
        %v2536 = vmul.u32 %v2530, %v2532
        %v2537 = vshll.u32 %v2534, 16
        %v2538 = vshrl.u32 %v2534, 16
        %v2539 = vshll.u32 %v2535, 16
        %v2540 = vshrl.u32 %v2535, 16
        %vm2541 = vc.u32 %v2533, %v2537
        %v2542 = vsel %vm2541, 1, 0
        %v2543 = vadd.s32 %v2533, %v2537
        %v2544 = vadd.s32 %v2536, %v2542
        %vm2545 = vc.u32 %v2543, %v2539
        %v2546 = vsel %vm2545, 1, 0
        %v2547 = vadd.s32 %v2543, %v2539
        %v2548 = vadd.s32 %v2544, %v2546
        %v2549 = vadd.s32 %v2548, %v2538
        %v2550 = vadd.s32 %v2549, %v2540
        %v2551 = vand.u32 %v2528, 65535
        %v2552 = vshrl.u32 %v2528, 16
        %v2553 = vand.u32 %v2523, 65535
        %v2554 = vshrl.u32 %v2523, 16
        %v2555 = vmul.u32 %v2551, %v2553
        %v2556 = vmul.u32 %v2551, %v2554
        %v2557 = vmul.u32 %v2552, %v2553
        %v2558 = vmul.u32 %v2552, %v2554
        %v2559 = vshll.u32 %v2556, 16
        %v2560 = vshrl.u32 %v2556, 16
        %v2561 = vshll.u32 %v2557, 16
        %v2562 = vshrl.u32 %v2557, 16
        %vm2563 = vc.u32 %v2555, %v2559
        %v2564 = vsel %vm2563, 1, 0
        %v2565 = vadd.s32 %v2555, %v2559
        %v2566 = vadd.s32 %v2558, %v2564
        %vm2567 = vc.u32 %v2565, %v2561
        %v2568 = vsel %vm2567, 1, 0
        %v2569 = vadd.s32 %v2565, %v2561
        %v2570 = vadd.s32 %v2566, %v2568
        %v2571 = vadd.s32 %v2570, %v2560
        %v2572 = vadd.s32 %v2571, %v2562
        %v2573 = vmul.u32 %v2528, %v2519
        %v2574 = vadd.s32 %v2550, %v2569
        %vm2575 = vc.u32 %v2550, %v2569
        %v2576 = vadd.s32 %v2572, 1
        %v2577 = vsel %vm2575, %v2576, %v2572
        %v2578 = vadd.s32 %v2573, %v2577
        %v2579 = vadd.s32 %v2578, 536870912
        %v2580 = vshrl.u32 %v2579, 30
        %v2581 = vshll.u32 %v2580, 30
        %v2582 = vsub.s32 %v2578, %v2581
        %vm2583 = vcmp.lt.s32.totalorder %v2582, 0
        %v2584 = vsub.s32 0, %v2582
        %v2585 = vsel %vm2583, %v2584, %v2582
        %v2586 = vclz %v2585
        %v2587 = vsub.s32 %v2586, 2
        %vm2588 = vcmp.gt.s32.totalorder 0, %v2587
        %v2589 = vsel %vm2588, 0, %v2587
        %v2590 = vsub.s32 32, %v2589
        %v2591 = vshll.u32 %v2582, %v2589
        %v2592 = vshrl.u32 %v2574, %v2590
        %v2593 = vor.u32 %v2591, %v2592
        %v2594 = vsub.s32 4294967266, %v2589
        %v2595 = vadd.s32 %v2594, 127
        %v2596 = vshll.u32 %v2595, 23
        %v2597 = vor.u32 4788187, %v2596
        %v2598 = vand.u32 2147483647, %v2597
        %v2600 = vcvt.s32.f32 %v2593
        %v2601 = vmul.f32 %v2600, %v2598
        %v2602 = vxor.u32 %v2601, 2147483648
        %v2603 = vsel %vm2482, %v2602, %v2601
        %v2604 = vsub.s32 4, %v2580
        %v2605 = vsel %vm2482, %v2604, %v2580
        %v2606 = vsel %vm2481, %v169, %v2603
        %v2607 = vsel %vm2481, 0, %v2605
        %v2608 = vmul.f32 %v2606, %v2606
        %v2609 = vmul.f32 %v2608, -0.001358992
        %v2610 = vadd.f32 %v2609, 0.041655596
        %v2611 = vmul.f32 %v2608, %v2610
        %v2612 = vadd.f32 %v2611, -0.4999988
        %v2613 = vmul.f32 %v2608, %v2612
        %v2614 = vadd.f32 1.0, %v2613
        %v2615 = vmul.f32 %v2606, %v2606
        %v2616 = vmul.f32 %v2615, -0.00019511016
        %v2617 = vadd.f32 %v2616, 0.008332121
        %v2618 = vmul.f32 %v2615, %v2617
        %v2619 = vadd.f32 %v2618, -0.16666654
        %v2620 = vmul.f32 %v2615, %v2619
        %v2621 = vadd.f32 %v2620, 1.0
        %v2622 = vmul.f32 %v2621, %v2606
        %vm2623 = vweird.f32 %v169
        %v2624 = vand.u32 %v2607, 3
        %vm2625 = vcmp.lt.s32.totalorder %v2624, 2
        %vm2626 = vcmp.eq.s32.totalorder %v2624, 0
        %v2627 = vxor.u32 %v2622, 2147483648
        %v2628 = vsel %vm2626, %v2614, %v2627
        %vm2629 = vcmp.eq.s32.totalorder %v2624, 2
        %v2630 = vxor.u32 %v2614, 2147483648
        %v2631 = vsel %vm2629, %v2630, %v2622
        %v2632 = vsel %vm2625, %v2628, %v2631
        %v2633 = vsel %vm2623, nan, %v2632
        %2634 = vst [vmem:[%s94] sm:$0xff] %v323
        %2635 = vst [vmem:[%s94 + $0x8] sm:$0xff] %v477
        %2636 = vst [vmem:[%s94 + $0x10] sm:$0xff] %v631
        %2637 = vst [vmem:[%s94 + $0x18] sm:$0xff] %v785
        %2638 = vst [vmem:[%s94 + $0x20] sm:$0xff] %v939
        %2639 = vst [vmem:[%s94 + $0x28] sm:$0xff] %v1093
        %2640 = vst [vmem:[%s94 + $0x30] sm:$0xff] %v1247
        %2641 = vst [vmem:[%s94 + $0x38] sm:$0xff] %v1401
        %2642 = vst [vmem:[%s94 + $0x40] sm:$0xff] %v1555
        %2643 = vst [vmem:[%s94 + $0x48] sm:$0xff] %v1709
        %2644 = vst [vmem:[%s94 + $0x50] sm:$0xff] %v1863
        %2645 = vst [vmem:[%s94 + $0x58] sm:$0xff] %v2017
        %2646 = vst [vmem:[%s94 + $0x60] sm:$0xff] %v2171
        %2647 = vst [vmem:[%s94 + $0x68] sm:$0xff] %v2325
        %2648 = vst [vmem:[%s94 + $0x70] sm:$0xff] %v2479
        %2649 = vst [vmem:[%s94 + $0x78] sm:$0xff] %v2633
        %v2650 = vand.u32 2147483647, %v154
        %vm2651 = vcmp.le.f32.partialorder %v2650, 0.7853982
        %vm2652 = vcmp.lt.s32.totalorder %v154, 0
        %v2653 = vand.u32 %v154, 2139095040
        %v2654 = vshrl.u32 %v2653, 23
        %v2655 = vsub.s32 %v2654, 127
        %v2656 = vand.u32 2147483647, %v154
        %v2657 = vand.u32 %v2656, 8388607
        %v2658 = vor.u32 %v2657, 8388608
        %v2659 = vsub.s32 0, %v2658
        %v2660 = vadd.s32 %v2655, 1
        %vm2661 = vcmp.gt.s32.totalorder %v2660, 0
        %v2662 = vsel %vm2661, %v2660, 0
        %v2663 = vshrl.u32 %v2662, 5
        %v2664 = vand.u32 %v2662, 31
        %v2665 = vsub.s32 32, %v2664
        %v2666 = vshrl.u32 683565275, %v2665
        %v2667 = vshll.u32 683565275, %v2664
        %v2668 = vshrl.u32 2475754826, %v2665
        %v2669 = vor.u32 %v2667, %v2668
        %v2670 = vshll.u32 2475754826, %v2664
        %v2671 = vshrl.u32 2131351028, %v2665
        %v2672 = vor.u32 %v2670, %v2671
        %v2673 = vshll.u32 2131351028, %v2664
        %v2674 = vshrl.u32 2102212464, %v2665
        %v2675 = vor.u32 %v2673, %v2674
        %v2676 = vshll.u32 2102212464, %v2664
        %v2677 = vshrl.u32 920167782, %v2665
        %v2678 = vor.u32 %v2676, %v2677
        %v2679 = vshll.u32 920167782, %v2664
        %v2680 = vshrl.u32 1326507024, %v2665
        %v2681 = vor.u32 %v2679, %v2680
        %vm2682 = vcmp.lt.s32.totalorder %v2663, 1
        %vm2683 = vcmp.lt.s32.totalorder %v2663, 2
        %vm2684 = vcmp.lt.s32.totalorder %v2663, 3
        %vm2685 = vcmp.lt.s32.totalorder %v2663, 4
        %v2686 = vsel %vm2682, %v2666, %v2669
        %v2687 = vsel %vm2685, %v2675, 2102212464
        %v2688 = vsel %vm2684, %v2672, %v2687
        %v2689 = vsel %vm2683, %v2686, %v2688
        %v2690 = vsel %vm2682, %v2669, %v2672
        %v2691 = vsel %vm2685, %v2678, 920167782
        %v2692 = vsel %vm2684, %v2675, %v2691
        %v2693 = vsel %vm2683, %v2690, %v2692
        %v2694 = vsel %vm2682, %v2672, %v2675
        %v2695 = vsel %vm2685, %v2681, 1326507024
        %v2696 = vsel %vm2684, %v2678, %v2695
        %v2697 = vsel %vm2683, %v2694, %v2696
        %v2698 = vshll.u32 %v2658, 8
        %v2699 = vand.u32 %v2698, 65535
        %v2700 = vshrl.u32 %v2698, 16
        %v2701 = vand.u32 %v2697, 65535
        %v2702 = vshrl.u32 %v2697, 16
        %v2703 = vmul.u32 %v2699, %v2701
        %v2704 = vmul.u32 %v2699, %v2702
        %v2705 = vmul.u32 %v2700, %v2701
        %v2706 = vmul.u32 %v2700, %v2702
        %v2707 = vshll.u32 %v2704, 16
        %v2708 = vshrl.u32 %v2704, 16
        %v2709 = vshll.u32 %v2705, 16
        %v2710 = vshrl.u32 %v2705, 16
        %vm2711 = vc.u32 %v2703, %v2707
        %v2712 = vsel %vm2711, 1, 0
        %v2713 = vadd.s32 %v2703, %v2707
        %v2714 = vadd.s32 %v2706, %v2712
        %vm2715 = vc.u32 %v2713, %v2709
        %v2716 = vsel %vm2715, 1, 0
        %v2717 = vadd.s32 %v2713, %v2709
        %v2718 = vadd.s32 %v2714, %v2716
        %v2719 = vadd.s32 %v2718, %v2708
        %v2720 = vadd.s32 %v2719, %v2710
        %v2721 = vand.u32 %v2698, 65535
        %v2722 = vshrl.u32 %v2698, 16
        %v2723 = vand.u32 %v2693, 65535
        %v2724 = vshrl.u32 %v2693, 16
        %v2725 = vmul.u32 %v2721, %v2723
        %v2726 = vmul.u32 %v2721, %v2724
        %v2727 = vmul.u32 %v2722, %v2723
        %v2728 = vmul.u32 %v2722, %v2724
        %v2729 = vshll.u32 %v2726, 16
        %v2730 = vshrl.u32 %v2726, 16
        %v2731 = vshll.u32 %v2727, 16
        %v2732 = vshrl.u32 %v2727, 16
        %vm2733 = vc.u32 %v2725, %v2729
        %v2734 = vsel %vm2733, 1, 0
        %v2735 = vadd.s32 %v2725, %v2729
        %v2736 = vadd.s32 %v2728, %v2734
        %vm2737 = vc.u32 %v2735, %v2731
        %v2738 = vsel %vm2737, 1, 0
        %v2739 = vadd.s32 %v2735, %v2731
        %v2740 = vadd.s32 %v2736, %v2738
        %v2741 = vadd.s32 %v2740, %v2730
        %v2742 = vadd.s32 %v2741, %v2732
        %v2743 = vmul.u32 %v2698, %v2689
        %v2744 = vadd.s32 %v2720, %v2739
        %vm2745 = vc.u32 %v2720, %v2739
        %v2746 = vadd.s32 %v2742, 1
        %v2747 = vsel %vm2745, %v2746, %v2742
        %v2748 = vadd.s32 %v2743, %v2747
        %v2749 = vadd.s32 %v2748, 536870912
        %v2750 = vshrl.u32 %v2749, 30
        %v2751 = vshll.u32 %v2750, 30
        %v2752 = vsub.s32 %v2748, %v2751
        %vm2753 = vcmp.lt.s32.totalorder %v2752, 0
        %v2754 = vsub.s32 0, %v2752
        %v2755 = vsel %vm2753, %v2754, %v2752
        %v2756 = vclz %v2755
        %v2757 = vsub.s32 %v2756, 2
        %vm2758 = vcmp.gt.s32.totalorder 0, %v2757
        %v2759 = vsel %vm2758, 0, %v2757
        %v2760 = vsub.s32 32, %v2759
        %v2761 = vshll.u32 %v2752, %v2759
        %v2762 = vshrl.u32 %v2744, %v2760
        %v2763 = vor.u32 %v2761, %v2762
        %v2764 = vsub.s32 4294967266, %v2759
        %v2765 = vadd.s32 %v2764, 127
        %v2766 = vshll.u32 %v2765, 23
        %v2767 = vor.u32 4788187, %v2766
        %v2768 = vand.u32 2147483647, %v2767
        %v2770 = vcvt.s32.f32 %v2763
        %v2771 = vmul.f32 %v2770, %v2768
        %v2772 = vxor.u32 %v2771, 2147483648
        %v2773 = vsel %vm2652, %v2772, %v2771
        %v2774 = vsub.s32 4, %v2750
        %v2775 = vsel %vm2652, %v2774, %v2750
        %v2776 = vsel %vm2651, %v154, %v2773
        %v2777 = vsel %vm2651, 0, %v2775
        %v2778 = vmul.f32 %v2776, %v2776
        %v2779 = vmul.f32 %v2778, -0.001358992
        %v2780 = vadd.f32 %v2779, 0.041655596
        %v2781 = vmul.f32 %v2778, %v2780
        %v2782 = vadd.f32 %v2781, -0.4999988
        %v2783 = vmul.f32 %v2778, %v2782
        %v2784 = vadd.f32 1.0, %v2783
        %v2785 = vmul.f32 %v2776, %v2776
        %v2786 = vmul.f32 %v2785, -0.00019511016
        %v2787 = vadd.f32 %v2786, 0.008332121
        %v2788 = vmul.f32 %v2785, %v2787
        %v2789 = vadd.f32 %v2788, -0.16666654
        %v2790 = vmul.f32 %v2785, %v2789
        %v2791 = vadd.f32 %v2790, 1.0
        %v2792 = vmul.f32 %v2791, %v2776
        %vm2793 = vweird.f32 %v154
        %v2794 = vadd.s32 %v2777, 3
        %v2795 = vand.u32 %v2794, 3
        %vm2796 = vcmp.lt.s32.totalorder %v2795, 2
        %vm2797 = vcmp.eq.s32.totalorder %v2795, 0
        %v2798 = vxor.u32 %v2792, 2147483648
        %v2799 = vsel %vm2797, %v2784, %v2798
        %vm2800 = vcmp.eq.s32.totalorder %v2795, 2
        %v2801 = vxor.u32 %v2784, 2147483648
        %v2802 = vsel %vm2800, %v2801, %v2792
        %v2803 = vsel %vm2796, %v2799, %v2802
        %v2804 = vsel %vm2793, nan, %v2803
        %v2805 = vand.u32 2147483647, %v155
        %vm2806 = vcmp.le.f32.partialorder %v2805, 0.7853982
        %vm2807 = vcmp.lt.s32.totalorder %v155, 0
        %v2808 = vand.u32 %v155, 2139095040
        %v2809 = vshrl.u32 %v2808, 23
        %v2810 = vsub.s32 %v2809, 127
        %v2811 = vand.u32 2147483647, %v155
        %v2812 = vand.u32 %v2811, 8388607
        %v2813 = vor.u32 %v2812, 8388608
        %v2814 = vsub.s32 0, %v2813
        %v2815 = vadd.s32 %v2810, 1
        %vm2816 = vcmp.gt.s32.totalorder %v2815, 0
        %v2817 = vsel %vm2816, %v2815, 0
        %v2818 = vshrl.u32 %v2817, 5
        %v2819 = vand.u32 %v2817, 31
        %v2820 = vsub.s32 32, %v2819
        %v2821 = vshrl.u32 683565275, %v2820
        %v2822 = vshll.u32 683565275, %v2819
        %v2823 = vshrl.u32 2475754826, %v2820
        %v2824 = vor.u32 %v2822, %v2823
        %v2825 = vshll.u32 2475754826, %v2819
        %v2826 = vshrl.u32 2131351028, %v2820
        %v2827 = vor.u32 %v2825, %v2826
        %v2828 = vshll.u32 2131351028, %v2819
        %v2829 = vshrl.u32 2102212464, %v2820
        %v2830 = vor.u32 %v2828, %v2829
        %v2831 = vshll.u32 2102212464, %v2819
        %v2832 = vshrl.u32 920167782, %v2820
        %v2833 = vor.u32 %v2831, %v2832
        %v2834 = vshll.u32 920167782, %v2819
        %v2835 = vshrl.u32 1326507024, %v2820
        %v2836 = vor.u32 %v2834, %v2835
        %vm2837 = vcmp.lt.s32.totalorder %v2818, 1
        %vm2838 = vcmp.lt.s32.totalorder %v2818, 2
        %vm2839 = vcmp.lt.s32.totalorder %v2818, 3
        %vm2840 = vcmp.lt.s32.totalorder %v2818, 4
        %v2841 = vsel %vm2837, %v2821, %v2824
        %v2842 = vsel %vm2840, %v2830, 2102212464
        %v2843 = vsel %vm2839, %v2827, %v2842
        %v2844 = vsel %vm2838, %v2841, %v2843
        %v2845 = vsel %vm2837, %v2824, %v2827
        %v2846 = vsel %vm2840, %v2833, 920167782
        %v2847 = vsel %vm2839, %v2830, %v2846
        %v2848 = vsel %vm2838, %v2845, %v2847
        %v2849 = vsel %vm2837, %v2827, %v2830
        %v2850 = vsel %vm2840, %v2836, 1326507024
        %v2851 = vsel %vm2839, %v2833, %v2850
        %v2852 = vsel %vm2838, %v2849, %v2851
        %v2853 = vshll.u32 %v2813, 8
        %v2854 = vand.u32 %v2853, 65535
        %v2855 = vshrl.u32 %v2853, 16
        %v2856 = vand.u32 %v2852, 65535
        %v2857 = vshrl.u32 %v2852, 16
        %v2858 = vmul.u32 %v2854, %v2856
        %v2859 = vmul.u32 %v2854, %v2857
        %v2860 = vmul.u32 %v2855, %v2856
        %v2861 = vmul.u32 %v2855, %v2857
        %v2862 = vshll.u32 %v2859, 16
        %v2863 = vshrl.u32 %v2859, 16
        %v2864 = vshll.u32 %v2860, 16
        %v2865 = vshrl.u32 %v2860, 16
        %vm2866 = vc.u32 %v2858, %v2862
        %v2867 = vsel %vm2866, 1, 0
        %v2868 = vadd.s32 %v2858, %v2862
        %v2869 = vadd.s32 %v2861, %v2867
        %vm2870 = vc.u32 %v2868, %v2864
        %v2871 = vsel %vm2870, 1, 0
        %v2872 = vadd.s32 %v2868, %v2864
        %v2873 = vadd.s32 %v2869, %v2871
        %v2874 = vadd.s32 %v2873, %v2863
        %v2875 = vadd.s32 %v2874, %v2865
        %v2876 = vand.u32 %v2853, 65535
        %v2877 = vshrl.u32 %v2853, 16
        %v2878 = vand.u32 %v2848, 65535
        %v2879 = vshrl.u32 %v2848, 16
        %v2880 = vmul.u32 %v2876, %v2878
        %v2881 = vmul.u32 %v2876, %v2879
        %v2882 = vmul.u32 %v2877, %v2878
        %v2883 = vmul.u32 %v2877, %v2879
        %v2884 = vshll.u32 %v2881, 16
        %v2885 = vshrl.u32 %v2881, 16
        %v2886 = vshll.u32 %v2882, 16
        %v2887 = vshrl.u32 %v2882, 16
        %vm2888 = vc.u32 %v2880, %v2884
        %v2889 = vsel %vm2888, 1, 0
        %v2890 = vadd.s32 %v2880, %v2884
        %v2891 = vadd.s32 %v2883, %v2889
        %vm2892 = vc.u32 %v2890, %v2886
        %v2893 = vsel %vm2892, 1, 0
        %v2894 = vadd.s32 %v2890, %v2886
        %v2895 = vadd.s32 %v2891, %v2893
        %v2896 = vadd.s32 %v2895, %v2885
        %v2897 = vadd.s32 %v2896, %v2887
        %v2898 = vmul.u32 %v2853, %v2844
        %v2899 = vadd.s32 %v2875, %v2894
        %vm2900 = vc.u32 %v2875, %v2894
        %v2901 = vadd.s32 %v2897, 1
        %v2902 = vsel %vm2900, %v2901, %v2897
        %v2903 = vadd.s32 %v2898, %v2902
        %v2904 = vadd.s32 %v2903, 536870912
        %v2905 = vshrl.u32 %v2904, 30
        %v2906 = vshll.u32 %v2905, 30
        %v2907 = vsub.s32 %v2903, %v2906
        %vm2908 = vcmp.lt.s32.totalorder %v2907, 0
        %v2909 = vsub.s32 0, %v2907
        %v2910 = vsel %vm2908, %v2909, %v2907
        %v2911 = vclz %v2910
        %v2912 = vsub.s32 %v2911, 2
        %vm2913 = vcmp.gt.s32.totalorder 0, %v2912
        %v2914 = vsel %vm2913, 0, %v2912
        %v2915 = vsub.s32 32, %v2914
        %v2916 = vshll.u32 %v2907, %v2914
        %v2917 = vshrl.u32 %v2899, %v2915
        %v2918 = vor.u32 %v2916, %v2917
        %v2919 = vsub.s32 4294967266, %v2914
        %v2920 = vadd.s32 %v2919, 127
        %v2921 = vshll.u32 %v2920, 23
        %v2922 = vor.u32 4788187, %v2921
        %v2923 = vand.u32 2147483647, %v2922
        %v2925 = vcvt.s32.f32 %v2918
        %v2926 = vmul.f32 %v2925, %v2923
        %v2927 = vxor.u32 %v2926, 2147483648
        %v2928 = vsel %vm2807, %v2927, %v2926
        %v2929 = vsub.s32 4, %v2905
        %v2930 = vsel %vm2807, %v2929, %v2905
        %v2931 = vsel %vm2806, %v155, %v2928
        %v2932 = vsel %vm2806, 0, %v2930
        %v2933 = vmul.f32 %v2931, %v2931
        %v2934 = vmul.f32 %v2933, -0.001358992
        %v2935 = vadd.f32 %v2934, 0.041655596
        %v2936 = vmul.f32 %v2933, %v2935
        %v2937 = vadd.f32 %v2936, -0.4999988
        %v2938 = vmul.f32 %v2933, %v2937
        %v2939 = vadd.f32 1.0, %v2938
        %v2940 = vmul.f32 %v2931, %v2931
        %v2941 = vmul.f32 %v2940, -0.00019511016
        %v2942 = vadd.f32 %v2941, 0.008332121
        %v2943 = vmul.f32 %v2940, %v2942
        %v2944 = vadd.f32 %v2943, -0.16666654
        %v2945 = vmul.f32 %v2940, %v2944
        %v2946 = vadd.f32 %v2945, 1.0
        %v2947 = vmul.f32 %v2946, %v2931
        %vm2948 = vweird.f32 %v155
        %v2949 = vadd.s32 %v2932, 3
        %v2950 = vand.u32 %v2949, 3
        %vm2951 = vcmp.lt.s32.totalorder %v2950, 2
        %vm2952 = vcmp.eq.s32.totalorder %v2950, 0
        %v2953 = vxor.u32 %v2947, 2147483648
        %v2954 = vsel %vm2952, %v2939, %v2953
        %vm2955 = vcmp.eq.s32.totalorder %v2950, 2
        %v2956 = vxor.u32 %v2939, 2147483648
        %v2957 = vsel %vm2955, %v2956, %v2947
        %v2958 = vsel %vm2951, %v2954, %v2957
        %v2959 = vsel %vm2948, nan, %v2958
        %v2960 = vand.u32 2147483647, %v156
        %vm2961 = vcmp.le.f32.partialorder %v2960, 0.7853982
        %vm2962 = vcmp.lt.s32.totalorder %v156, 0
        %v2963 = vand.u32 %v156, 2139095040
        %v2964 = vshrl.u32 %v2963, 23
        %v2965 = vsub.s32 %v2964, 127
        %v2966 = vand.u32 2147483647, %v156
        %v2967 = vand.u32 %v2966, 8388607
        %v2968 = vor.u32 %v2967, 8388608
        %v2969 = vsub.s32 0, %v2968
        %v2970 = vadd.s32 %v2965, 1
        %vm2971 = vcmp.gt.s32.totalorder %v2970, 0
        %v2972 = vsel %vm2971, %v2970, 0
        %v2973 = vshrl.u32 %v2972, 5
        %v2974 = vand.u32 %v2972, 31
        %v2975 = vsub.s32 32, %v2974
        %v2976 = vshrl.u32 683565275, %v2975
        %v2977 = vshll.u32 683565275, %v2974
        %v2978 = vshrl.u32 2475754826, %v2975
        %v2979 = vor.u32 %v2977, %v2978
        %v2980 = vshll.u32 2475754826, %v2974
        %v2981 = vshrl.u32 2131351028, %v2975
        %v2982 = vor.u32 %v2980, %v2981
        %v2983 = vshll.u32 2131351028, %v2974
        %v2984 = vshrl.u32 2102212464, %v2975
        %v2985 = vor.u32 %v2983, %v2984
        %v2986 = vshll.u32 2102212464, %v2974
        %v2987 = vshrl.u32 920167782, %v2975
        %v2988 = vor.u32 %v2986, %v2987
        %v2989 = vshll.u32 920167782, %v2974
        %v2990 = vshrl.u32 1326507024, %v2975
        %v2991 = vor.u32 %v2989, %v2990
        %vm2992 = vcmp.lt.s32.totalorder %v2973, 1
        %vm2993 = vcmp.lt.s32.totalorder %v2973, 2
        %vm2994 = vcmp.lt.s32.totalorder %v2973, 3
        %vm2995 = vcmp.lt.s32.totalorder %v2973, 4
        %v2996 = vsel %vm2992, %v2976, %v2979
        %v2997 = vsel %vm2995, %v2985, 2102212464
        %v2998 = vsel %vm2994, %v2982, %v2997
        %v2999 = vsel %vm2993, %v2996, %v2998
        %v3000 = vsel %vm2992, %v2979, %v2982
        %v3001 = vsel %vm2995, %v2988, 920167782
        %v3002 = vsel %vm2994, %v2985, %v3001
        %v3003 = vsel %vm2993, %v3000, %v3002
        %v3004 = vsel %vm2992, %v2982, %v2985
        %v3005 = vsel %vm2995, %v2991, 1326507024
        %v3006 = vsel %vm2994, %v2988, %v3005
        %v3007 = vsel %vm2993, %v3004, %v3006
        %v3008 = vshll.u32 %v2968, 8
        %v3009 = vand.u32 %v3008, 65535
        %v3010 = vshrl.u32 %v3008, 16
        %v3011 = vand.u32 %v3007, 65535
        %v3012 = vshrl.u32 %v3007, 16
        %v3013 = vmul.u32 %v3009, %v3011
        %v3014 = vmul.u32 %v3009, %v3012
        %v3015 = vmul.u32 %v3010, %v3011
        %v3016 = vmul.u32 %v3010, %v3012
        %v3017 = vshll.u32 %v3014, 16
        %v3018 = vshrl.u32 %v3014, 16
        %v3019 = vshll.u32 %v3015, 16
        %v3020 = vshrl.u32 %v3015, 16
        %vm3021 = vc.u32 %v3013, %v3017
        %v3022 = vsel %vm3021, 1, 0
        %v3023 = vadd.s32 %v3013, %v3017
        %v3024 = vadd.s32 %v3016, %v3022
        %vm3025 = vc.u32 %v3023, %v3019
        %v3026 = vsel %vm3025, 1, 0
        %v3027 = vadd.s32 %v3023, %v3019
        %v3028 = vadd.s32 %v3024, %v3026
        %v3029 = vadd.s32 %v3028, %v3018
        %v3030 = vadd.s32 %v3029, %v3020
        %v3031 = vand.u32 %v3008, 65535
        %v3032 = vshrl.u32 %v3008, 16
        %v3033 = vand.u32 %v3003, 65535
        %v3034 = vshrl.u32 %v3003, 16
        %v3035 = vmul.u32 %v3031, %v3033
        %v3036 = vmul.u32 %v3031, %v3034
        %v3037 = vmul.u32 %v3032, %v3033
        %v3038 = vmul.u32 %v3032, %v3034
        %v3039 = vshll.u32 %v3036, 16
        %v3040 = vshrl.u32 %v3036, 16
        %v3041 = vshll.u32 %v3037, 16
        %v3042 = vshrl.u32 %v3037, 16
        %vm3043 = vc.u32 %v3035, %v3039
        %v3044 = vsel %vm3043, 1, 0
        %v3045 = vadd.s32 %v3035, %v3039
        %v3046 = vadd.s32 %v3038, %v3044
        %vm3047 = vc.u32 %v3045, %v3041
        %v3048 = vsel %vm3047, 1, 0
        %v3049 = vadd.s32 %v3045, %v3041
        %v3050 = vadd.s32 %v3046, %v3048
        %v3051 = vadd.s32 %v3050, %v3040
        %v3052 = vadd.s32 %v3051, %v3042
        %v3053 = vmul.u32 %v3008, %v2999
        %v3054 = vadd.s32 %v3030, %v3049
        %vm3055 = vc.u32 %v3030, %v3049
        %v3056 = vadd.s32 %v3052, 1
        %v3057 = vsel %vm3055, %v3056, %v3052
        %v3058 = vadd.s32 %v3053, %v3057
        %v3059 = vadd.s32 %v3058, 536870912
        %v3060 = vshrl.u32 %v3059, 30
        %v3061 = vshll.u32 %v3060, 30
        %v3062 = vsub.s32 %v3058, %v3061
        %vm3063 = vcmp.lt.s32.totalorder %v3062, 0
        %v3064 = vsub.s32 0, %v3062
        %v3065 = vsel %vm3063, %v3064, %v3062
        %v3066 = vclz %v3065
        %v3067 = vsub.s32 %v3066, 2
        %vm3068 = vcmp.gt.s32.totalorder 0, %v3067
        %v3069 = vsel %vm3068, 0, %v3067
        %v3070 = vsub.s32 32, %v3069
        %v3071 = vshll.u32 %v3062, %v3069
        %v3072 = vshrl.u32 %v3054, %v3070
        %v3073 = vor.u32 %v3071, %v3072
        %v3074 = vsub.s32 4294967266, %v3069
        %v3075 = vadd.s32 %v3074, 127
        %v3076 = vshll.u32 %v3075, 23
        %v3077 = vor.u32 4788187, %v3076
        %v3078 = vand.u32 2147483647, %v3077
        %v3080 = vcvt.s32.f32 %v3073
        %v3081 = vmul.f32 %v3080, %v3078
        %v3082 = vxor.u32 %v3081, 2147483648
        %v3083 = vsel %vm2962, %v3082, %v3081
        %v3084 = vsub.s32 4, %v3060
        %v3085 = vsel %vm2962, %v3084, %v3060
        %v3086 = vsel %vm2961, %v156, %v3083
        %v3087 = vsel %vm2961, 0, %v3085
        %v3088 = vmul.f32 %v3086, %v3086
        %v3089 = vmul.f32 %v3088, -0.001358992
        %v3090 = vadd.f32 %v3089, 0.041655596
        %v3091 = vmul.f32 %v3088, %v3090
        %v3092 = vadd.f32 %v3091, -0.4999988
        %v3093 = vmul.f32 %v3088, %v3092
        %v3094 = vadd.f32 1.0, %v3093
        %v3095 = vmul.f32 %v3086, %v3086
        %v3096 = vmul.f32 %v3095, -0.00019511016
        %v3097 = vadd.f32 %v3096, 0.008332121
        %v3098 = vmul.f32 %v3095, %v3097
        %v3099 = vadd.f32 %v3098, -0.16666654
        %v3100 = vmul.f32 %v3095, %v3099
        %v3101 = vadd.f32 %v3100, 1.0
        %v3102 = vmul.f32 %v3101, %v3086
        %vm3103 = vweird.f32 %v156
        %v3104 = vadd.s32 %v3087, 3
        %v3105 = vand.u32 %v3104, 3
        %vm3106 = vcmp.lt.s32.totalorder %v3105, 2
        %vm3107 = vcmp.eq.s32.totalorder %v3105, 0
        %v3108 = vxor.u32 %v3102, 2147483648
        %v3109 = vsel %vm3107, %v3094, %v3108
        %vm3110 = vcmp.eq.s32.totalorder %v3105, 2
        %v3111 = vxor.u32 %v3094, 2147483648
        %v3112 = vsel %vm3110, %v3111, %v3102
        %v3113 = vsel %vm3106, %v3109, %v3112
        %v3114 = vsel %vm3103, nan, %v3113
        %v3115 = vand.u32 2147483647, %v157
        %vm3116 = vcmp.le.f32.partialorder %v3115, 0.7853982
        %vm3117 = vcmp.lt.s32.totalorder %v157, 0
        %v3118 = vand.u32 %v157, 2139095040
        %v3119 = vshrl.u32 %v3118, 23
        %v3120 = vsub.s32 %v3119, 127
        %v3121 = vand.u32 2147483647, %v157
        %v3122 = vand.u32 %v3121, 8388607
        %v3123 = vor.u32 %v3122, 8388608
        %v3124 = vsub.s32 0, %v3123
        %v3125 = vadd.s32 %v3120, 1
        %vm3126 = vcmp.gt.s32.totalorder %v3125, 0
        %v3127 = vsel %vm3126, %v3125, 0
        %v3128 = vshrl.u32 %v3127, 5
        %v3129 = vand.u32 %v3127, 31
        %v3130 = vsub.s32 32, %v3129
        %v3131 = vshrl.u32 683565275, %v3130
        %v3132 = vshll.u32 683565275, %v3129
        %v3133 = vshrl.u32 2475754826, %v3130
        %v3134 = vor.u32 %v3132, %v3133
        %v3135 = vshll.u32 2475754826, %v3129
        %v3136 = vshrl.u32 2131351028, %v3130
        %v3137 = vor.u32 %v3135, %v3136
        %v3138 = vshll.u32 2131351028, %v3129
        %v3139 = vshrl.u32 2102212464, %v3130
        %v3140 = vor.u32 %v3138, %v3139
        %v3141 = vshll.u32 2102212464, %v3129
        %v3142 = vshrl.u32 920167782, %v3130
        %v3143 = vor.u32 %v3141, %v3142
        %v3144 = vshll.u32 920167782, %v3129
        %v3145 = vshrl.u32 1326507024, %v3130
        %v3146 = vor.u32 %v3144, %v3145
        %vm3147 = vcmp.lt.s32.totalorder %v3128, 1
        %vm3148 = vcmp.lt.s32.totalorder %v3128, 2
        %vm3149 = vcmp.lt.s32.totalorder %v3128, 3
        %vm3150 = vcmp.lt.s32.totalorder %v3128, 4
        %v3151 = vsel %vm3147, %v3131, %v3134
        %v3152 = vsel %vm3150, %v3140, 2102212464
        %v3153 = vsel %vm3149, %v3137, %v3152
        %v3154 = vsel %vm3148, %v3151, %v3153
        %v3155 = vsel %vm3147, %v3134, %v3137
        %v3156 = vsel %vm3150, %v3143, 920167782
        %v3157 = vsel %vm3149, %v3140, %v3156
        %v3158 = vsel %vm3148, %v3155, %v3157
        %v3159 = vsel %vm3147, %v3137, %v3140
        %v3160 = vsel %vm3150, %v3146, 1326507024
        %v3161 = vsel %vm3149, %v3143, %v3160
        %v3162 = vsel %vm3148, %v3159, %v3161
        %v3163 = vshll.u32 %v3123, 8
        %v3164 = vand.u32 %v3163, 65535
        %v3165 = vshrl.u32 %v3163, 16
        %v3166 = vand.u32 %v3162, 65535
        %v3167 = vshrl.u32 %v3162, 16
        %v3168 = vmul.u32 %v3164, %v3166
        %v3169 = vmul.u32 %v3164, %v3167
        %v3170 = vmul.u32 %v3165, %v3166
        %v3171 = vmul.u32 %v3165, %v3167
        %v3172 = vshll.u32 %v3169, 16
        %v3173 = vshrl.u32 %v3169, 16
        %v3174 = vshll.u32 %v3170, 16
        %v3175 = vshrl.u32 %v3170, 16
        %vm3176 = vc.u32 %v3168, %v3172
        %v3177 = vsel %vm3176, 1, 0
        %v3178 = vadd.s32 %v3168, %v3172
        %v3179 = vadd.s32 %v3171, %v3177
        %vm3180 = vc.u32 %v3178, %v3174
        %v3181 = vsel %vm3180, 1, 0
        %v3182 = vadd.s32 %v3178, %v3174
        %v3183 = vadd.s32 %v3179, %v3181
        %v3184 = vadd.s32 %v3183, %v3173
        %v3185 = vadd.s32 %v3184, %v3175
        %v3186 = vand.u32 %v3163, 65535
        %v3187 = vshrl.u32 %v3163, 16
        %v3188 = vand.u32 %v3158, 65535
        %v3189 = vshrl.u32 %v3158, 16
        %v3190 = vmul.u32 %v3186, %v3188
        %v3191 = vmul.u32 %v3186, %v3189
        %v3192 = vmul.u32 %v3187, %v3188
        %v3193 = vmul.u32 %v3187, %v3189
        %v3194 = vshll.u32 %v3191, 16
        %v3195 = vshrl.u32 %v3191, 16
        %v3196 = vshll.u32 %v3192, 16
        %v3197 = vshrl.u32 %v3192, 16
        %vm3198 = vc.u32 %v3190, %v3194
        %v3199 = vsel %vm3198, 1, 0
        %v3200 = vadd.s32 %v3190, %v3194
        %v3201 = vadd.s32 %v3193, %v3199
        %vm3202 = vc.u32 %v3200, %v3196
        %v3203 = vsel %vm3202, 1, 0
        %v3204 = vadd.s32 %v3200, %v3196
        %v3205 = vadd.s32 %v3201, %v3203
        %v3206 = vadd.s32 %v3205, %v3195
        %v3207 = vadd.s32 %v3206, %v3197
        %v3208 = vmul.u32 %v3163, %v3154
        %v3209 = vadd.s32 %v3185, %v3204
        %vm3210 = vc.u32 %v3185, %v3204
        %v3211 = vadd.s32 %v3207, 1
        %v3212 = vsel %vm3210, %v3211, %v3207
        %v3213 = vadd.s32 %v3208, %v3212
        %v3214 = vadd.s32 %v3213, 536870912
        %v3215 = vshrl.u32 %v3214, 30
        %v3216 = vshll.u32 %v3215, 30
        %v3217 = vsub.s32 %v3213, %v3216
        %vm3218 = vcmp.lt.s32.totalorder %v3217, 0
        %v3219 = vsub.s32 0, %v3217
        %v3220 = vsel %vm3218, %v3219, %v3217
        %v3221 = vclz %v3220
        %v3222 = vsub.s32 %v3221, 2
        %vm3223 = vcmp.gt.s32.totalorder 0, %v3222
        %v3224 = vsel %vm3223, 0, %v3222
        %v3225 = vsub.s32 32, %v3224
        %v3226 = vshll.u32 %v3217, %v3224
        %v3227 = vshrl.u32 %v3209, %v3225
        %v3228 = vor.u32 %v3226, %v3227
        %v3229 = vsub.s32 4294967266, %v3224
        %v3230 = vadd.s32 %v3229, 127
        %v3231 = vshll.u32 %v3230, 23
        %v3232 = vor.u32 4788187, %v3231
        %v3233 = vand.u32 2147483647, %v3232
        %v3235 = vcvt.s32.f32 %v3228
        %v3236 = vmul.f32 %v3235, %v3233
        %v3237 = vxor.u32 %v3236, 2147483648
        %v3238 = vsel %vm3117, %v3237, %v3236
        %v3239 = vsub.s32 4, %v3215
        %v3240 = vsel %vm3117, %v3239, %v3215
        %v3241 = vsel %vm3116, %v157, %v3238
        %v3242 = vsel %vm3116, 0, %v3240
        %v3243 = vmul.f32 %v3241, %v3241
        %v3244 = vmul.f32 %v3243, -0.001358992
        %v3245 = vadd.f32 %v3244, 0.041655596
        %v3246 = vmul.f32 %v3243, %v3245
        %v3247 = vadd.f32 %v3246, -0.4999988
        %v3248 = vmul.f32 %v3243, %v3247
        %v3249 = vadd.f32 1.0, %v3248
        %v3250 = vmul.f32 %v3241, %v3241
        %v3251 = vmul.f32 %v3250, -0.00019511016
        %v3252 = vadd.f32 %v3251, 0.008332121
        %v3253 = vmul.f32 %v3250, %v3252
        %v3254 = vadd.f32 %v3253, -0.16666654
        %v3255 = vmul.f32 %v3250, %v3254
        %v3256 = vadd.f32 %v3255, 1.0
        %v3257 = vmul.f32 %v3256, %v3241
        %vm3258 = vweird.f32 %v157
        %v3259 = vadd.s32 %v3242, 3
        %v3260 = vand.u32 %v3259, 3
        %vm3261 = vcmp.lt.s32.totalorder %v3260, 2
        %vm3262 = vcmp.eq.s32.totalorder %v3260, 0
        %v3263 = vxor.u32 %v3257, 2147483648
        %v3264 = vsel %vm3262, %v3249, %v3263
        %vm3265 = vcmp.eq.s32.totalorder %v3260, 2
        %v3266 = vxor.u32 %v3249, 2147483648
        %v3267 = vsel %vm3265, %v3266, %v3257
        %v3268 = vsel %vm3261, %v3264, %v3267
        %v3269 = vsel %vm3258, nan, %v3268
        %v3270 = vand.u32 2147483647, %v158
        %vm3271 = vcmp.le.f32.partialorder %v3270, 0.7853982
        %vm3272 = vcmp.lt.s32.totalorder %v158, 0
        %v3273 = vand.u32 %v158, 2139095040
        %v3274 = vshrl.u32 %v3273, 23
        %v3275 = vsub.s32 %v3274, 127
        %v3276 = vand.u32 2147483647, %v158
        %v3277 = vand.u32 %v3276, 8388607
        %v3278 = vor.u32 %v3277, 8388608
        %v3279 = vsub.s32 0, %v3278
        %v3280 = vadd.s32 %v3275, 1
        %vm3281 = vcmp.gt.s32.totalorder %v3280, 0
        %v3282 = vsel %vm3281, %v3280, 0
        %v3283 = vshrl.u32 %v3282, 5
        %v3284 = vand.u32 %v3282, 31
        %v3285 = vsub.s32 32, %v3284
        %v3286 = vshrl.u32 683565275, %v3285
        %v3287 = vshll.u32 683565275, %v3284
        %v3288 = vshrl.u32 2475754826, %v3285
        %v3289 = vor.u32 %v3287, %v3288
        %v3290 = vshll.u32 2475754826, %v3284
        %v3291 = vshrl.u32 2131351028, %v3285
        %v3292 = vor.u32 %v3290, %v3291
        %v3293 = vshll.u32 2131351028, %v3284
        %v3294 = vshrl.u32 2102212464, %v3285
        %v3295 = vor.u32 %v3293, %v3294
        %v3296 = vshll.u32 2102212464, %v3284
        %v3297 = vshrl.u32 920167782, %v3285
        %v3298 = vor.u32 %v3296, %v3297
        %v3299 = vshll.u32 920167782, %v3284
        %v3300 = vshrl.u32 1326507024, %v3285
        %v3301 = vor.u32 %v3299, %v3300
        %vm3302 = vcmp.lt.s32.totalorder %v3283, 1
        %vm3303 = vcmp.lt.s32.totalorder %v3283, 2
        %vm3304 = vcmp.lt.s32.totalorder %v3283, 3
        %vm3305 = vcmp.lt.s32.totalorder %v3283, 4
        %v3306 = vsel %vm3302, %v3286, %v3289
        %v3307 = vsel %vm3305, %v3295, 2102212464
        %v3308 = vsel %vm3304, %v3292, %v3307
        %v3309 = vsel %vm3303, %v3306, %v3308
        %v3310 = vsel %vm3302, %v3289, %v3292
        %v3311 = vsel %vm3305, %v3298, 920167782
        %v3312 = vsel %vm3304, %v3295, %v3311
        %v3313 = vsel %vm3303, %v3310, %v3312
        %v3314 = vsel %vm3302, %v3292, %v3295
        %v3315 = vsel %vm3305, %v3301, 1326507024
        %v3316 = vsel %vm3304, %v3298, %v3315
        %v3317 = vsel %vm3303, %v3314, %v3316
        %v3318 = vshll.u32 %v3278, 8
        %v3319 = vand.u32 %v3318, 65535
        %v3320 = vshrl.u32 %v3318, 16
        %v3321 = vand.u32 %v3317, 65535
        %v3322 = vshrl.u32 %v3317, 16
        %v3323 = vmul.u32 %v3319, %v3321
        %v3324 = vmul.u32 %v3319, %v3322
        %v3325 = vmul.u32 %v3320, %v3321
        %v3326 = vmul.u32 %v3320, %v3322
        %v3327 = vshll.u32 %v3324, 16
        %v3328 = vshrl.u32 %v3324, 16
        %v3329 = vshll.u32 %v3325, 16
        %v3330 = vshrl.u32 %v3325, 16
        %vm3331 = vc.u32 %v3323, %v3327
        %v3332 = vsel %vm3331, 1, 0
        %v3333 = vadd.s32 %v3323, %v3327
        %v3334 = vadd.s32 %v3326, %v3332
        %vm3335 = vc.u32 %v3333, %v3329
        %v3336 = vsel %vm3335, 1, 0
        %v3337 = vadd.s32 %v3333, %v3329
        %v3338 = vadd.s32 %v3334, %v3336
        %v3339 = vadd.s32 %v3338, %v3328
        %v3340 = vadd.s32 %v3339, %v3330
        %v3341 = vand.u32 %v3318, 65535
        %v3342 = vshrl.u32 %v3318, 16
        %v3343 = vand.u32 %v3313, 65535
        %v3344 = vshrl.u32 %v3313, 16
        %v3345 = vmul.u32 %v3341, %v3343
        %v3346 = vmul.u32 %v3341, %v3344
        %v3347 = vmul.u32 %v3342, %v3343
        %v3348 = vmul.u32 %v3342, %v3344
        %v3349 = vshll.u32 %v3346, 16
        %v3350 = vshrl.u32 %v3346, 16
        %v3351 = vshll.u32 %v3347, 16
        %v3352 = vshrl.u32 %v3347, 16
        %vm3353 = vc.u32 %v3345, %v3349
        %v3354 = vsel %vm3353, 1, 0
        %v3355 = vadd.s32 %v3345, %v3349
        %v3356 = vadd.s32 %v3348, %v3354
        %vm3357 = vc.u32 %v3355, %v3351
        %v3358 = vsel %vm3357, 1, 0
        %v3359 = vadd.s32 %v3355, %v3351
        %v3360 = vadd.s32 %v3356, %v3358
        %v3361 = vadd.s32 %v3360, %v3350
        %v3362 = vadd.s32 %v3361, %v3352
        %v3363 = vmul.u32 %v3318, %v3309
        %v3364 = vadd.s32 %v3340, %v3359
        %vm3365 = vc.u32 %v3340, %v3359
        %v3366 = vadd.s32 %v3362, 1
        %v3367 = vsel %vm3365, %v3366, %v3362
        %v3368 = vadd.s32 %v3363, %v3367
        %v3369 = vadd.s32 %v3368, 536870912
        %v3370 = vshrl.u32 %v3369, 30
        %v3371 = vshll.u32 %v3370, 30
        %v3372 = vsub.s32 %v3368, %v3371
        %vm3373 = vcmp.lt.s32.totalorder %v3372, 0
        %v3374 = vsub.s32 0, %v3372
        %v3375 = vsel %vm3373, %v3374, %v3372
        %v3376 = vclz %v3375
        %v3377 = vsub.s32 %v3376, 2
        %vm3378 = vcmp.gt.s32.totalorder 0, %v3377
        %v3379 = vsel %vm3378, 0, %v3377
        %v3380 = vsub.s32 32, %v3379
        %v3381 = vshll.u32 %v3372, %v3379
        %v3382 = vshrl.u32 %v3364, %v3380
        %v3383 = vor.u32 %v3381, %v3382
        %v3384 = vsub.s32 4294967266, %v3379
        %v3385 = vadd.s32 %v3384, 127
        %v3386 = vshll.u32 %v3385, 23
        %v3387 = vor.u32 4788187, %v3386
        %v3388 = vand.u32 2147483647, %v3387
        %v3390 = vcvt.s32.f32 %v3383
        %v3391 = vmul.f32 %v3390, %v3388
        %v3392 = vxor.u32 %v3391, 2147483648
        %v3393 = vsel %vm3272, %v3392, %v3391
        %v3394 = vsub.s32 4, %v3370
        %v3395 = vsel %vm3272, %v3394, %v3370
        %v3396 = vsel %vm3271, %v158, %v3393
        %v3397 = vsel %vm3271, 0, %v3395
        %v3398 = vmul.f32 %v3396, %v3396
        %v3399 = vmul.f32 %v3398, -0.001358992
        %v3400 = vadd.f32 %v3399, 0.041655596
        %v3401 = vmul.f32 %v3398, %v3400
        %v3402 = vadd.f32 %v3401, -0.4999988
        %v3403 = vmul.f32 %v3398, %v3402
        %v3404 = vadd.f32 1.0, %v3403
        %v3405 = vmul.f32 %v3396, %v3396
        %v3406 = vmul.f32 %v3405, -0.00019511016
        %v3407 = vadd.f32 %v3406, 0.008332121
        %v3408 = vmul.f32 %v3405, %v3407
        %v3409 = vadd.f32 %v3408, -0.16666654
        %v3410 = vmul.f32 %v3405, %v3409
        %v3411 = vadd.f32 %v3410, 1.0
        %v3412 = vmul.f32 %v3411, %v3396
        %vm3413 = vweird.f32 %v158
        %v3414 = vadd.s32 %v3397, 3
        %v3415 = vand.u32 %v3414, 3
        %vm3416 = vcmp.lt.s32.totalorder %v3415, 2
        %vm3417 = vcmp.eq.s32.totalorder %v3415, 0
        %v3418 = vxor.u32 %v3412, 2147483648
        %v3419 = vsel %vm3417, %v3404, %v3418
        %vm3420 = vcmp.eq.s32.totalorder %v3415, 2
        %v3421 = vxor.u32 %v3404, 2147483648
        %v3422 = vsel %vm3420, %v3421, %v3412
        %v3423 = vsel %vm3416, %v3419, %v3422
        %v3424 = vsel %vm3413, nan, %v3423
        %v3425 = vand.u32 2147483647, %v159
        %vm3426 = vcmp.le.f32.partialorder %v3425, 0.7853982
        %vm3427 = vcmp.lt.s32.totalorder %v159, 0
        %v3428 = vand.u32 %v159, 2139095040
        %v3429 = vshrl.u32 %v3428, 23
        %v3430 = vsub.s32 %v3429, 127
        %v3431 = vand.u32 2147483647, %v159
        %v3432 = vand.u32 %v3431, 8388607
        %v3433 = vor.u32 %v3432, 8388608
        %v3434 = vsub.s32 0, %v3433
        %v3435 = vadd.s32 %v3430, 1
        %vm3436 = vcmp.gt.s32.totalorder %v3435, 0
        %v3437 = vsel %vm3436, %v3435, 0
        %v3438 = vshrl.u32 %v3437, 5
        %v3439 = vand.u32 %v3437, 31
        %v3440 = vsub.s32 32, %v3439
        %v3441 = vshrl.u32 683565275, %v3440
        %v3442 = vshll.u32 683565275, %v3439
        %v3443 = vshrl.u32 2475754826, %v3440
        %v3444 = vor.u32 %v3442, %v3443
        %v3445 = vshll.u32 2475754826, %v3439
        %v3446 = vshrl.u32 2131351028, %v3440
        %v3447 = vor.u32 %v3445, %v3446
        %v3448 = vshll.u32 2131351028, %v3439
        %v3449 = vshrl.u32 2102212464, %v3440
        %v3450 = vor.u32 %v3448, %v3449
        %v3451 = vshll.u32 2102212464, %v3439
        %v3452 = vshrl.u32 920167782, %v3440
        %v3453 = vor.u32 %v3451, %v3452
        %v3454 = vshll.u32 920167782, %v3439
        %v3455 = vshrl.u32 1326507024, %v3440
        %v3456 = vor.u32 %v3454, %v3455
        %vm3457 = vcmp.lt.s32.totalorder %v3438, 1
        %vm3458 = vcmp.lt.s32.totalorder %v3438, 2
        %vm3459 = vcmp.lt.s32.totalorder %v3438, 3
        %vm3460 = vcmp.lt.s32.totalorder %v3438, 4
        %v3461 = vsel %vm3457, %v3441, %v3444
        %v3462 = vsel %vm3460, %v3450, 2102212464
        %v3463 = vsel %vm3459, %v3447, %v3462
        %v3464 = vsel %vm3458, %v3461, %v3463
        %v3465 = vsel %vm3457, %v3444, %v3447
        %v3466 = vsel %vm3460, %v3453, 920167782
        %v3467 = vsel %vm3459, %v3450, %v3466
        %v3468 = vsel %vm3458, %v3465, %v3467
        %v3469 = vsel %vm3457, %v3447, %v3450
        %v3470 = vsel %vm3460, %v3456, 1326507024
        %v3471 = vsel %vm3459, %v3453, %v3470
        %v3472 = vsel %vm3458, %v3469, %v3471
        %v3473 = vshll.u32 %v3433, 8
        %v3474 = vand.u32 %v3473, 65535
        %v3475 = vshrl.u32 %v3473, 16
        %v3476 = vand.u32 %v3472, 65535
        %v3477 = vshrl.u32 %v3472, 16
        %v3478 = vmul.u32 %v3474, %v3476
        %v3479 = vmul.u32 %v3474, %v3477
        %v3480 = vmul.u32 %v3475, %v3476
        %v3481 = vmul.u32 %v3475, %v3477
        %v3482 = vshll.u32 %v3479, 16
        %v3483 = vshrl.u32 %v3479, 16
        %v3484 = vshll.u32 %v3480, 16
        %v3485 = vshrl.u32 %v3480, 16
        %vm3486 = vc.u32 %v3478, %v3482
        %v3487 = vsel %vm3486, 1, 0
        %v3488 = vadd.s32 %v3478, %v3482
        %v3489 = vadd.s32 %v3481, %v3487
        %vm3490 = vc.u32 %v3488, %v3484
        %v3491 = vsel %vm3490, 1, 0
        %v3492 = vadd.s32 %v3488, %v3484
        %v3493 = vadd.s32 %v3489, %v3491
        %v3494 = vadd.s32 %v3493, %v3483
        %v3495 = vadd.s32 %v3494, %v3485
        %v3496 = vand.u32 %v3473, 65535
        %v3497 = vshrl.u32 %v3473, 16
        %v3498 = vand.u32 %v3468, 65535
        %v3499 = vshrl.u32 %v3468, 16
        %v3500 = vmul.u32 %v3496, %v3498
        %v3501 = vmul.u32 %v3496, %v3499
        %v3502 = vmul.u32 %v3497, %v3498
        %v3503 = vmul.u32 %v3497, %v3499
        %v3504 = vshll.u32 %v3501, 16
        %v3505 = vshrl.u32 %v3501, 16
        %v3506 = vshll.u32 %v3502, 16
        %v3507 = vshrl.u32 %v3502, 16
        %vm3508 = vc.u32 %v3500, %v3504
        %v3509 = vsel %vm3508, 1, 0
        %v3510 = vadd.s32 %v3500, %v3504
        %v3511 = vadd.s32 %v3503, %v3509
        %vm3512 = vc.u32 %v3510, %v3506
        %v3513 = vsel %vm3512, 1, 0
        %v3514 = vadd.s32 %v3510, %v3506
        %v3515 = vadd.s32 %v3511, %v3513
        %v3516 = vadd.s32 %v3515, %v3505
        %v3517 = vadd.s32 %v3516, %v3507
        %v3518 = vmul.u32 %v3473, %v3464
        %v3519 = vadd.s32 %v3495, %v3514
        %vm3520 = vc.u32 %v3495, %v3514
        %v3521 = vadd.s32 %v3517, 1
        %v3522 = vsel %vm3520, %v3521, %v3517
        %v3523 = vadd.s32 %v3518, %v3522
        %v3524 = vadd.s32 %v3523, 536870912
        %v3525 = vshrl.u32 %v3524, 30
        %v3526 = vshll.u32 %v3525, 30
        %v3527 = vsub.s32 %v3523, %v3526
        %vm3528 = vcmp.lt.s32.totalorder %v3527, 0
        %v3529 = vsub.s32 0, %v3527
        %v3530 = vsel %vm3528, %v3529, %v3527
        %v3531 = vclz %v3530
        %v3532 = vsub.s32 %v3531, 2
        %vm3533 = vcmp.gt.s32.totalorder 0, %v3532
        %v3534 = vsel %vm3533, 0, %v3532
        %v3535 = vsub.s32 32, %v3534
        %v3536 = vshll.u32 %v3527, %v3534
        %v3537 = vshrl.u32 %v3519, %v3535
        %v3538 = vor.u32 %v3536, %v3537
        %v3539 = vsub.s32 4294967266, %v3534
        %v3540 = vadd.s32 %v3539, 127
        %v3541 = vshll.u32 %v3540, 23
        %v3542 = vor.u32 4788187, %v3541
        %v3543 = vand.u32 2147483647, %v3542
        %v3545 = vcvt.s32.f32 %v3538
        %v3546 = vmul.f32 %v3545, %v3543
        %v3547 = vxor.u32 %v3546, 2147483648
        %v3548 = vsel %vm3427, %v3547, %v3546
        %v3549 = vsub.s32 4, %v3525
        %v3550 = vsel %vm3427, %v3549, %v3525
        %v3551 = vsel %vm3426, %v159, %v3548
        %v3552 = vsel %vm3426, 0, %v3550
        %v3553 = vmul.f32 %v3551, %v3551
        %v3554 = vmul.f32 %v3553, -0.001358992
        %v3555 = vadd.f32 %v3554, 0.041655596
        %v3556 = vmul.f32 %v3553, %v3555
        %v3557 = vadd.f32 %v3556, -0.4999988
        %v3558 = vmul.f32 %v3553, %v3557
        %v3559 = vadd.f32 1.0, %v3558
        %v3560 = vmul.f32 %v3551, %v3551
        %v3561 = vmul.f32 %v3560, -0.00019511016
        %v3562 = vadd.f32 %v3561, 0.008332121
        %v3563 = vmul.f32 %v3560, %v3562
        %v3564 = vadd.f32 %v3563, -0.16666654
        %v3565 = vmul.f32 %v3560, %v3564
        %v3566 = vadd.f32 %v3565, 1.0
        %v3567 = vmul.f32 %v3566, %v3551
        %vm3568 = vweird.f32 %v159
        %v3569 = vadd.s32 %v3552, 3
        %v3570 = vand.u32 %v3569, 3
        %vm3571 = vcmp.lt.s32.totalorder %v3570, 2
        %vm3572 = vcmp.eq.s32.totalorder %v3570, 0
        %v3573 = vxor.u32 %v3567, 2147483648
        %v3574 = vsel %vm3572, %v3559, %v3573
        %vm3575 = vcmp.eq.s32.totalorder %v3570, 2
        %v3576 = vxor.u32 %v3559, 2147483648
        %v3577 = vsel %vm3575, %v3576, %v3567
        %v3578 = vsel %vm3571, %v3574, %v3577
        %v3579 = vsel %vm3568, nan, %v3578
        %v3580 = vand.u32 2147483647, %v160
        %vm3581 = vcmp.le.f32.partialorder %v3580, 0.7853982
        %vm3582 = vcmp.lt.s32.totalorder %v160, 0
        %v3583 = vand.u32 %v160, 2139095040
        %v3584 = vshrl.u32 %v3583, 23
        %v3585 = vsub.s32 %v3584, 127
        %v3586 = vand.u32 2147483647, %v160
        %v3587 = vand.u32 %v3586, 8388607
        %v3588 = vor.u32 %v3587, 8388608
        %v3589 = vsub.s32 0, %v3588
        %v3590 = vadd.s32 %v3585, 1
        %vm3591 = vcmp.gt.s32.totalorder %v3590, 0
        %v3592 = vsel %vm3591, %v3590, 0
        %v3593 = vshrl.u32 %v3592, 5
        %v3594 = vand.u32 %v3592, 31
        %v3595 = vsub.s32 32, %v3594
        %v3596 = vshrl.u32 683565275, %v3595
        %v3597 = vshll.u32 683565275, %v3594
        %v3598 = vshrl.u32 2475754826, %v3595
        %v3599 = vor.u32 %v3597, %v3598
        %v3600 = vshll.u32 2475754826, %v3594
        %v3601 = vshrl.u32 2131351028, %v3595
        %v3602 = vor.u32 %v3600, %v3601
        %v3603 = vshll.u32 2131351028, %v3594
        %v3604 = vshrl.u32 2102212464, %v3595
        %v3605 = vor.u32 %v3603, %v3604
        %v3606 = vshll.u32 2102212464, %v3594
        %v3607 = vshrl.u32 920167782, %v3595
        %v3608 = vor.u32 %v3606, %v3607
        %v3609 = vshll.u32 920167782, %v3594
        %v3610 = vshrl.u32 1326507024, %v3595
        %v3611 = vor.u32 %v3609, %v3610
        %vm3612 = vcmp.lt.s32.totalorder %v3593, 1
        %vm3613 = vcmp.lt.s32.totalorder %v3593, 2
        %vm3614 = vcmp.lt.s32.totalorder %v3593, 3
        %vm3615 = vcmp.lt.s32.totalorder %v3593, 4
        %v3616 = vsel %vm3612, %v3596, %v3599
        %v3617 = vsel %vm3615, %v3605, 2102212464
        %v3618 = vsel %vm3614, %v3602, %v3617
        %v3619 = vsel %vm3613, %v3616, %v3618
        %v3620 = vsel %vm3612, %v3599, %v3602
        %v3621 = vsel %vm3615, %v3608, 920167782
        %v3622 = vsel %vm3614, %v3605, %v3621
        %v3623 = vsel %vm3613, %v3620, %v3622
        %v3624 = vsel %vm3612, %v3602, %v3605
        %v3625 = vsel %vm3615, %v3611, 1326507024
        %v3626 = vsel %vm3614, %v3608, %v3625
        %v3627 = vsel %vm3613, %v3624, %v3626
        %v3628 = vshll.u32 %v3588, 8
        %v3629 = vand.u32 %v3628, 65535
        %v3630 = vshrl.u32 %v3628, 16
        %v3631 = vand.u32 %v3627, 65535
        %v3632 = vshrl.u32 %v3627, 16
        %v3633 = vmul.u32 %v3629, %v3631
        %v3634 = vmul.u32 %v3629, %v3632
        %v3635 = vmul.u32 %v3630, %v3631
        %v3636 = vmul.u32 %v3630, %v3632
        %v3637 = vshll.u32 %v3634, 16
        %v3638 = vshrl.u32 %v3634, 16
        %v3639 = vshll.u32 %v3635, 16
        %v3640 = vshrl.u32 %v3635, 16
        %vm3641 = vc.u32 %v3633, %v3637
        %v3642 = vsel %vm3641, 1, 0
        %v3643 = vadd.s32 %v3633, %v3637
        %v3644 = vadd.s32 %v3636, %v3642
        %vm3645 = vc.u32 %v3643, %v3639
        %v3646 = vsel %vm3645, 1, 0
        %v3647 = vadd.s32 %v3643, %v3639
        %v3648 = vadd.s32 %v3644, %v3646
        %v3649 = vadd.s32 %v3648, %v3638
        %v3650 = vadd.s32 %v3649, %v3640
        %v3651 = vand.u32 %v3628, 65535
        %v3652 = vshrl.u32 %v3628, 16
        %v3653 = vand.u32 %v3623, 65535
        %v3654 = vshrl.u32 %v3623, 16
        %v3655 = vmul.u32 %v3651, %v3653
        %v3656 = vmul.u32 %v3651, %v3654
        %v3657 = vmul.u32 %v3652, %v3653
        %v3658 = vmul.u32 %v3652, %v3654
        %v3659 = vshll.u32 %v3656, 16
        %v3660 = vshrl.u32 %v3656, 16
        %v3661 = vshll.u32 %v3657, 16
        %v3662 = vshrl.u32 %v3657, 16
        %vm3663 = vc.u32 %v3655, %v3659
        %v3664 = vsel %vm3663, 1, 0
        %v3665 = vadd.s32 %v3655, %v3659
        %v3666 = vadd.s32 %v3658, %v3664
        %vm3667 = vc.u32 %v3665, %v3661
        %v3668 = vsel %vm3667, 1, 0
        %v3669 = vadd.s32 %v3665, %v3661
        %v3670 = vadd.s32 %v3666, %v3668
        %v3671 = vadd.s32 %v3670, %v3660
        %v3672 = vadd.s32 %v3671, %v3662
        %v3673 = vmul.u32 %v3628, %v3619
        %v3674 = vadd.s32 %v3650, %v3669
        %vm3675 = vc.u32 %v3650, %v3669
        %v3676 = vadd.s32 %v3672, 1
        %v3677 = vsel %vm3675, %v3676, %v3672
        %v3678 = vadd.s32 %v3673, %v3677
        %v3679 = vadd.s32 %v3678, 536870912
        %v3680 = vshrl.u32 %v3679, 30
        %v3681 = vshll.u32 %v3680, 30
        %v3682 = vsub.s32 %v3678, %v3681
        %vm3683 = vcmp.lt.s32.totalorder %v3682, 0
        %v3684 = vsub.s32 0, %v3682
        %v3685 = vsel %vm3683, %v3684, %v3682
        %v3686 = vclz %v3685
        %v3687 = vsub.s32 %v3686, 2
        %vm3688 = vcmp.gt.s32.totalorder 0, %v3687
        %v3689 = vsel %vm3688, 0, %v3687
        %v3690 = vsub.s32 32, %v3689
        %v3691 = vshll.u32 %v3682, %v3689
        %v3692 = vshrl.u32 %v3674, %v3690
        %v3693 = vor.u32 %v3691, %v3692
        %v3694 = vsub.s32 4294967266, %v3689
        %v3695 = vadd.s32 %v3694, 127
        %v3696 = vshll.u32 %v3695, 23
        %v3697 = vor.u32 4788187, %v3696
        %v3698 = vand.u32 2147483647, %v3697
        %v3700 = vcvt.s32.f32 %v3693
        %v3701 = vmul.f32 %v3700, %v3698
        %v3702 = vxor.u32 %v3701, 2147483648
        %v3703 = vsel %vm3582, %v3702, %v3701
        %v3704 = vsub.s32 4, %v3680
        %v3705 = vsel %vm3582, %v3704, %v3680
        %v3706 = vsel %vm3581, %v160, %v3703
        %v3707 = vsel %vm3581, 0, %v3705
        %v3708 = vmul.f32 %v3706, %v3706
        %v3709 = vmul.f32 %v3708, -0.001358992
        %v3710 = vadd.f32 %v3709, 0.041655596
        %v3711 = vmul.f32 %v3708, %v3710
        %v3712 = vadd.f32 %v3711, -0.4999988
        %v3713 = vmul.f32 %v3708, %v3712
        %v3714 = vadd.f32 1.0, %v3713
        %v3715 = vmul.f32 %v3706, %v3706
        %v3716 = vmul.f32 %v3715, -0.00019511016
        %v3717 = vadd.f32 %v3716, 0.008332121
        %v3718 = vmul.f32 %v3715, %v3717
        %v3719 = vadd.f32 %v3718, -0.16666654
        %v3720 = vmul.f32 %v3715, %v3719
        %v3721 = vadd.f32 %v3720, 1.0
        %v3722 = vmul.f32 %v3721, %v3706
        %vm3723 = vweird.f32 %v160
        %v3724 = vadd.s32 %v3707, 3
        %v3725 = vand.u32 %v3724, 3
        %vm3726 = vcmp.lt.s32.totalorder %v3725, 2
        %vm3727 = vcmp.eq.s32.totalorder %v3725, 0
        %v3728 = vxor.u32 %v3722, 2147483648
        %v3729 = vsel %vm3727, %v3714, %v3728
        %vm3730 = vcmp.eq.s32.totalorder %v3725, 2
        %v3731 = vxor.u32 %v3714, 2147483648
        %v3732 = vsel %vm3730, %v3731, %v3722
        %v3733 = vsel %vm3726, %v3729, %v3732
        %v3734 = vsel %vm3723, nan, %v3733
        %v3735 = vand.u32 2147483647, %v161
        %vm3736 = vcmp.le.f32.partialorder %v3735, 0.7853982
        %vm3737 = vcmp.lt.s32.totalorder %v161, 0
        %v3738 = vand.u32 %v161, 2139095040
        %v3739 = vshrl.u32 %v3738, 23
        %v3740 = vsub.s32 %v3739, 127
        %v3741 = vand.u32 2147483647, %v161
        %v3742 = vand.u32 %v3741, 8388607
        %v3743 = vor.u32 %v3742, 8388608
        %v3744 = vsub.s32 0, %v3743
        %v3745 = vadd.s32 %v3740, 1
        %vm3746 = vcmp.gt.s32.totalorder %v3745, 0
        %v3747 = vsel %vm3746, %v3745, 0
        %v3748 = vshrl.u32 %v3747, 5
        %v3749 = vand.u32 %v3747, 31
        %v3750 = vsub.s32 32, %v3749
        %v3751 = vshrl.u32 683565275, %v3750
        %v3752 = vshll.u32 683565275, %v3749
        %v3753 = vshrl.u32 2475754826, %v3750
        %v3754 = vor.u32 %v3752, %v3753
        %v3755 = vshll.u32 2475754826, %v3749
        %v3756 = vshrl.u32 2131351028, %v3750
        %v3757 = vor.u32 %v3755, %v3756
        %v3758 = vshll.u32 2131351028, %v3749
        %v3759 = vshrl.u32 2102212464, %v3750
        %v3760 = vor.u32 %v3758, %v3759
        %v3761 = vshll.u32 2102212464, %v3749
        %v3762 = vshrl.u32 920167782, %v3750
        %v3763 = vor.u32 %v3761, %v3762
        %v3764 = vshll.u32 920167782, %v3749
        %v3765 = vshrl.u32 1326507024, %v3750
        %v3766 = vor.u32 %v3764, %v3765
        %vm3767 = vcmp.lt.s32.totalorder %v3748, 1
        %vm3768 = vcmp.lt.s32.totalorder %v3748, 2
        %vm3769 = vcmp.lt.s32.totalorder %v3748, 3
        %vm3770 = vcmp.lt.s32.totalorder %v3748, 4
        %v3771 = vsel %vm3767, %v3751, %v3754
        %v3772 = vsel %vm3770, %v3760, 2102212464
        %v3773 = vsel %vm3769, %v3757, %v3772
        %v3774 = vsel %vm3768, %v3771, %v3773
        %v3775 = vsel %vm3767, %v3754, %v3757
        %v3776 = vsel %vm3770, %v3763, 920167782
        %v3777 = vsel %vm3769, %v3760, %v3776
        %v3778 = vsel %vm3768, %v3775, %v3777
        %v3779 = vsel %vm3767, %v3757, %v3760
        %v3780 = vsel %vm3770, %v3766, 1326507024
        %v3781 = vsel %vm3769, %v3763, %v3780
        %v3782 = vsel %vm3768, %v3779, %v3781
        %v3783 = vshll.u32 %v3743, 8
        %v3784 = vand.u32 %v3783, 65535
        %v3785 = vshrl.u32 %v3783, 16
        %v3786 = vand.u32 %v3782, 65535
        %v3787 = vshrl.u32 %v3782, 16
        %v3788 = vmul.u32 %v3784, %v3786
        %v3789 = vmul.u32 %v3784, %v3787
        %v3790 = vmul.u32 %v3785, %v3786
        %v3791 = vmul.u32 %v3785, %v3787
        %v3792 = vshll.u32 %v3789, 16
        %v3793 = vshrl.u32 %v3789, 16
        %v3794 = vshll.u32 %v3790, 16
        %v3795 = vshrl.u32 %v3790, 16
        %vm3796 = vc.u32 %v3788, %v3792
        %v3797 = vsel %vm3796, 1, 0
        %v3798 = vadd.s32 %v3788, %v3792
        %v3799 = vadd.s32 %v3791, %v3797
        %vm3800 = vc.u32 %v3798, %v3794
        %v3801 = vsel %vm3800, 1, 0
        %v3802 = vadd.s32 %v3798, %v3794
        %v3803 = vadd.s32 %v3799, %v3801
        %v3804 = vadd.s32 %v3803, %v3793
        %v3805 = vadd.s32 %v3804, %v3795
        %v3806 = vand.u32 %v3783, 65535
        %v3807 = vshrl.u32 %v3783, 16
        %v3808 = vand.u32 %v3778, 65535
        %v3809 = vshrl.u32 %v3778, 16
        %v3810 = vmul.u32 %v3806, %v3808
        %v3811 = vmul.u32 %v3806, %v3809
        %v3812 = vmul.u32 %v3807, %v3808
        %v3813 = vmul.u32 %v3807, %v3809
        %v3814 = vshll.u32 %v3811, 16
        %v3815 = vshrl.u32 %v3811, 16
        %v3816 = vshll.u32 %v3812, 16
        %v3817 = vshrl.u32 %v3812, 16
        %vm3818 = vc.u32 %v3810, %v3814
        %v3819 = vsel %vm3818, 1, 0
        %v3820 = vadd.s32 %v3810, %v3814
        %v3821 = vadd.s32 %v3813, %v3819
        %vm3822 = vc.u32 %v3820, %v3816
        %v3823 = vsel %vm3822, 1, 0
        %v3824 = vadd.s32 %v3820, %v3816
        %v3825 = vadd.s32 %v3821, %v3823
        %v3826 = vadd.s32 %v3825, %v3815
        %v3827 = vadd.s32 %v3826, %v3817
        %v3828 = vmul.u32 %v3783, %v3774
        %v3829 = vadd.s32 %v3805, %v3824
        %vm3830 = vc.u32 %v3805, %v3824
        %v3831 = vadd.s32 %v3827, 1
        %v3832 = vsel %vm3830, %v3831, %v3827
        %v3833 = vadd.s32 %v3828, %v3832
        %v3834 = vadd.s32 %v3833, 536870912
        %v3835 = vshrl.u32 %v3834, 30
        %v3836 = vshll.u32 %v3835, 30
        %v3837 = vsub.s32 %v3833, %v3836
        %vm3838 = vcmp.lt.s32.totalorder %v3837, 0
        %v3839 = vsub.s32 0, %v3837
        %v3840 = vsel %vm3838, %v3839, %v3837
        %v3841 = vclz %v3840
        %v3842 = vsub.s32 %v3841, 2
        %vm3843 = vcmp.gt.s32.totalorder 0, %v3842
        %v3844 = vsel %vm3843, 0, %v3842
        %v3845 = vsub.s32 32, %v3844
        %v3846 = vshll.u32 %v3837, %v3844
        %v3847 = vshrl.u32 %v3829, %v3845
        %v3848 = vor.u32 %v3846, %v3847
        %v3849 = vsub.s32 4294967266, %v3844
        %v3850 = vadd.s32 %v3849, 127
        %v3851 = vshll.u32 %v3850, 23
        %v3852 = vor.u32 4788187, %v3851
        %v3853 = vand.u32 2147483647, %v3852
        %v3855 = vcvt.s32.f32 %v3848
        %v3856 = vmul.f32 %v3855, %v3853
        %v3857 = vxor.u32 %v3856, 2147483648
        %v3858 = vsel %vm3737, %v3857, %v3856
        %v3859 = vsub.s32 4, %v3835
        %v3860 = vsel %vm3737, %v3859, %v3835
        %v3861 = vsel %vm3736, %v161, %v3858
        %v3862 = vsel %vm3736, 0, %v3860
        %v3863 = vmul.f32 %v3861, %v3861
        %v3864 = vmul.f32 %v3863, -0.001358992
        %v3865 = vadd.f32 %v3864, 0.041655596
        %v3866 = vmul.f32 %v3863, %v3865
        %v3867 = vadd.f32 %v3866, -0.4999988
        %v3868 = vmul.f32 %v3863, %v3867
        %v3869 = vadd.f32 1.0, %v3868
        %v3870 = vmul.f32 %v3861, %v3861
        %v3871 = vmul.f32 %v3870, -0.00019511016
        %v3872 = vadd.f32 %v3871, 0.008332121
        %v3873 = vmul.f32 %v3870, %v3872
        %v3874 = vadd.f32 %v3873, -0.16666654
        %v3875 = vmul.f32 %v3870, %v3874
        %v3876 = vadd.f32 %v3875, 1.0
        %v3877 = vmul.f32 %v3876, %v3861
        %vm3878 = vweird.f32 %v161
        %v3879 = vadd.s32 %v3862, 3
        %v3880 = vand.u32 %v3879, 3
        %vm3881 = vcmp.lt.s32.totalorder %v3880, 2
        %vm3882 = vcmp.eq.s32.totalorder %v3880, 0
        %v3883 = vxor.u32 %v3877, 2147483648
        %v3884 = vsel %vm3882, %v3869, %v3883
        %vm3885 = vcmp.eq.s32.totalorder %v3880, 2
        %v3886 = vxor.u32 %v3869, 2147483648
        %v3887 = vsel %vm3885, %v3886, %v3877
        %v3888 = vsel %vm3881, %v3884, %v3887
        %v3889 = vsel %vm3878, nan, %v3888
        %v3890 = vand.u32 2147483647, %v162
        %vm3891 = vcmp.le.f32.partialorder %v3890, 0.7853982
        %vm3892 = vcmp.lt.s32.totalorder %v162, 0
        %v3893 = vand.u32 %v162, 2139095040
        %v3894 = vshrl.u32 %v3893, 23
        %v3895 = vsub.s32 %v3894, 127
        %v3896 = vand.u32 2147483647, %v162
        %v3897 = vand.u32 %v3896, 8388607
        %v3898 = vor.u32 %v3897, 8388608
        %v3899 = vsub.s32 0, %v3898
        %v3900 = vadd.s32 %v3895, 1
        %vm3901 = vcmp.gt.s32.totalorder %v3900, 0
        %v3902 = vsel %vm3901, %v3900, 0
        %v3903 = vshrl.u32 %v3902, 5
        %v3904 = vand.u32 %v3902, 31
        %v3905 = vsub.s32 32, %v3904
        %v3906 = vshrl.u32 683565275, %v3905
        %v3907 = vshll.u32 683565275, %v3904
        %v3908 = vshrl.u32 2475754826, %v3905
        %v3909 = vor.u32 %v3907, %v3908
        %v3910 = vshll.u32 2475754826, %v3904
        %v3911 = vshrl.u32 2131351028, %v3905
        %v3912 = vor.u32 %v3910, %v3911
        %v3913 = vshll.u32 2131351028, %v3904
        %v3914 = vshrl.u32 2102212464, %v3905
        %v3915 = vor.u32 %v3913, %v3914
        %v3916 = vshll.u32 2102212464, %v3904
        %v3917 = vshrl.u32 920167782, %v3905
        %v3918 = vor.u32 %v3916, %v3917
        %v3919 = vshll.u32 920167782, %v3904
        %v3920 = vshrl.u32 1326507024, %v3905
        %v3921 = vor.u32 %v3919, %v3920
        %vm3922 = vcmp.lt.s32.totalorder %v3903, 1
        %vm3923 = vcmp.lt.s32.totalorder %v3903, 2
        %vm3924 = vcmp.lt.s32.totalorder %v3903, 3
        %vm3925 = vcmp.lt.s32.totalorder %v3903, 4
        %v3926 = vsel %vm3922, %v3906, %v3909
        %v3927 = vsel %vm3925, %v3915, 2102212464
        %v3928 = vsel %vm3924, %v3912, %v3927
        %v3929 = vsel %vm3923, %v3926, %v3928
        %v3930 = vsel %vm3922, %v3909, %v3912
        %v3931 = vsel %vm3925, %v3918, 920167782
        %v3932 = vsel %vm3924, %v3915, %v3931
        %v3933 = vsel %vm3923, %v3930, %v3932
        %v3934 = vsel %vm3922, %v3912, %v3915
        %v3935 = vsel %vm3925, %v3921, 1326507024
        %v3936 = vsel %vm3924, %v3918, %v3935
        %v3937 = vsel %vm3923, %v3934, %v3936
        %v3938 = vshll.u32 %v3898, 8
        %v3939 = vand.u32 %v3938, 65535
        %v3940 = vshrl.u32 %v3938, 16
        %v3941 = vand.u32 %v3937, 65535
        %v3942 = vshrl.u32 %v3937, 16
        %v3943 = vmul.u32 %v3939, %v3941
        %v3944 = vmul.u32 %v3939, %v3942
        %v3945 = vmul.u32 %v3940, %v3941
        %v3946 = vmul.u32 %v3940, %v3942
        %v3947 = vshll.u32 %v3944, 16
        %v3948 = vshrl.u32 %v3944, 16
        %v3949 = vshll.u32 %v3945, 16
        %v3950 = vshrl.u32 %v3945, 16
        %vm3951 = vc.u32 %v3943, %v3947
        %v3952 = vsel %vm3951, 1, 0
        %v3953 = vadd.s32 %v3943, %v3947
        %v3954 = vadd.s32 %v3946, %v3952
        %vm3955 = vc.u32 %v3953, %v3949
        %v3956 = vsel %vm3955, 1, 0
        %v3957 = vadd.s32 %v3953, %v3949
        %v3958 = vadd.s32 %v3954, %v3956
        %v3959 = vadd.s32 %v3958, %v3948
        %v3960 = vadd.s32 %v3959, %v3950
        %v3961 = vand.u32 %v3938, 65535
        %v3962 = vshrl.u32 %v3938, 16
        %v3963 = vand.u32 %v3933, 65535
        %v3964 = vshrl.u32 %v3933, 16
        %v3965 = vmul.u32 %v3961, %v3963
        %v3966 = vmul.u32 %v3961, %v3964
        %v3967 = vmul.u32 %v3962, %v3963
        %v3968 = vmul.u32 %v3962, %v3964
        %v3969 = vshll.u32 %v3966, 16
        %v3970 = vshrl.u32 %v3966, 16
        %v3971 = vshll.u32 %v3967, 16
        %v3972 = vshrl.u32 %v3967, 16
        %vm3973 = vc.u32 %v3965, %v3969
        %v3974 = vsel %vm3973, 1, 0
        %v3975 = vadd.s32 %v3965, %v3969
        %v3976 = vadd.s32 %v3968, %v3974
        %vm3977 = vc.u32 %v3975, %v3971
        %v3978 = vsel %vm3977, 1, 0
        %v3979 = vadd.s32 %v3975, %v3971
        %v3980 = vadd.s32 %v3976, %v3978
        %v3981 = vadd.s32 %v3980, %v3970
        %v3982 = vadd.s32 %v3981, %v3972
        %v3983 = vmul.u32 %v3938, %v3929
        %v3984 = vadd.s32 %v3960, %v3979
        %vm3985 = vc.u32 %v3960, %v3979
        %v3986 = vadd.s32 %v3982, 1
        %v3987 = vsel %vm3985, %v3986, %v3982
        %v3988 = vadd.s32 %v3983, %v3987
        %v3989 = vadd.s32 %v3988, 536870912
        %v3990 = vshrl.u32 %v3989, 30
        %v3991 = vshll.u32 %v3990, 30
        %v3992 = vsub.s32 %v3988, %v3991
        %vm3993 = vcmp.lt.s32.totalorder %v3992, 0
        %v3994 = vsub.s32 0, %v3992
        %v3995 = vsel %vm3993, %v3994, %v3992
        %v3996 = vclz %v3995
        %v3997 = vsub.s32 %v3996, 2
        %vm3998 = vcmp.gt.s32.totalorder 0, %v3997
        %v3999 = vsel %vm3998, 0, %v3997
        %v4000 = vsub.s32 32, %v3999
        %v4001 = vshll.u32 %v3992, %v3999
        %v4002 = vshrl.u32 %v3984, %v4000
        %v4003 = vor.u32 %v4001, %v4002
        %v4004 = vsub.s32 4294967266, %v3999
        %v4005 = vadd.s32 %v4004, 127
        %v4006 = vshll.u32 %v4005, 23
        %v4007 = vor.u32 4788187, %v4006
        %v4008 = vand.u32 2147483647, %v4007
        %v4010 = vcvt.s32.f32 %v4003
        %v4011 = vmul.f32 %v4010, %v4008
        %v4012 = vxor.u32 %v4011, 2147483648
        %v4013 = vsel %vm3892, %v4012, %v4011
        %v4014 = vsub.s32 4, %v3990
        %v4015 = vsel %vm3892, %v4014, %v3990
        %v4016 = vsel %vm3891, %v162, %v4013
        %v4017 = vsel %vm3891, 0, %v4015
        %v4018 = vmul.f32 %v4016, %v4016
        %v4019 = vmul.f32 %v4018, -0.001358992
        %v4020 = vadd.f32 %v4019, 0.041655596
        %v4021 = vmul.f32 %v4018, %v4020
        %v4022 = vadd.f32 %v4021, -0.4999988
        %v4023 = vmul.f32 %v4018, %v4022
        %v4024 = vadd.f32 1.0, %v4023
        %v4025 = vmul.f32 %v4016, %v4016
        %v4026 = vmul.f32 %v4025, -0.00019511016
        %v4027 = vadd.f32 %v4026, 0.008332121
        %v4028 = vmul.f32 %v4025, %v4027
        %v4029 = vadd.f32 %v4028, -0.16666654
        %v4030 = vmul.f32 %v4025, %v4029
        %v4031 = vadd.f32 %v4030, 1.0
        %v4032 = vmul.f32 %v4031, %v4016
        %vm4033 = vweird.f32 %v162
        %v4034 = vadd.s32 %v4017, 3
        %v4035 = vand.u32 %v4034, 3
        %vm4036 = vcmp.lt.s32.totalorder %v4035, 2
        %vm4037 = vcmp.eq.s32.totalorder %v4035, 0
        %v4038 = vxor.u32 %v4032, 2147483648
        %v4039 = vsel %vm4037, %v4024, %v4038
        %vm4040 = vcmp.eq.s32.totalorder %v4035, 2
        %v4041 = vxor.u32 %v4024, 2147483648
        %v4042 = vsel %vm4040, %v4041, %v4032
        %v4043 = vsel %vm4036, %v4039, %v4042
        %v4044 = vsel %vm4033, nan, %v4043
        %v4045 = vand.u32 2147483647, %v163
        %vm4046 = vcmp.le.f32.partialorder %v4045, 0.7853982
        %vm4047 = vcmp.lt.s32.totalorder %v163, 0
        %v4048 = vand.u32 %v163, 2139095040
        %v4049 = vshrl.u32 %v4048, 23
        %v4050 = vsub.s32 %v4049, 127
        %v4051 = vand.u32 2147483647, %v163
        %v4052 = vand.u32 %v4051, 8388607
        %v4053 = vor.u32 %v4052, 8388608
        %v4054 = vsub.s32 0, %v4053
        %v4055 = vadd.s32 %v4050, 1
        %vm4056 = vcmp.gt.s32.totalorder %v4055, 0
        %v4057 = vsel %vm4056, %v4055, 0
        %v4058 = vshrl.u32 %v4057, 5
        %v4059 = vand.u32 %v4057, 31
        %v4060 = vsub.s32 32, %v4059
        %v4061 = vshrl.u32 683565275, %v4060
        %v4062 = vshll.u32 683565275, %v4059
        %v4063 = vshrl.u32 2475754826, %v4060
        %v4064 = vor.u32 %v4062, %v4063
        %v4065 = vshll.u32 2475754826, %v4059
        %v4066 = vshrl.u32 2131351028, %v4060
        %v4067 = vor.u32 %v4065, %v4066
        %v4068 = vshll.u32 2131351028, %v4059
        %v4069 = vshrl.u32 2102212464, %v4060
        %v4070 = vor.u32 %v4068, %v4069
        %v4071 = vshll.u32 2102212464, %v4059
        %v4072 = vshrl.u32 920167782, %v4060
        %v4073 = vor.u32 %v4071, %v4072
        %v4074 = vshll.u32 920167782, %v4059
        %v4075 = vshrl.u32 1326507024, %v4060
        %v4076 = vor.u32 %v4074, %v4075
        %vm4077 = vcmp.lt.s32.totalorder %v4058, 1
        %vm4078 = vcmp.lt.s32.totalorder %v4058, 2
        %vm4079 = vcmp.lt.s32.totalorder %v4058, 3
        %vm4080 = vcmp.lt.s32.totalorder %v4058, 4
        %v4081 = vsel %vm4077, %v4061, %v4064
        %v4082 = vsel %vm4080, %v4070, 2102212464
        %v4083 = vsel %vm4079, %v4067, %v4082
        %v4084 = vsel %vm4078, %v4081, %v4083
        %v4085 = vsel %vm4077, %v4064, %v4067
        %v4086 = vsel %vm4080, %v4073, 920167782
        %v4087 = vsel %vm4079, %v4070, %v4086
        %v4088 = vsel %vm4078, %v4085, %v4087
        %v4089 = vsel %vm4077, %v4067, %v4070
        %v4090 = vsel %vm4080, %v4076, 1326507024
        %v4091 = vsel %vm4079, %v4073, %v4090
        %v4092 = vsel %vm4078, %v4089, %v4091
        %v4093 = vshll.u32 %v4053, 8
        %v4094 = vand.u32 %v4093, 65535
        %v4095 = vshrl.u32 %v4093, 16
        %v4096 = vand.u32 %v4092, 65535
        %v4097 = vshrl.u32 %v4092, 16
        %v4098 = vmul.u32 %v4094, %v4096
        %v4099 = vmul.u32 %v4094, %v4097
        %v4100 = vmul.u32 %v4095, %v4096
        %v4101 = vmul.u32 %v4095, %v4097
        %v4102 = vshll.u32 %v4099, 16
        %v4103 = vshrl.u32 %v4099, 16
        %v4104 = vshll.u32 %v4100, 16
        %v4105 = vshrl.u32 %v4100, 16
        %vm4106 = vc.u32 %v4098, %v4102
        %v4107 = vsel %vm4106, 1, 0
        %v4108 = vadd.s32 %v4098, %v4102
        %v4109 = vadd.s32 %v4101, %v4107
        %vm4110 = vc.u32 %v4108, %v4104
        %v4111 = vsel %vm4110, 1, 0
        %v4112 = vadd.s32 %v4108, %v4104
        %v4113 = vadd.s32 %v4109, %v4111
        %v4114 = vadd.s32 %v4113, %v4103
        %v4115 = vadd.s32 %v4114, %v4105
        %v4116 = vand.u32 %v4093, 65535
        %v4117 = vshrl.u32 %v4093, 16
        %v4118 = vand.u32 %v4088, 65535
        %v4119 = vshrl.u32 %v4088, 16
        %v4120 = vmul.u32 %v4116, %v4118
        %v4121 = vmul.u32 %v4116, %v4119
        %v4122 = vmul.u32 %v4117, %v4118
        %v4123 = vmul.u32 %v4117, %v4119
        %v4124 = vshll.u32 %v4121, 16
        %v4125 = vshrl.u32 %v4121, 16
        %v4126 = vshll.u32 %v4122, 16
        %v4127 = vshrl.u32 %v4122, 16
        %vm4128 = vc.u32 %v4120, %v4124
        %v4129 = vsel %vm4128, 1, 0
        %v4130 = vadd.s32 %v4120, %v4124
        %v4131 = vadd.s32 %v4123, %v4129
        %vm4132 = vc.u32 %v4130, %v4126
        %v4133 = vsel %vm4132, 1, 0
        %v4134 = vadd.s32 %v4130, %v4126
        %v4135 = vadd.s32 %v4131, %v4133
        %v4136 = vadd.s32 %v4135, %v4125
        %v4137 = vadd.s32 %v4136, %v4127
        %v4138 = vmul.u32 %v4093, %v4084
        %v4139 = vadd.s32 %v4115, %v4134
        %vm4140 = vc.u32 %v4115, %v4134
        %v4141 = vadd.s32 %v4137, 1
        %v4142 = vsel %vm4140, %v4141, %v4137
        %v4143 = vadd.s32 %v4138, %v4142
        %v4144 = vadd.s32 %v4143, 536870912
        %v4145 = vshrl.u32 %v4144, 30
        %v4146 = vshll.u32 %v4145, 30
        %v4147 = vsub.s32 %v4143, %v4146
        %vm4148 = vcmp.lt.s32.totalorder %v4147, 0
        %v4149 = vsub.s32 0, %v4147
        %v4150 = vsel %vm4148, %v4149, %v4147
        %v4151 = vclz %v4150
        %v4152 = vsub.s32 %v4151, 2
        %vm4153 = vcmp.gt.s32.totalorder 0, %v4152
        %v4154 = vsel %vm4153, 0, %v4152
        %v4155 = vsub.s32 32, %v4154
        %v4156 = vshll.u32 %v4147, %v4154
        %v4157 = vshrl.u32 %v4139, %v4155
        %v4158 = vor.u32 %v4156, %v4157
        %v4159 = vsub.s32 4294967266, %v4154
        %v4160 = vadd.s32 %v4159, 127
        %v4161 = vshll.u32 %v4160, 23
        %v4162 = vor.u32 4788187, %v4161
        %v4163 = vand.u32 2147483647, %v4162
        %v4165 = vcvt.s32.f32 %v4158
        %v4166 = vmul.f32 %v4165, %v4163
        %v4167 = vxor.u32 %v4166, 2147483648
        %v4168 = vsel %vm4047, %v4167, %v4166
        %v4169 = vsub.s32 4, %v4145
        %v4170 = vsel %vm4047, %v4169, %v4145
        %v4171 = vsel %vm4046, %v163, %v4168
        %v4172 = vsel %vm4046, 0, %v4170
        %v4173 = vmul.f32 %v4171, %v4171
        %v4174 = vmul.f32 %v4173, -0.001358992
        %v4175 = vadd.f32 %v4174, 0.041655596
        %v4176 = vmul.f32 %v4173, %v4175
        %v4177 = vadd.f32 %v4176, -0.4999988
        %v4178 = vmul.f32 %v4173, %v4177
        %v4179 = vadd.f32 1.0, %v4178
        %v4180 = vmul.f32 %v4171, %v4171
        %v4181 = vmul.f32 %v4180, -0.00019511016
        %v4182 = vadd.f32 %v4181, 0.008332121
        %v4183 = vmul.f32 %v4180, %v4182
        %v4184 = vadd.f32 %v4183, -0.16666654
        %v4185 = vmul.f32 %v4180, %v4184
        %v4186 = vadd.f32 %v4185, 1.0
        %v4187 = vmul.f32 %v4186, %v4171
        %vm4188 = vweird.f32 %v163
        %v4189 = vadd.s32 %v4172, 3
        %v4190 = vand.u32 %v4189, 3
        %vm4191 = vcmp.lt.s32.totalorder %v4190, 2
        %vm4192 = vcmp.eq.s32.totalorder %v4190, 0
        %v4193 = vxor.u32 %v4187, 2147483648
        %v4194 = vsel %vm4192, %v4179, %v4193
        %vm4195 = vcmp.eq.s32.totalorder %v4190, 2
        %v4196 = vxor.u32 %v4179, 2147483648
        %v4197 = vsel %vm4195, %v4196, %v4187
        %v4198 = vsel %vm4191, %v4194, %v4197
        %v4199 = vsel %vm4188, nan, %v4198
        %v4200 = vand.u32 2147483647, %v164
        %vm4201 = vcmp.le.f32.partialorder %v4200, 0.7853982
        %vm4202 = vcmp.lt.s32.totalorder %v164, 0
        %v4203 = vand.u32 %v164, 2139095040
        %v4204 = vshrl.u32 %v4203, 23
        %v4205 = vsub.s32 %v4204, 127
        %v4206 = vand.u32 2147483647, %v164
        %v4207 = vand.u32 %v4206, 8388607
        %v4208 = vor.u32 %v4207, 8388608
        %v4209 = vsub.s32 0, %v4208
        %v4210 = vadd.s32 %v4205, 1
        %vm4211 = vcmp.gt.s32.totalorder %v4210, 0
        %v4212 = vsel %vm4211, %v4210, 0
        %v4213 = vshrl.u32 %v4212, 5
        %v4214 = vand.u32 %v4212, 31
        %v4215 = vsub.s32 32, %v4214
        %v4216 = vshrl.u32 683565275, %v4215
        %v4217 = vshll.u32 683565275, %v4214
        %v4218 = vshrl.u32 2475754826, %v4215
        %v4219 = vor.u32 %v4217, %v4218
        %v4220 = vshll.u32 2475754826, %v4214
        %v4221 = vshrl.u32 2131351028, %v4215
        %v4222 = vor.u32 %v4220, %v4221
        %v4223 = vshll.u32 2131351028, %v4214
        %v4224 = vshrl.u32 2102212464, %v4215
        %v4225 = vor.u32 %v4223, %v4224
        %v4226 = vshll.u32 2102212464, %v4214
        %v4227 = vshrl.u32 920167782, %v4215
        %v4228 = vor.u32 %v4226, %v4227
        %v4229 = vshll.u32 920167782, %v4214
        %v4230 = vshrl.u32 1326507024, %v4215
        %v4231 = vor.u32 %v4229, %v4230
        %vm4232 = vcmp.lt.s32.totalorder %v4213, 1
        %vm4233 = vcmp.lt.s32.totalorder %v4213, 2
        %vm4234 = vcmp.lt.s32.totalorder %v4213, 3
        %vm4235 = vcmp.lt.s32.totalorder %v4213, 4
        %v4236 = vsel %vm4232, %v4216, %v4219
        %v4237 = vsel %vm4235, %v4225, 2102212464
        %v4238 = vsel %vm4234, %v4222, %v4237
        %v4239 = vsel %vm4233, %v4236, %v4238
        %v4240 = vsel %vm4232, %v4219, %v4222
        %v4241 = vsel %vm4235, %v4228, 920167782
        %v4242 = vsel %vm4234, %v4225, %v4241
        %v4243 = vsel %vm4233, %v4240, %v4242
        %v4244 = vsel %vm4232, %v4222, %v4225
        %v4245 = vsel %vm4235, %v4231, 1326507024
        %v4246 = vsel %vm4234, %v4228, %v4245
        %v4247 = vsel %vm4233, %v4244, %v4246
        %v4248 = vshll.u32 %v4208, 8
        %v4249 = vand.u32 %v4248, 65535
        %v4250 = vshrl.u32 %v4248, 16
        %v4251 = vand.u32 %v4247, 65535
        %v4252 = vshrl.u32 %v4247, 16
        %v4253 = vmul.u32 %v4249, %v4251
        %v4254 = vmul.u32 %v4249, %v4252
        %v4255 = vmul.u32 %v4250, %v4251
        %v4256 = vmul.u32 %v4250, %v4252
        %v4257 = vshll.u32 %v4254, 16
        %v4258 = vshrl.u32 %v4254, 16
        %v4259 = vshll.u32 %v4255, 16
        %v4260 = vshrl.u32 %v4255, 16
        %vm4261 = vc.u32 %v4253, %v4257
        %v4262 = vsel %vm4261, 1, 0
        %v4263 = vadd.s32 %v4253, %v4257
        %v4264 = vadd.s32 %v4256, %v4262
        %vm4265 = vc.u32 %v4263, %v4259
        %v4266 = vsel %vm4265, 1, 0
        %v4267 = vadd.s32 %v4263, %v4259
        %v4268 = vadd.s32 %v4264, %v4266
        %v4269 = vadd.s32 %v4268, %v4258
        %v4270 = vadd.s32 %v4269, %v4260
        %v4271 = vand.u32 %v4248, 65535
        %v4272 = vshrl.u32 %v4248, 16
        %v4273 = vand.u32 %v4243, 65535
        %v4274 = vshrl.u32 %v4243, 16
        %v4275 = vmul.u32 %v4271, %v4273
        %v4276 = vmul.u32 %v4271, %v4274
        %v4277 = vmul.u32 %v4272, %v4273
        %v4278 = vmul.u32 %v4272, %v4274
        %v4279 = vshll.u32 %v4276, 16
        %v4280 = vshrl.u32 %v4276, 16
        %v4281 = vshll.u32 %v4277, 16
        %v4282 = vshrl.u32 %v4277, 16
        %vm4283 = vc.u32 %v4275, %v4279
        %v4284 = vsel %vm4283, 1, 0
        %v4285 = vadd.s32 %v4275, %v4279
        %v4286 = vadd.s32 %v4278, %v4284
        %vm4287 = vc.u32 %v4285, %v4281
        %v4288 = vsel %vm4287, 1, 0
        %v4289 = vadd.s32 %v4285, %v4281
        %v4290 = vadd.s32 %v4286, %v4288
        %v4291 = vadd.s32 %v4290, %v4280
        %v4292 = vadd.s32 %v4291, %v4282
        %v4293 = vmul.u32 %v4248, %v4239
        %v4294 = vadd.s32 %v4270, %v4289
        %vm4295 = vc.u32 %v4270, %v4289
        %v4296 = vadd.s32 %v4292, 1
        %v4297 = vsel %vm4295, %v4296, %v4292
        %v4298 = vadd.s32 %v4293, %v4297
        %v4299 = vadd.s32 %v4298, 536870912
        %v4300 = vshrl.u32 %v4299, 30
        %v4301 = vshll.u32 %v4300, 30
        %v4302 = vsub.s32 %v4298, %v4301
        %vm4303 = vcmp.lt.s32.totalorder %v4302, 0
        %v4304 = vsub.s32 0, %v4302
        %v4305 = vsel %vm4303, %v4304, %v4302
        %v4306 = vclz %v4305
        %v4307 = vsub.s32 %v4306, 2
        %vm4308 = vcmp.gt.s32.totalorder 0, %v4307
        %v4309 = vsel %vm4308, 0, %v4307
        %v4310 = vsub.s32 32, %v4309
        %v4311 = vshll.u32 %v4302, %v4309
        %v4312 = vshrl.u32 %v4294, %v4310
        %v4313 = vor.u32 %v4311, %v4312
        %v4314 = vsub.s32 4294967266, %v4309
        %v4315 = vadd.s32 %v4314, 127
        %v4316 = vshll.u32 %v4315, 23
        %v4317 = vor.u32 4788187, %v4316
        %v4318 = vand.u32 2147483647, %v4317
        %v4320 = vcvt.s32.f32 %v4313
        %v4321 = vmul.f32 %v4320, %v4318
        %v4322 = vxor.u32 %v4321, 2147483648
        %v4323 = vsel %vm4202, %v4322, %v4321
        %v4324 = vsub.s32 4, %v4300
        %v4325 = vsel %vm4202, %v4324, %v4300
        %v4326 = vsel %vm4201, %v164, %v4323
        %v4327 = vsel %vm4201, 0, %v4325
        %v4328 = vmul.f32 %v4326, %v4326
        %v4329 = vmul.f32 %v4328, -0.001358992
        %v4330 = vadd.f32 %v4329, 0.041655596
        %v4331 = vmul.f32 %v4328, %v4330
        %v4332 = vadd.f32 %v4331, -0.4999988
        %v4333 = vmul.f32 %v4328, %v4332
        %v4334 = vadd.f32 1.0, %v4333
        %v4335 = vmul.f32 %v4326, %v4326
        %v4336 = vmul.f32 %v4335, -0.00019511016
        %v4337 = vadd.f32 %v4336, 0.008332121
        %v4338 = vmul.f32 %v4335, %v4337
        %v4339 = vadd.f32 %v4338, -0.16666654
        %v4340 = vmul.f32 %v4335, %v4339
        %v4341 = vadd.f32 %v4340, 1.0
        %v4342 = vmul.f32 %v4341, %v4326
        %vm4343 = vweird.f32 %v164
        %v4344 = vadd.s32 %v4327, 3
        %v4345 = vand.u32 %v4344, 3
        %vm4346 = vcmp.lt.s32.totalorder %v4345, 2
        %vm4347 = vcmp.eq.s32.totalorder %v4345, 0
        %v4348 = vxor.u32 %v4342, 2147483648
        %v4349 = vsel %vm4347, %v4334, %v4348
        %vm4350 = vcmp.eq.s32.totalorder %v4345, 2
        %v4351 = vxor.u32 %v4334, 2147483648
        %v4352 = vsel %vm4350, %v4351, %v4342
        %v4353 = vsel %vm4346, %v4349, %v4352
        %v4354 = vsel %vm4343, nan, %v4353
        %v4355 = vand.u32 2147483647, %v165
        %vm4356 = vcmp.le.f32.partialorder %v4355, 0.7853982
        %vm4357 = vcmp.lt.s32.totalorder %v165, 0
        %v4358 = vand.u32 %v165, 2139095040
        %v4359 = vshrl.u32 %v4358, 23
        %v4360 = vsub.s32 %v4359, 127
        %v4361 = vand.u32 2147483647, %v165
        %v4362 = vand.u32 %v4361, 8388607
        %v4363 = vor.u32 %v4362, 8388608
        %v4364 = vsub.s32 0, %v4363
        %v4365 = vadd.s32 %v4360, 1
        %vm4366 = vcmp.gt.s32.totalorder %v4365, 0
        %v4367 = vsel %vm4366, %v4365, 0
        %v4368 = vshrl.u32 %v4367, 5
        %v4369 = vand.u32 %v4367, 31
        %v4370 = vsub.s32 32, %v4369
        %v4371 = vshrl.u32 683565275, %v4370
        %v4372 = vshll.u32 683565275, %v4369
        %v4373 = vshrl.u32 2475754826, %v4370
        %v4374 = vor.u32 %v4372, %v4373
        %v4375 = vshll.u32 2475754826, %v4369
        %v4376 = vshrl.u32 2131351028, %v4370
        %v4377 = vor.u32 %v4375, %v4376
        %v4378 = vshll.u32 2131351028, %v4369
        %v4379 = vshrl.u32 2102212464, %v4370
        %v4380 = vor.u32 %v4378, %v4379
        %v4381 = vshll.u32 2102212464, %v4369
        %v4382 = vshrl.u32 920167782, %v4370
        %v4383 = vor.u32 %v4381, %v4382
        %v4384 = vshll.u32 920167782, %v4369
        %v4385 = vshrl.u32 1326507024, %v4370
        %v4386 = vor.u32 %v4384, %v4385
        %vm4387 = vcmp.lt.s32.totalorder %v4368, 1
        %vm4388 = vcmp.lt.s32.totalorder %v4368, 2
        %vm4389 = vcmp.lt.s32.totalorder %v4368, 3
        %vm4390 = vcmp.lt.s32.totalorder %v4368, 4
        %v4391 = vsel %vm4387, %v4371, %v4374
        %v4392 = vsel %vm4390, %v4380, 2102212464
        %v4393 = vsel %vm4389, %v4377, %v4392
        %v4394 = vsel %vm4388, %v4391, %v4393
        %v4395 = vsel %vm4387, %v4374, %v4377
        %v4396 = vsel %vm4390, %v4383, 920167782
        %v4397 = vsel %vm4389, %v4380, %v4396
        %v4398 = vsel %vm4388, %v4395, %v4397
        %v4399 = vsel %vm4387, %v4377, %v4380
        %v4400 = vsel %vm4390, %v4386, 1326507024
        %v4401 = vsel %vm4389, %v4383, %v4400
        %v4402 = vsel %vm4388, %v4399, %v4401
        %v4403 = vshll.u32 %v4363, 8
        %v4404 = vand.u32 %v4403, 65535
        %v4405 = vshrl.u32 %v4403, 16
        %v4406 = vand.u32 %v4402, 65535
        %v4407 = vshrl.u32 %v4402, 16
        %v4408 = vmul.u32 %v4404, %v4406
        %v4409 = vmul.u32 %v4404, %v4407
        %v4410 = vmul.u32 %v4405, %v4406
        %v4411 = vmul.u32 %v4405, %v4407
        %v4412 = vshll.u32 %v4409, 16
        %v4413 = vshrl.u32 %v4409, 16
        %v4414 = vshll.u32 %v4410, 16
        %v4415 = vshrl.u32 %v4410, 16
        %vm4416 = vc.u32 %v4408, %v4412
        %v4417 = vsel %vm4416, 1, 0
        %v4418 = vadd.s32 %v4408, %v4412
        %v4419 = vadd.s32 %v4411, %v4417
        %vm4420 = vc.u32 %v4418, %v4414
        %v4421 = vsel %vm4420, 1, 0
        %v4422 = vadd.s32 %v4418, %v4414
        %v4423 = vadd.s32 %v4419, %v4421
        %v4424 = vadd.s32 %v4423, %v4413
        %v4425 = vadd.s32 %v4424, %v4415
        %v4426 = vand.u32 %v4403, 65535
        %v4427 = vshrl.u32 %v4403, 16
        %v4428 = vand.u32 %v4398, 65535
        %v4429 = vshrl.u32 %v4398, 16
        %v4430 = vmul.u32 %v4426, %v4428
        %v4431 = vmul.u32 %v4426, %v4429
        %v4432 = vmul.u32 %v4427, %v4428
        %v4433 = vmul.u32 %v4427, %v4429
        %v4434 = vshll.u32 %v4431, 16
        %v4435 = vshrl.u32 %v4431, 16
        %v4436 = vshll.u32 %v4432, 16
        %v4437 = vshrl.u32 %v4432, 16
        %vm4438 = vc.u32 %v4430, %v4434
        %v4439 = vsel %vm4438, 1, 0
        %v4440 = vadd.s32 %v4430, %v4434
        %v4441 = vadd.s32 %v4433, %v4439
        %vm4442 = vc.u32 %v4440, %v4436
        %v4443 = vsel %vm4442, 1, 0
        %v4444 = vadd.s32 %v4440, %v4436
        %v4445 = vadd.s32 %v4441, %v4443
        %v4446 = vadd.s32 %v4445, %v4435
        %v4447 = vadd.s32 %v4446, %v4437
        %v4448 = vmul.u32 %v4403, %v4394
        %v4449 = vadd.s32 %v4425, %v4444
        %vm4450 = vc.u32 %v4425, %v4444
        %v4451 = vadd.s32 %v4447, 1
        %v4452 = vsel %vm4450, %v4451, %v4447
        %v4453 = vadd.s32 %v4448, %v4452
        %v4454 = vadd.s32 %v4453, 536870912
        %v4455 = vshrl.u32 %v4454, 30
        %v4456 = vshll.u32 %v4455, 30
        %v4457 = vsub.s32 %v4453, %v4456
        %vm4458 = vcmp.lt.s32.totalorder %v4457, 0
        %v4459 = vsub.s32 0, %v4457
        %v4460 = vsel %vm4458, %v4459, %v4457
        %v4461 = vclz %v4460
        %v4462 = vsub.s32 %v4461, 2
        %vm4463 = vcmp.gt.s32.totalorder 0, %v4462
        %v4464 = vsel %vm4463, 0, %v4462
        %v4465 = vsub.s32 32, %v4464
        %v4466 = vshll.u32 %v4457, %v4464
        %v4467 = vshrl.u32 %v4449, %v4465
        %v4468 = vor.u32 %v4466, %v4467
        %v4469 = vsub.s32 4294967266, %v4464
        %v4470 = vadd.s32 %v4469, 127
        %v4471 = vshll.u32 %v4470, 23
        %v4472 = vor.u32 4788187, %v4471
        %v4473 = vand.u32 2147483647, %v4472
        %v4475 = vcvt.s32.f32 %v4468
        %v4476 = vmul.f32 %v4475, %v4473
        %v4477 = vxor.u32 %v4476, 2147483648
        %v4478 = vsel %vm4357, %v4477, %v4476
        %v4479 = vsub.s32 4, %v4455
        %v4480 = vsel %vm4357, %v4479, %v4455
        %v4481 = vsel %vm4356, %v165, %v4478
        %v4482 = vsel %vm4356, 0, %v4480
        %v4483 = vmul.f32 %v4481, %v4481
        %v4484 = vmul.f32 %v4483, -0.001358992
        %v4485 = vadd.f32 %v4484, 0.041655596
        %v4486 = vmul.f32 %v4483, %v4485
        %v4487 = vadd.f32 %v4486, -0.4999988
        %v4488 = vmul.f32 %v4483, %v4487
        %v4489 = vadd.f32 1.0, %v4488
        %v4490 = vmul.f32 %v4481, %v4481
        %v4491 = vmul.f32 %v4490, -0.00019511016
        %v4492 = vadd.f32 %v4491, 0.008332121
        %v4493 = vmul.f32 %v4490, %v4492
        %v4494 = vadd.f32 %v4493, -0.16666654
        %v4495 = vmul.f32 %v4490, %v4494
        %v4496 = vadd.f32 %v4495, 1.0
        %v4497 = vmul.f32 %v4496, %v4481
        %vm4498 = vweird.f32 %v165
        %v4499 = vadd.s32 %v4482, 3
        %v4500 = vand.u32 %v4499, 3
        %vm4501 = vcmp.lt.s32.totalorder %v4500, 2
        %vm4502 = vcmp.eq.s32.totalorder %v4500, 0
        %v4503 = vxor.u32 %v4497, 2147483648
        %v4504 = vsel %vm4502, %v4489, %v4503
        %vm4505 = vcmp.eq.s32.totalorder %v4500, 2
        %v4506 = vxor.u32 %v4489, 2147483648
        %v4507 = vsel %vm4505, %v4506, %v4497
        %v4508 = vsel %vm4501, %v4504, %v4507
        %v4509 = vsel %vm4498, nan, %v4508
        %v4510 = vand.u32 2147483647, %v166
        %vm4511 = vcmp.le.f32.partialorder %v4510, 0.7853982
        %vm4512 = vcmp.lt.s32.totalorder %v166, 0
        %v4513 = vand.u32 %v166, 2139095040
        %v4514 = vshrl.u32 %v4513, 23
        %v4515 = vsub.s32 %v4514, 127
        %v4516 = vand.u32 2147483647, %v166
        %v4517 = vand.u32 %v4516, 8388607
        %v4518 = vor.u32 %v4517, 8388608
        %v4519 = vsub.s32 0, %v4518
        %v4520 = vadd.s32 %v4515, 1
        %vm4521 = vcmp.gt.s32.totalorder %v4520, 0
        %v4522 = vsel %vm4521, %v4520, 0
        %v4523 = vshrl.u32 %v4522, 5
        %v4524 = vand.u32 %v4522, 31
        %v4525 = vsub.s32 32, %v4524
        %v4526 = vshrl.u32 683565275, %v4525
        %v4527 = vshll.u32 683565275, %v4524
        %v4528 = vshrl.u32 2475754826, %v4525
        %v4529 = vor.u32 %v4527, %v4528
        %v4530 = vshll.u32 2475754826, %v4524
        %v4531 = vshrl.u32 2131351028, %v4525
        %v4532 = vor.u32 %v4530, %v4531
        %v4533 = vshll.u32 2131351028, %v4524
        %v4534 = vshrl.u32 2102212464, %v4525
        %v4535 = vor.u32 %v4533, %v4534
        %v4536 = vshll.u32 2102212464, %v4524
        %v4537 = vshrl.u32 920167782, %v4525
        %v4538 = vor.u32 %v4536, %v4537
        %v4539 = vshll.u32 920167782, %v4524
        %v4540 = vshrl.u32 1326507024, %v4525
        %v4541 = vor.u32 %v4539, %v4540
        %vm4542 = vcmp.lt.s32.totalorder %v4523, 1
        %vm4543 = vcmp.lt.s32.totalorder %v4523, 2
        %vm4544 = vcmp.lt.s32.totalorder %v4523, 3
        %vm4545 = vcmp.lt.s32.totalorder %v4523, 4
        %v4546 = vsel %vm4542, %v4526, %v4529
        %v4547 = vsel %vm4545, %v4535, 2102212464
        %v4548 = vsel %vm4544, %v4532, %v4547
        %v4549 = vsel %vm4543, %v4546, %v4548
        %v4550 = vsel %vm4542, %v4529, %v4532
        %v4551 = vsel %vm4545, %v4538, 920167782
        %v4552 = vsel %vm4544, %v4535, %v4551
        %v4553 = vsel %vm4543, %v4550, %v4552
        %v4554 = vsel %vm4542, %v4532, %v4535
        %v4555 = vsel %vm4545, %v4541, 1326507024
        %v4556 = vsel %vm4544, %v4538, %v4555
        %v4557 = vsel %vm4543, %v4554, %v4556
        %v4558 = vshll.u32 %v4518, 8
        %v4559 = vand.u32 %v4558, 65535
        %v4560 = vshrl.u32 %v4558, 16
        %v4561 = vand.u32 %v4557, 65535
        %v4562 = vshrl.u32 %v4557, 16
        %v4563 = vmul.u32 %v4559, %v4561
        %v4564 = vmul.u32 %v4559, %v4562
        %v4565 = vmul.u32 %v4560, %v4561
        %v4566 = vmul.u32 %v4560, %v4562
        %v4567 = vshll.u32 %v4564, 16
        %v4568 = vshrl.u32 %v4564, 16
        %v4569 = vshll.u32 %v4565, 16
        %v4570 = vshrl.u32 %v4565, 16
        %vm4571 = vc.u32 %v4563, %v4567
        %v4572 = vsel %vm4571, 1, 0
        %v4573 = vadd.s32 %v4563, %v4567
        %v4574 = vadd.s32 %v4566, %v4572
        %vm4575 = vc.u32 %v4573, %v4569
        %v4576 = vsel %vm4575, 1, 0
        %v4577 = vadd.s32 %v4573, %v4569
        %v4578 = vadd.s32 %v4574, %v4576
        %v4579 = vadd.s32 %v4578, %v4568
        %v4580 = vadd.s32 %v4579, %v4570
        %v4581 = vand.u32 %v4558, 65535
        %v4582 = vshrl.u32 %v4558, 16
        %v4583 = vand.u32 %v4553, 65535
        %v4584 = vshrl.u32 %v4553, 16
        %v4585 = vmul.u32 %v4581, %v4583
        %v4586 = vmul.u32 %v4581, %v4584
        %v4587 = vmul.u32 %v4582, %v4583
        %v4588 = vmul.u32 %v4582, %v4584
        %v4589 = vshll.u32 %v4586, 16
        %v4590 = vshrl.u32 %v4586, 16
        %v4591 = vshll.u32 %v4587, 16
        %v4592 = vshrl.u32 %v4587, 16
        %vm4593 = vc.u32 %v4585, %v4589
        %v4594 = vsel %vm4593, 1, 0
        %v4595 = vadd.s32 %v4585, %v4589
        %v4596 = vadd.s32 %v4588, %v4594
        %vm4597 = vc.u32 %v4595, %v4591
        %v4598 = vsel %vm4597, 1, 0
        %v4599 = vadd.s32 %v4595, %v4591
        %v4600 = vadd.s32 %v4596, %v4598
        %v4601 = vadd.s32 %v4600, %v4590
        %v4602 = vadd.s32 %v4601, %v4592
        %v4603 = vmul.u32 %v4558, %v4549
        %v4604 = vadd.s32 %v4580, %v4599
        %vm4605 = vc.u32 %v4580, %v4599
        %v4606 = vadd.s32 %v4602, 1
        %v4607 = vsel %vm4605, %v4606, %v4602
        %v4608 = vadd.s32 %v4603, %v4607
        %v4609 = vadd.s32 %v4608, 536870912
        %v4610 = vshrl.u32 %v4609, 30
        %v4611 = vshll.u32 %v4610, 30
        %v4612 = vsub.s32 %v4608, %v4611
        %vm4613 = vcmp.lt.s32.totalorder %v4612, 0
        %v4614 = vsub.s32 0, %v4612
        %v4615 = vsel %vm4613, %v4614, %v4612
        %v4616 = vclz %v4615
        %v4617 = vsub.s32 %v4616, 2
        %vm4618 = vcmp.gt.s32.totalorder 0, %v4617
        %v4619 = vsel %vm4618, 0, %v4617
        %v4620 = vsub.s32 32, %v4619
        %v4621 = vshll.u32 %v4612, %v4619
        %v4622 = vshrl.u32 %v4604, %v4620
        %v4623 = vor.u32 %v4621, %v4622
        %v4624 = vsub.s32 4294967266, %v4619
        %v4625 = vadd.s32 %v4624, 127
        %v4626 = vshll.u32 %v4625, 23
        %v4627 = vor.u32 4788187, %v4626
        %v4628 = vand.u32 2147483647, %v4627
        %v4630 = vcvt.s32.f32 %v4623
        %v4631 = vmul.f32 %v4630, %v4628
        %v4632 = vxor.u32 %v4631, 2147483648
        %v4633 = vsel %vm4512, %v4632, %v4631
        %v4634 = vsub.s32 4, %v4610
        %v4635 = vsel %vm4512, %v4634, %v4610
        %v4636 = vsel %vm4511, %v166, %v4633
        %v4637 = vsel %vm4511, 0, %v4635
        %v4638 = vmul.f32 %v4636, %v4636
        %v4639 = vmul.f32 %v4638, -0.001358992
        %v4640 = vadd.f32 %v4639, 0.041655596
        %v4641 = vmul.f32 %v4638, %v4640
        %v4642 = vadd.f32 %v4641, -0.4999988
        %v4643 = vmul.f32 %v4638, %v4642
        %v4644 = vadd.f32 1.0, %v4643
        %v4645 = vmul.f32 %v4636, %v4636
        %v4646 = vmul.f32 %v4645, -0.00019511016
        %v4647 = vadd.f32 %v4646, 0.008332121
        %v4648 = vmul.f32 %v4645, %v4647
        %v4649 = vadd.f32 %v4648, -0.16666654
        %v4650 = vmul.f32 %v4645, %v4649
        %v4651 = vadd.f32 %v4650, 1.0
        %v4652 = vmul.f32 %v4651, %v4636
        %vm4653 = vweird.f32 %v166
        %v4654 = vadd.s32 %v4637, 3
        %v4655 = vand.u32 %v4654, 3
        %vm4656 = vcmp.lt.s32.totalorder %v4655, 2
        %vm4657 = vcmp.eq.s32.totalorder %v4655, 0
        %v4658 = vxor.u32 %v4652, 2147483648
        %v4659 = vsel %vm4657, %v4644, %v4658
        %vm4660 = vcmp.eq.s32.totalorder %v4655, 2
        %v4661 = vxor.u32 %v4644, 2147483648
        %v4662 = vsel %vm4660, %v4661, %v4652
        %v4663 = vsel %vm4656, %v4659, %v4662
        %v4664 = vsel %vm4653, nan, %v4663
        %v4665 = vand.u32 2147483647, %v167
        %vm4666 = vcmp.le.f32.partialorder %v4665, 0.7853982
        %vm4667 = vcmp.lt.s32.totalorder %v167, 0
        %v4668 = vand.u32 %v167, 2139095040
        %v4669 = vshrl.u32 %v4668, 23
        %v4670 = vsub.s32 %v4669, 127
        %v4671 = vand.u32 2147483647, %v167
        %v4672 = vand.u32 %v4671, 8388607
        %v4673 = vor.u32 %v4672, 8388608
        %v4674 = vsub.s32 0, %v4673
        %v4675 = vadd.s32 %v4670, 1
        %vm4676 = vcmp.gt.s32.totalorder %v4675, 0
        %v4677 = vsel %vm4676, %v4675, 0
        %v4678 = vshrl.u32 %v4677, 5
        %v4679 = vand.u32 %v4677, 31
        %v4680 = vsub.s32 32, %v4679
        %v4681 = vshrl.u32 683565275, %v4680
        %v4682 = vshll.u32 683565275, %v4679
        %v4683 = vshrl.u32 2475754826, %v4680
        %v4684 = vor.u32 %v4682, %v4683
        %v4685 = vshll.u32 2475754826, %v4679
        %v4686 = vshrl.u32 2131351028, %v4680
        %v4687 = vor.u32 %v4685, %v4686
        %v4688 = vshll.u32 2131351028, %v4679
        %v4689 = vshrl.u32 2102212464, %v4680
        %v4690 = vor.u32 %v4688, %v4689
        %v4691 = vshll.u32 2102212464, %v4679
        %v4692 = vshrl.u32 920167782, %v4680
        %v4693 = vor.u32 %v4691, %v4692
        %v4694 = vshll.u32 920167782, %v4679
        %v4695 = vshrl.u32 1326507024, %v4680
        %v4696 = vor.u32 %v4694, %v4695
        %vm4697 = vcmp.lt.s32.totalorder %v4678, 1
        %vm4698 = vcmp.lt.s32.totalorder %v4678, 2
        %vm4699 = vcmp.lt.s32.totalorder %v4678, 3
        %vm4700 = vcmp.lt.s32.totalorder %v4678, 4
        %v4701 = vsel %vm4697, %v4681, %v4684
        %v4702 = vsel %vm4700, %v4690, 2102212464
        %v4703 = vsel %vm4699, %v4687, %v4702
        %v4704 = vsel %vm4698, %v4701, %v4703
        %v4705 = vsel %vm4697, %v4684, %v4687
        %v4706 = vsel %vm4700, %v4693, 920167782
        %v4707 = vsel %vm4699, %v4690, %v4706
        %v4708 = vsel %vm4698, %v4705, %v4707
        %v4709 = vsel %vm4697, %v4687, %v4690
        %v4710 = vsel %vm4700, %v4696, 1326507024
        %v4711 = vsel %vm4699, %v4693, %v4710
        %v4712 = vsel %vm4698, %v4709, %v4711
        %v4713 = vshll.u32 %v4673, 8
        %v4714 = vand.u32 %v4713, 65535
        %v4715 = vshrl.u32 %v4713, 16
        %v4716 = vand.u32 %v4712, 65535
        %v4717 = vshrl.u32 %v4712, 16
        %v4718 = vmul.u32 %v4714, %v4716
        %v4719 = vmul.u32 %v4714, %v4717
        %v4720 = vmul.u32 %v4715, %v4716
        %v4721 = vmul.u32 %v4715, %v4717
        %v4722 = vshll.u32 %v4719, 16
        %v4723 = vshrl.u32 %v4719, 16
        %v4724 = vshll.u32 %v4720, 16
        %v4725 = vshrl.u32 %v4720, 16
        %vm4726 = vc.u32 %v4718, %v4722
        %v4727 = vsel %vm4726, 1, 0
        %v4728 = vadd.s32 %v4718, %v4722
        %v4729 = vadd.s32 %v4721, %v4727
        %vm4730 = vc.u32 %v4728, %v4724
        %v4731 = vsel %vm4730, 1, 0
        %v4732 = vadd.s32 %v4728, %v4724
        %v4733 = vadd.s32 %v4729, %v4731
        %v4734 = vadd.s32 %v4733, %v4723
        %v4735 = vadd.s32 %v4734, %v4725
        %v4736 = vand.u32 %v4713, 65535
        %v4737 = vshrl.u32 %v4713, 16
        %v4738 = vand.u32 %v4708, 65535
        %v4739 = vshrl.u32 %v4708, 16
        %v4740 = vmul.u32 %v4736, %v4738
        %v4741 = vmul.u32 %v4736, %v4739
        %v4742 = vmul.u32 %v4737, %v4738
        %v4743 = vmul.u32 %v4737, %v4739
        %v4744 = vshll.u32 %v4741, 16
        %v4745 = vshrl.u32 %v4741, 16
        %v4746 = vshll.u32 %v4742, 16
        %v4747 = vshrl.u32 %v4742, 16
        %vm4748 = vc.u32 %v4740, %v4744
        %v4749 = vsel %vm4748, 1, 0
        %v4750 = vadd.s32 %v4740, %v4744
        %v4751 = vadd.s32 %v4743, %v4749
        %vm4752 = vc.u32 %v4750, %v4746
        %v4753 = vsel %vm4752, 1, 0
        %v4754 = vadd.s32 %v4750, %v4746
        %v4755 = vadd.s32 %v4751, %v4753
        %v4756 = vadd.s32 %v4755, %v4745
        %v4757 = vadd.s32 %v4756, %v4747
        %v4758 = vmul.u32 %v4713, %v4704
        %v4759 = vadd.s32 %v4735, %v4754
        %vm4760 = vc.u32 %v4735, %v4754
        %v4761 = vadd.s32 %v4757, 1
        %v4762 = vsel %vm4760, %v4761, %v4757
        %v4763 = vadd.s32 %v4758, %v4762
        %v4764 = vadd.s32 %v4763, 536870912
        %v4765 = vshrl.u32 %v4764, 30
        %v4766 = vshll.u32 %v4765, 30
        %v4767 = vsub.s32 %v4763, %v4766
        %vm4768 = vcmp.lt.s32.totalorder %v4767, 0
        %v4769 = vsub.s32 0, %v4767
        %v4770 = vsel %vm4768, %v4769, %v4767
        %v4771 = vclz %v4770
        %v4772 = vsub.s32 %v4771, 2
        %vm4773 = vcmp.gt.s32.totalorder 0, %v4772
        %v4774 = vsel %vm4773, 0, %v4772
        %v4775 = vsub.s32 32, %v4774
        %v4776 = vshll.u32 %v4767, %v4774
        %v4777 = vshrl.u32 %v4759, %v4775
        %v4778 = vor.u32 %v4776, %v4777
        %v4779 = vsub.s32 4294967266, %v4774
        %v4780 = vadd.s32 %v4779, 127
        %v4781 = vshll.u32 %v4780, 23
        %v4782 = vor.u32 4788187, %v4781
        %v4783 = vand.u32 2147483647, %v4782
        %v4785 = vcvt.s32.f32 %v4778
        %v4786 = vmul.f32 %v4785, %v4783
        %v4787 = vxor.u32 %v4786, 2147483648
        %v4788 = vsel %vm4667, %v4787, %v4786
        %v4789 = vsub.s32 4, %v4765
        %v4790 = vsel %vm4667, %v4789, %v4765
        %v4791 = vsel %vm4666, %v167, %v4788
        %v4792 = vsel %vm4666, 0, %v4790
        %v4793 = vmul.f32 %v4791, %v4791
        %v4794 = vmul.f32 %v4793, -0.001358992
        %v4795 = vadd.f32 %v4794, 0.041655596
        %v4796 = vmul.f32 %v4793, %v4795
        %v4797 = vadd.f32 %v4796, -0.4999988
        %v4798 = vmul.f32 %v4793, %v4797
        %v4799 = vadd.f32 1.0, %v4798
        %v4800 = vmul.f32 %v4791, %v4791
        %v4801 = vmul.f32 %v4800, -0.00019511016
        %v4802 = vadd.f32 %v4801, 0.008332121
        %v4803 = vmul.f32 %v4800, %v4802
        %v4804 = vadd.f32 %v4803, -0.16666654
        %v4805 = vmul.f32 %v4800, %v4804
        %v4806 = vadd.f32 %v4805, 1.0
        %v4807 = vmul.f32 %v4806, %v4791
        %vm4808 = vweird.f32 %v167
        %v4809 = vadd.s32 %v4792, 3
        %v4810 = vand.u32 %v4809, 3
        %vm4811 = vcmp.lt.s32.totalorder %v4810, 2
        %vm4812 = vcmp.eq.s32.totalorder %v4810, 0
        %v4813 = vxor.u32 %v4807, 2147483648
        %v4814 = vsel %vm4812, %v4799, %v4813
        %vm4815 = vcmp.eq.s32.totalorder %v4810, 2
        %v4816 = vxor.u32 %v4799, 2147483648
        %v4817 = vsel %vm4815, %v4816, %v4807
        %v4818 = vsel %vm4811, %v4814, %v4817
        %v4819 = vsel %vm4808, nan, %v4818
        %v4820 = vand.u32 2147483647, %v168
        %vm4821 = vcmp.le.f32.partialorder %v4820, 0.7853982
        %vm4822 = vcmp.lt.s32.totalorder %v168, 0
        %v4823 = vand.u32 %v168, 2139095040
        %v4824 = vshrl.u32 %v4823, 23
        %v4825 = vsub.s32 %v4824, 127
        %v4826 = vand.u32 2147483647, %v168
        %v4827 = vand.u32 %v4826, 8388607
        %v4828 = vor.u32 %v4827, 8388608
        %v4829 = vsub.s32 0, %v4828
        %v4830 = vadd.s32 %v4825, 1
        %vm4831 = vcmp.gt.s32.totalorder %v4830, 0
        %v4832 = vsel %vm4831, %v4830, 0
        %v4833 = vshrl.u32 %v4832, 5
        %v4834 = vand.u32 %v4832, 31
        %v4835 = vsub.s32 32, %v4834
        %v4836 = vshrl.u32 683565275, %v4835
        %v4837 = vshll.u32 683565275, %v4834
        %v4838 = vshrl.u32 2475754826, %v4835
        %v4839 = vor.u32 %v4837, %v4838
        %v4840 = vshll.u32 2475754826, %v4834
        %v4841 = vshrl.u32 2131351028, %v4835
        %v4842 = vor.u32 %v4840, %v4841
        %v4843 = vshll.u32 2131351028, %v4834
        %v4844 = vshrl.u32 2102212464, %v4835
        %v4845 = vor.u32 %v4843, %v4844
        %v4846 = vshll.u32 2102212464, %v4834
        %v4847 = vshrl.u32 920167782, %v4835
        %v4848 = vor.u32 %v4846, %v4847
        %v4849 = vshll.u32 920167782, %v4834
        %v4850 = vshrl.u32 1326507024, %v4835
        %v4851 = vor.u32 %v4849, %v4850
        %vm4852 = vcmp.lt.s32.totalorder %v4833, 1
        %vm4853 = vcmp.lt.s32.totalorder %v4833, 2
        %vm4854 = vcmp.lt.s32.totalorder %v4833, 3
        %vm4855 = vcmp.lt.s32.totalorder %v4833, 4
        %v4856 = vsel %vm4852, %v4836, %v4839
        %v4857 = vsel %vm4855, %v4845, 2102212464
        %v4858 = vsel %vm4854, %v4842, %v4857
        %v4859 = vsel %vm4853, %v4856, %v4858
        %v4860 = vsel %vm4852, %v4839, %v4842
        %v4861 = vsel %vm4855, %v4848, 920167782
        %v4862 = vsel %vm4854, %v4845, %v4861
        %v4863 = vsel %vm4853, %v4860, %v4862
        %v4864 = vsel %vm4852, %v4842, %v4845
        %v4865 = vsel %vm4855, %v4851, 1326507024
        %v4866 = vsel %vm4854, %v4848, %v4865
        %v4867 = vsel %vm4853, %v4864, %v4866
        %v4868 = vshll.u32 %v4828, 8
        %v4869 = vand.u32 %v4868, 65535
        %v4870 = vshrl.u32 %v4868, 16
        %v4871 = vand.u32 %v4867, 65535
        %v4872 = vshrl.u32 %v4867, 16
        %v4873 = vmul.u32 %v4869, %v4871
        %v4874 = vmul.u32 %v4869, %v4872
        %v4875 = vmul.u32 %v4870, %v4871
        %v4876 = vmul.u32 %v4870, %v4872
        %v4877 = vshll.u32 %v4874, 16
        %v4878 = vshrl.u32 %v4874, 16
        %v4879 = vshll.u32 %v4875, 16
        %v4880 = vshrl.u32 %v4875, 16
        %vm4881 = vc.u32 %v4873, %v4877
        %v4882 = vsel %vm4881, 1, 0
        %v4883 = vadd.s32 %v4873, %v4877
        %v4884 = vadd.s32 %v4876, %v4882
        %vm4885 = vc.u32 %v4883, %v4879
        %v4886 = vsel %vm4885, 1, 0
        %v4887 = vadd.s32 %v4883, %v4879
        %v4888 = vadd.s32 %v4884, %v4886
        %v4889 = vadd.s32 %v4888, %v4878
        %v4890 = vadd.s32 %v4889, %v4880
        %v4891 = vand.u32 %v4868, 65535
        %v4892 = vshrl.u32 %v4868, 16
        %v4893 = vand.u32 %v4863, 65535
        %v4894 = vshrl.u32 %v4863, 16
        %v4895 = vmul.u32 %v4891, %v4893
        %v4896 = vmul.u32 %v4891, %v4894
        %v4897 = vmul.u32 %v4892, %v4893
        %v4898 = vmul.u32 %v4892, %v4894
        %v4899 = vshll.u32 %v4896, 16
        %v4900 = vshrl.u32 %v4896, 16
        %v4901 = vshll.u32 %v4897, 16
        %v4902 = vshrl.u32 %v4897, 16
        %vm4903 = vc.u32 %v4895, %v4899
        %v4904 = vsel %vm4903, 1, 0
        %v4905 = vadd.s32 %v4895, %v4899
        %v4906 = vadd.s32 %v4898, %v4904
        %vm4907 = vc.u32 %v4905, %v4901
        %v4908 = vsel %vm4907, 1, 0
        %v4909 = vadd.s32 %v4905, %v4901
        %v4910 = vadd.s32 %v4906, %v4908
        %v4911 = vadd.s32 %v4910, %v4900
        %v4912 = vadd.s32 %v4911, %v4902
        %v4913 = vmul.u32 %v4868, %v4859
        %v4914 = vadd.s32 %v4890, %v4909
        %vm4915 = vc.u32 %v4890, %v4909
        %v4916 = vadd.s32 %v4912, 1
        %v4917 = vsel %vm4915, %v4916, %v4912
        %v4918 = vadd.s32 %v4913, %v4917
        %v4919 = vadd.s32 %v4918, 536870912
        %v4920 = vshrl.u32 %v4919, 30
        %v4921 = vshll.u32 %v4920, 30
        %v4922 = vsub.s32 %v4918, %v4921
        %vm4923 = vcmp.lt.s32.totalorder %v4922, 0
        %v4924 = vsub.s32 0, %v4922
        %v4925 = vsel %vm4923, %v4924, %v4922
        %v4926 = vclz %v4925
        %v4927 = vsub.s32 %v4926, 2
        %vm4928 = vcmp.gt.s32.totalorder 0, %v4927
        %v4929 = vsel %vm4928, 0, %v4927
        %v4930 = vsub.s32 32, %v4929
        %v4931 = vshll.u32 %v4922, %v4929
        %v4932 = vshrl.u32 %v4914, %v4930
        %v4933 = vor.u32 %v4931, %v4932
        %v4934 = vsub.s32 4294967266, %v4929
        %v4935 = vadd.s32 %v4934, 127
        %v4936 = vshll.u32 %v4935, 23
        %v4937 = vor.u32 4788187, %v4936
        %v4938 = vand.u32 2147483647, %v4937
        %v4940 = vcvt.s32.f32 %v4933
        %v4941 = vmul.f32 %v4940, %v4938
        %v4942 = vxor.u32 %v4941, 2147483648
        %v4943 = vsel %vm4822, %v4942, %v4941
        %v4944 = vsub.s32 4, %v4920
        %v4945 = vsel %vm4822, %v4944, %v4920
        %v4946 = vsel %vm4821, %v168, %v4943
        %v4947 = vsel %vm4821, 0, %v4945
        %v4948 = vmul.f32 %v4946, %v4946
        %v4949 = vmul.f32 %v4948, -0.001358992
        %v4950 = vadd.f32 %v4949, 0.041655596
        %v4951 = vmul.f32 %v4948, %v4950
        %v4952 = vadd.f32 %v4951, -0.4999988
        %v4953 = vmul.f32 %v4948, %v4952
        %v4954 = vadd.f32 1.0, %v4953
        %v4955 = vmul.f32 %v4946, %v4946
        %v4956 = vmul.f32 %v4955, -0.00019511016
        %v4957 = vadd.f32 %v4956, 0.008332121
        %v4958 = vmul.f32 %v4955, %v4957
        %v4959 = vadd.f32 %v4958, -0.16666654
        %v4960 = vmul.f32 %v4955, %v4959
        %v4961 = vadd.f32 %v4960, 1.0
        %v4962 = vmul.f32 %v4961, %v4946
        %vm4963 = vweird.f32 %v168
        %v4964 = vadd.s32 %v4947, 3
        %v4965 = vand.u32 %v4964, 3
        %vm4966 = vcmp.lt.s32.totalorder %v4965, 2
        %vm4967 = vcmp.eq.s32.totalorder %v4965, 0
        %v4968 = vxor.u32 %v4962, 2147483648
        %v4969 = vsel %vm4967, %v4954, %v4968
        %vm4970 = vcmp.eq.s32.totalorder %v4965, 2
        %v4971 = vxor.u32 %v4954, 2147483648
        %v4972 = vsel %vm4970, %v4971, %v4962
        %v4973 = vsel %vm4966, %v4969, %v4972
        %v4974 = vsel %vm4963, nan, %v4973
        %v4975 = vand.u32 2147483647, %v169
        %vm4976 = vcmp.le.f32.partialorder %v4975, 0.7853982
        %vm4977 = vcmp.lt.s32.totalorder %v169, 0
        %v4978 = vand.u32 %v169, 2139095040
        %v4979 = vshrl.u32 %v4978, 23
        %v4980 = vsub.s32 %v4979, 127
        %v4981 = vand.u32 2147483647, %v169
        %v4982 = vand.u32 %v4981, 8388607
        %v4983 = vor.u32 %v4982, 8388608
        %v4984 = vsub.s32 0, %v4983
        %v4985 = vadd.s32 %v4980, 1
        %vm4986 = vcmp.gt.s32.totalorder %v4985, 0
        %v4987 = vsel %vm4986, %v4985, 0
        %v4988 = vshrl.u32 %v4987, 5
        %v4989 = vand.u32 %v4987, 31
        %v4990 = vsub.s32 32, %v4989
        %v4991 = vshrl.u32 683565275, %v4990
        %v4992 = vshll.u32 683565275, %v4989
        %v4993 = vshrl.u32 2475754826, %v4990
        %v4994 = vor.u32 %v4992, %v4993
        %v4995 = vshll.u32 2475754826, %v4989
        %v4996 = vshrl.u32 2131351028, %v4990
        %v4997 = vor.u32 %v4995, %v4996
        %v4998 = vshll.u32 2131351028, %v4989
        %v4999 = vshrl.u32 2102212464, %v4990
        %v5000 = vor.u32 %v4998, %v4999
        %v5001 = vshll.u32 2102212464, %v4989
        %v5002 = vshrl.u32 920167782, %v4990
        %v5003 = vor.u32 %v5001, %v5002
        %v5004 = vshll.u32 920167782, %v4989
        %v5005 = vshrl.u32 1326507024, %v4990
        %v5006 = vor.u32 %v5004, %v5005
        %vm5007 = vcmp.lt.s32.totalorder %v4988, 1
        %vm5008 = vcmp.lt.s32.totalorder %v4988, 2
        %vm5009 = vcmp.lt.s32.totalorder %v4988, 3
        %vm5010 = vcmp.lt.s32.totalorder %v4988, 4
        %v5011 = vsel %vm5007, %v4991, %v4994
        %v5012 = vsel %vm5010, %v5000, 2102212464
        %v5013 = vsel %vm5009, %v4997, %v5012
        %v5014 = vsel %vm5008, %v5011, %v5013
        %v5015 = vsel %vm5007, %v4994, %v4997
        %v5016 = vsel %vm5010, %v5003, 920167782
        %v5017 = vsel %vm5009, %v5000, %v5016
        %v5018 = vsel %vm5008, %v5015, %v5017
        %v5019 = vsel %vm5007, %v4997, %v5000
        %v5020 = vsel %vm5010, %v5006, 1326507024
        %v5021 = vsel %vm5009, %v5003, %v5020
        %v5022 = vsel %vm5008, %v5019, %v5021
        %v5023 = vshll.u32 %v4983, 8
        %v5024 = vand.u32 %v5023, 65535
        %v5025 = vshrl.u32 %v5023, 16
        %v5026 = vand.u32 %v5022, 65535
        %v5027 = vshrl.u32 %v5022, 16
        %v5028 = vmul.u32 %v5024, %v5026
        %v5029 = vmul.u32 %v5024, %v5027
        %v5030 = vmul.u32 %v5025, %v5026
        %v5031 = vmul.u32 %v5025, %v5027
        %v5032 = vshll.u32 %v5029, 16
        %v5033 = vshrl.u32 %v5029, 16
        %v5034 = vshll.u32 %v5030, 16
        %v5035 = vshrl.u32 %v5030, 16
        %vm5036 = vc.u32 %v5028, %v5032
        %v5037 = vsel %vm5036, 1, 0
        %v5038 = vadd.s32 %v5028, %v5032
        %v5039 = vadd.s32 %v5031, %v5037
        %vm5040 = vc.u32 %v5038, %v5034
        %v5041 = vsel %vm5040, 1, 0
        %v5042 = vadd.s32 %v5038, %v5034
        %v5043 = vadd.s32 %v5039, %v5041
        %v5044 = vadd.s32 %v5043, %v5033
        %v5045 = vadd.s32 %v5044, %v5035
        %v5046 = vand.u32 %v5023, 65535
        %v5047 = vshrl.u32 %v5023, 16
        %v5048 = vand.u32 %v5018, 65535
        %v5049 = vshrl.u32 %v5018, 16
        %v5050 = vmul.u32 %v5046, %v5048
        %v5051 = vmul.u32 %v5046, %v5049
        %v5052 = vmul.u32 %v5047, %v5048
        %v5053 = vmul.u32 %v5047, %v5049
        %v5054 = vshll.u32 %v5051, 16
        %v5055 = vshrl.u32 %v5051, 16
        %v5056 = vshll.u32 %v5052, 16
        %v5057 = vshrl.u32 %v5052, 16
        %vm5058 = vc.u32 %v5050, %v5054
        %v5059 = vsel %vm5058, 1, 0
        %v5060 = vadd.s32 %v5050, %v5054
        %v5061 = vadd.s32 %v5053, %v5059
        %vm5062 = vc.u32 %v5060, %v5056
        %v5063 = vsel %vm5062, 1, 0
        %v5064 = vadd.s32 %v5060, %v5056
        %v5065 = vadd.s32 %v5061, %v5063
        %v5066 = vadd.s32 %v5065, %v5055
        %v5067 = vadd.s32 %v5066, %v5057
        %v5068 = vmul.u32 %v5023, %v5014
        %v5069 = vadd.s32 %v5045, %v5064
        %vm5070 = vc.u32 %v5045, %v5064
        %v5071 = vadd.s32 %v5067, 1
        %v5072 = vsel %vm5070, %v5071, %v5067
        %v5073 = vadd.s32 %v5068, %v5072
        %v5074 = vadd.s32 %v5073, 536870912
        %v5075 = vshrl.u32 %v5074, 30
        %v5076 = vshll.u32 %v5075, 30
        %v5077 = vsub.s32 %v5073, %v5076
        %vm5078 = vcmp.lt.s32.totalorder %v5077, 0
        %v5079 = vsub.s32 0, %v5077
        %v5080 = vsel %vm5078, %v5079, %v5077
        %v5081 = vclz %v5080
        %v5082 = vsub.s32 %v5081, 2
        %vm5083 = vcmp.gt.s32.totalorder 0, %v5082
        %v5084 = vsel %vm5083, 0, %v5082
        %v5085 = vsub.s32 32, %v5084
        %v5086 = vshll.u32 %v5077, %v5084
        %v5087 = vshrl.u32 %v5069, %v5085
        %v5088 = vor.u32 %v5086, %v5087
        %v5089 = vsub.s32 4294967266, %v5084
        %v5090 = vadd.s32 %v5089, 127
        %v5091 = vshll.u32 %v5090, 23
        %v5092 = vor.u32 4788187, %v5091
        %v5093 = vand.u32 2147483647, %v5092
        %v5095 = vcvt.s32.f32 %v5088
        %v5096 = vmul.f32 %v5095, %v5093
        %v5097 = vxor.u32 %v5096, 2147483648
        %v5098 = vsel %vm4977, %v5097, %v5096
        %v5099 = vsub.s32 4, %v5075
        %v5100 = vsel %vm4977, %v5099, %v5075
        %v5101 = vsel %vm4976, %v169, %v5098
        %v5102 = vsel %vm4976, 0, %v5100
        %v5103 = vmul.f32 %v5101, %v5101
        %v5104 = vmul.f32 %v5103, -0.001358992
        %v5105 = vadd.f32 %v5104, 0.041655596
        %v5106 = vmul.f32 %v5103, %v5105
        %v5107 = vadd.f32 %v5106, -0.4999988
        %v5108 = vmul.f32 %v5103, %v5107
        %v5109 = vadd.f32 1.0, %v5108
        %v5110 = vmul.f32 %v5101, %v5101
        %v5111 = vmul.f32 %v5110, -0.00019511016
        %v5112 = vadd.f32 %v5111, 0.008332121
        %v5113 = vmul.f32 %v5110, %v5112
        %v5114 = vadd.f32 %v5113, -0.16666654
        %v5115 = vmul.f32 %v5110, %v5114
        %v5116 = vadd.f32 %v5115, 1.0
        %v5117 = vmul.f32 %v5116, %v5101
        %vm5118 = vweird.f32 %v169
        %v5119 = vadd.s32 %v5102, 3
        %v5120 = vand.u32 %v5119, 3
        %vm5121 = vcmp.lt.s32.totalorder %v5120, 2
        %vm5122 = vcmp.eq.s32.totalorder %v5120, 0
        %v5123 = vxor.u32 %v5117, 2147483648
        %v5124 = vsel %vm5122, %v5109, %v5123
        %vm5125 = vcmp.eq.s32.totalorder %v5120, 2
        %v5126 = vxor.u32 %v5109, 2147483648
        %v5127 = vsel %vm5125, %v5126, %v5117
        %v5128 = vsel %vm5121, %v5124, %v5127
        %v5129 = vsel %vm5118, nan, %v5128
        %5130 = vst [vmem:[%s94 + $0x80] sm:$0xff] %v2804
        %5131 = vst [vmem:[%s94 + $0x88] sm:$0xff] %v2959
        %5132 = vst [vmem:[%s94 + $0x90] sm:$0xff] %v3114
        %5133 = vst [vmem:[%s94 + $0x98] sm:$0xff] %v3269
        %5134 = vst [vmem:[%s94 + $0xa0] sm:$0xff] %v3424
        %5135 = vst [vmem:[%s94 + $0xa8] sm:$0xff] %v3579
        %5136 = vst [vmem:[%s94 + $0xb0] sm:$0xff] %v3734
        %5137 = vst [vmem:[%s94 + $0xb8] sm:$0xff] %v3889
        %5138 = vst [vmem:[%s94 + $0xc0] sm:$0xff] %v4044
        %5139 = vst [vmem:[%s94 + $0xc8] sm:$0xff] %v4199
        %5140 = vst [vmem:[%s94 + $0xd0] sm:$0xff] %v4354
        %5141 = vst [vmem:[%s94 + $0xd8] sm:$0xff] %v4509
        %5142 = vst [vmem:[%s94 + $0xe0] sm:$0xff] %v4664
        %5143 = vst [vmem:[%s94 + $0xe8] sm:$0xff] %v4819
        %5144 = vst [vmem:[%s94 + $0xf0] sm:$0xff] %v4974
        %5145 = vst [vmem:[%s94 + $0xf8] sm:$0xff] %v5129
        %v5150 = vrot.slane %v112, 7
        %v5151 = vrot.slane %v113, 6
        %v5152 = vrot.slane %v114, 5
        %vm5153 = vcmask 1040384
        %v5154 = vsel %vm5153, %v111, %v5150
        %vm5155 = vcmask 1042434
        %v5156 = vsel %vm5155, %v5151, %v5152
        %vm5157 = vcmask 1041408
        %v5158 = vsel %vm5157, %v5154, %v5156
        %v5160 = vlaneseq
        %vm5161 = vcmp.ge.s32.totalorder %v5160, 0
        %vm5162 = vcmp.lt.s32.totalorder %v5160, 512
        %vm5163 = vmand %vm5161, %vm5162
        %s5164 = scalar_lea.vmem %s94, 256 [#allocation2]
        %5165 = vst.msk [vmem:[%s5164] ss:$8 sm:$0xf] %vm5163, %v5158
        %5166 = vst.msk [vmem:[%s5164] ss:$8 sm:$0x0] %vm5163, %v5158
        %s5167 = sand.u32 %s44, 1
        %s5168 = scalar_lea.sflag [#allocation3], %s5167
        %s5169 = sand.u32 %s44, 1
        %s5170 = smul.addr %s5169, 288
        %s5171 = scalar_lea.vmem [#allocation2], %s5170
        // Predicated region
        $region25: #{tpu_custom_call.1} parent=23 // pred_check
          %p5172 = pneg %p54
        $region26: #{tpu_custom_call.1} parent=23 // pred_check_branch
          %5174 = sbr.rel (%p5172) target = $region28
        $region27: #{tpu_custom_call.1} parent=23 // pred_region
          %s5175 = smul.u32 4, %s15
          %5177 = vsyncadd %s5168, 0
          %s5178 = smul.addr %s5175, 8
          %s5179 = scalar_lea.hbm %s1, %s5178
          %s5180 = sshll.u32 %s5171, 4
          %s5181 = int_to_ptr.vmem [resolvable:$true] %s5180
          %s5182 = sshll.u32 %s5179, 4
          %s5183 = int_to_ptr.hbm [resolvable:$true] %s5182
          %5188 = dma.vmem_to_hbm [thread:$0]  %s5181, 4608, %s5183, %s5168, 512, 1024, 32
        $region28: #{tpu_custom_call.1} parent=23 // pred_fallthru
          _
      $region24: #{tpu_custom_call.1} parent=5 // pred_fallthru
        _
      %p5189 = scmp.le.s32.totalorder 2, %s10
      // Predicated region
      $region29: #{tpu_custom_call.1} parent=5 // pred_check
        %p5190 = pneg %p5189
      $region30: #{tpu_custom_call.1} parent=5 // pred_check_branch
        %5192 = sbr.rel (%p5190) target = $region32
      $region31: #{tpu_custom_call.1} parent=5 // pred_region
        %s5193 = ssub.s32 %s10, 2
        // Predicated region
        $region33: #{tpu_custom_call.1} parent=31 // pred_check
          %p5194 = pneg %p60
        $region34: #{tpu_custom_call.1} parent=31 // pred_check_branch
          %5196 = sbr.rel (%p5194) target = $region36
        $region35: #{tpu_custom_call.1} parent=31 // pred_region
          %s5197 = sand.u32 %s45, 1
          %s5198 = scalar_lea.sflag [#allocation3], %s5197
          %s5199 = sand.u32 %s45, 1
          %s5200 = smul.addr %s5199, 288
          %s5201 = scalar_lea.vmem [#allocation2], %s5200
          %5203 = dma.done %s5198, 4608
        $region36: #{tpu_custom_call.1} parent=31 // pred_fallthru
          _
      $region32: #{tpu_custom_call.1} parent=5 // pred_fallthru
        _
    $region6: #{tpu_custom_call.1} parent=1 // loop_footer
      %s14 = sadd.s32 1, %s10
    $region7: #{tpu_custom_call.1} parent=1 // loop_footer_branch
      %9 = sbr.rel target = $region3
    $region8: #{tpu_custom_call.1} parent=1 // loop_exit
      _
    %5204 = vsyncpa [#allocation3], 1
    %s5205 = scalar_lea.sflag [#allocation3], 1
    %5206 = vsyncpa %s5205, 1

</llo_original>
